<compile_context>
chip_gen: v7x
topology: tpu7x:2x2x1
jax: 0.10.0
libtpu: 0.0.40
codegen_flags: <defaults>
</compile_context>

<pallas_src>
import functools

import jax
import jax.numpy as jnp
from jax.experimental import pallas as pl
from jax.experimental.pallas import tpu as pltpu

BN_EPS = 1e-5
VMEM_LIMIT_BYTES = 32 * 1024 * 1024     # safe on v5e (16MiB default) / v6e / v7x
MXU_MIN_CIN = 8                         # below this, conv uses VPU broadcast-MACs


# ----------------------------------------------------------------------------
# Pass 1 kernel: in-VMEM patch build + matmul + bias + tanh + partial BN sums
# ----------------------------------------------------------------------------
def _conv_tanh_stats_kernel(x_ref, w_ref, b_ref, y_ref, s1_ref, s2_ref,
                            *, stride, Ho, Wo, Cin, Cout, use_mxu):
    # x_ref : (1, P, Hph, Wph, Cin)  phase-split, halo'd input slab (VMEM)
    # w_ref : (9*Cin, Cout)          weights, (kh, kw, cin)-major rows
    # b_ref : (1, Cout)
    # y_ref : (1, Ho*Wo, Cout)       pre-BN activations (tanh(conv+b))
    # s1/s2 : (1, 1, Cout)           per-image sum / sum-of-squares of y
    M = Ho * Wo

    taps = []
    for kh in range(3):
        for kw in range(3):
            p = (kh % stride) * stride + (kw % stride)
            taps.append((p, kh // stride, kw // stride))

    if use_mxu:
        # Build the (M, 9*Cin) patch matrix in VMEM from 9 shifted slices,
        # then a single wide-K MXU matmul (bf16 operands, f32 accumulate).
        cols = []
        for (p, dh, dw) in taps:
            v = x_ref[0, p, dh:dh + Ho, dw:dw + Wo, :]          # (Ho, Wo, Cin)
            cols.append(v.reshape(M, Cin))
        patches = jnp.concatenate(cols, axis=-1).astype(jnp.bfloat16)
        acc = jnp.dot(patches, w_ref[...],
                      preferred_element_type=jnp.float32)        # (M, Cout) f32
    else:
        # Degenerate contraction (e.g. Cin == 1): VPU broadcast multiply-adds,
        # skip the near-empty MXU op entirely.
        acc3 = jnp.zeros((Ho, Wo, Cout), jnp.float32)
        for t, (p, dh, dw) in enumerate(taps):
            v = x_ref[0, p, dh:dh + Ho, dw:dw + Wo, :]           # (Ho, Wo, Cin)
            for c in range(Cin):
                w_row = w_ref[t * Cin + c:t * Cin + c + 1, :]    # (1, Cout)
                acc3 = acc3 + v[:, :, c:c + 1] * w_row[None, :, :]
        acc = acc3.reshape(M, Cout)

    y = jnp.tanh(acc + b_ref[...])                               # (M, Cout) f32

    y_ref[...] = y[None]                                         # (1, M, Cout)
    s1_ref[...] = jnp.sum(y, axis=0, keepdims=True)[None]        # (1, 1, Cout)
    s2_ref[...] = jnp.sum(y * y, axis=0, keepdims=True)[None]    # (1, 1, Cout)


def _conv_tanh_stats(php, w_mat, bias_row, *, stride, Ho, Wo, Cin, Cout, use_mxu):
    N, P, Hph, Wph, _ = php.shape
    M = Ho * Wo
    K = 9 * Cin

    kern = functools.partial(_conv_tanh_stats_kernel, stride=stride, Ho=Ho, Wo=Wo,
                             Cin=Cin, Cout=Cout, use_mxu=use_mxu)

    bytes_accessed = int(php.size * jnp.dtype(php.dtype).itemsize
                         + w_mat.size * jnp.dtype(w_mat.dtype).itemsize
                         + bias_row.size * 4
                         + N * M * Cout * 4 + 2 * N * Cout * 4)
    cost = pl.CostEstimate(flops=int(2 * N * M * K * Cout + 6 * N * M * Cout),
                           transcendentals=int(N * M * Cout),
                           bytes_accessed=bytes_accessed)

    return pl.pallas_call(
        kern,
        out_shape=(jax.ShapeDtypeStruct((N, M, Cout), jnp.float32),
                   jax.ShapeDtypeStruct((N, 1, Cout), jnp.float32),
                   jax.ShapeDtypeStruct((N, 1, Cout), jnp.float32)),
        grid=(N,),
        in_specs=[pl.BlockSpec((1, P, Hph, Wph, Cin), lambda n: (n, 0, 0, 0, 0)),
                  pl.BlockSpec((K, Cout), lambda n: (0, 0)),
                  pl.BlockSpec((1, Cout), lambda n: (0, 0))],
        out_specs=(pl.BlockSpec((1, M, Cout), lambda n: (n, 0, 0)),
                   pl.BlockSpec((1, 1, Cout), lambda n: (n, 0, 0)),
                   pl.BlockSpec((1, 1, Cout), lambda n: (n, 0, 0))),
        compiler_params=pltpu.CompilerParams(
            dimension_semantics=("parallel",),
            vmem_limit_bytes=VMEM_LIMIT_BYTES),
        cost_estimate=cost,
    )(php, w_mat, bias_row)


# ----------------------------------------------------------------------------
# Pass 2 kernel: lane-dense BN apply  (out = y * scale + shift)
# ----------------------------------------------------------------------------
def _bn_apply_kernel(y_ref, scale_ref, shift_ref, o_ref):
    o_ref[...] = y_ref[...] * scale_ref[...] + shift_ref[...]


def _pick_row_tile(rows, cap=512):
    if rows <= cap:
        return rows
    for t in range(cap - cap % 8, 7, -8):
        if rows % t == 0:
            return t
    return rows


def _bn_apply(y2, scale_row, shift_row):
    rows, wc = y2.shape
    tr = _pick_row_tile(rows)
    cost = pl.CostEstimate(flops=int(2 * rows * wc), transcendentals=0,
                           bytes_accessed=int(2 * rows * wc * 4 + 2 * wc * 4))
    return pl.pallas_call(
        _bn_apply_kernel,
        out_shape=jax.ShapeDtypeStruct((rows, wc), jnp.float32),
        grid=(rows // tr,),
        in_specs=[pl.BlockSpec((tr, wc), lambda i: (i, 0)),
                  pl.BlockSpec((1, wc), lambda i: (0, 0)),
                  pl.BlockSpec((1, wc), lambda i: (0, 0))],
        out_specs=pl.BlockSpec((tr, wc), lambda i: (i, 0)),
        compiler_params=pltpu.CompilerParams(
            dimension_semantics=("parallel",),
            vmem_limit_bytes=VMEM_LIMIT_BYTES),
        cost_estimate=cost,
    )(y2, scale_row, shift_row)


# ----------------------------------------------------------------------------
# Host/JAX glue: 1-pixel halo pad + phase split (NO 9x im2col amplification)
# ----------------------------------------------------------------------------
def _phase_split(xp, stride, hph, wph):
    """(N, Hp, Wp, C) padded image -> (N, stride*stride, hph, wph, C) phases."""
    planes = []
    for a in range(stride):
        for b in range(stride):
            plane = xp[:, a::stride, b::stride, :]
            ph, pw = plane.shape[1], plane.shape[2]
            plane = jnp.pad(plane, ((0, 0), (0, hph - ph), (0, wph - pw), (0, 0)))
            planes.append(plane)
    return jnp.stack(planes, axis=1)


def _conv_block(x_nhwc, w_oihw, bias, gamma, beta, stride):
    """conv3x3(pad=1, stride) -> tanh -> BatchNorm2d (training stats). NHWC."""
    N, H, W, Cin = x_nhwc.shape
    Cout = w_oihw.shape[0]
    Ho = (H + 2 - 3) // stride + 1
    Wo = (W + 2 - 3) // stride + 1

    xp = jnp.pad(x_nhwc.astype(jnp.float32), ((0, 0), (1, 1), (1, 1), (0, 0)))
    hph = Ho + (2 // stride)
    wph = Wo + (2 // stride)
    php = _phase_split(xp, stride, hph, wph)          # (N, s*s, hph, wph, Cin)

    use_mxu = Cin >= MXU_MIN_CIN
    w_mat = jnp.transpose(w_oihw, (2, 3, 1, 0)).reshape(9 * Cin, Cout)
    w_mat = w_mat.astype(jnp.bfloat16 if use_mxu else jnp.float32)
    bias_row = bias.reshape(1, Cout).astype(jnp.float32)

    y, s1, s2 = _conv_tanh_stats(php, w_mat, bias_row, stride=stride,
                                 Ho=Ho, Wo=Wo, Cin=Cin, Cout=Cout,
                                 use_mxu=use_mxu)     # y: (N, Ho*Wo, Cout)

    # Combine per-image partial sums -> full-batch BN stats (biased variance).
    m_total = float(N * Ho * Wo)
    mean = jnp.sum(s1, axis=(0, 1)) / m_total                       # (Cout,)
    var = jnp.maximum(jnp.sum(s2, axis=(0, 1)) / m_total - mean * mean, 0.0)
    scale = gamma * jax.lax.rsqrt(var + BN_EPS)
    shift = beta - mean * scale

    # Lane-dense normalize: view Y as (N*Ho, Wo*Cout) (same row-major bytes).
    rows, wc = N * Ho, Wo * Cout
    y2 = y.reshape(rows, wc)
    scale_row = jnp.tile(scale, Wo).reshape(1, wc).astype(jnp.float32)
    shift_row = jnp.tile(shift, Wo).reshape(1, wc).astype(jnp.float32)
    out2 = _bn_apply(y2, scale_row, shift_row)
    return out2.reshape(N, Ho, Wo, Cout)


# ----------------------------------------------------------------------------
# Parameters + forward
# ----------------------------------------------------------------------------
def init_params(key, in_channels=1, latent_channels=64):
    keys = jax.random.split(key, 6)

    def conv_init(kw, kb, cout, cin):
        fan_in = cin * 9
        bound = 1.0 / jnp.sqrt(fan_in)
        w = jax.random.uniform(kw, (cout, cin, 3, 3), jnp.float32, -bound, bound)
        b = jax.random.uniform(kb, (cout,), jnp.float32, -bound, bound)
        return w, b

    w1, b1 = conv_init(keys[0], keys[1], 32, in_channels)
    w2, b2 = conv_init(keys[2], keys[3], 64, 32)
    w3, b3 = conv_init(keys[4], keys[5], latent_channels, 64)
    return {
        "conv1": (w1, b1), "conv2": (w2, b2), "conv3": (w3, b3),
        "bn1": (jnp.ones((32,), jnp.float32), jnp.zeros((32,), jnp.float32)),
        "bn2": (jnp.ones((64,), jnp.float32), jnp.zeros((64,), jnp.float32)),
        "bn3": (jnp.ones((latent_channels,), jnp.float32),
                jnp.zeros((latent_channels,), jnp.float32)),
    }


@jax.jit
def cnn_encoder_forward(params, x_nchw):
    """x_nchw: (N, C_in, H, W) -> (N, latent_channels, H//4, W//4)."""
    x = jnp.transpose(x_nchw, (0, 2, 3, 1))          # NCHW -> NHWC
    w1, b1 = params["conv1"]; g1, bt1 = params["bn1"]
    w2, b2 = params["conv2"]; g2, bt2 = params["bn2"]
    w3, b3 = params["conv3"]; g3, bt3 = params["bn3"]
    x = _conv_block(x, w1, b1, g1, bt1, stride=1)    # (N, H,   W,   32)
    x = _conv_block(x, w2, b2, g2, bt2, stride=2)    # (N, H/2, W/2, 64)
    x = _conv_block(x, w3, b3, g3, bt3, stride=2)    # (N, H/4, W/4, latent)
    return jnp.transpose(x, (0, 3, 1, 2))            # NHWC -> NCHW


# Pure-JAX reference (exact PyTorch training-mode semantics, f32 everywhere).
@jax.jit
def _reference_forward(params, x_nchw):
    x = jnp.transpose(x_nchw, (0, 2, 3, 1))
    for name, bn, stride in (("conv1", "bn1", 1), ("conv2", "bn2", 2),
                             ("conv3", "bn3", 2)):
        w, b = params[name]
        g, bt = params[bn]
        w_hwio = jnp.transpose(w, (2, 3, 1, 0))
        z = jax.lax.conv_general_dilated(
            x, w_hwio, (stride, stride), ((1, 1), (1, 1)),
            dimension_numbers=("NHWC", "HWIO", "NHWC"))
        y = jnp.tanh(z + b)
        mean = jnp.mean(y, axis=(0, 1, 2))
        var = jnp.mean((y - mean) ** 2, axis=(0, 1, 2))
        x = g * (y - mean) * jax.lax.rsqrt(var + BN_EPS) + bt
    return jnp.transpose(x, (0, 3, 1, 2))


if __name__ == "__main__":
    key = jax.random.PRNGKey(0)
    k_param, k_input = jax.random.split(key)

    in_channels = 1
    latent_channels = 64
    params = init_params(k_param, in_channels, latent_channels)

    # Small deterministic input (NCHW, PyTorch convention).
    x = jax.random.normal(k_input, (2, in_channels, 16, 16), dtype=jnp.float32)

    out = cnn_encoder_forward(params, x)
    out = jax.block_until_ready(out)

    assert out.shape == (2, latent_channels, 4, 4), out.shape
    assert out.dtype == jnp.float32

    # Loose tolerance: conv2/conv3 matmuls use bf16 operands (f32 accumulate).
    ref = jax.block_until_ready(_reference_forward(params, x))
    max_err = float(jnp.max(jnp.abs(out - ref)))
    assert max_err < 1e-1, f"max abs error vs f32 reference: {max_err}"

    print("KERNEL_OK")
</pallas_src>

<mosaic_0001>
module attributes {stable_mosaic.version = 11 : i64} {
  func.func @_conv_tanh_stats_kernel(%arg0: i32, %arg1: memref<1x1x18x18x1xf32, #tpu.memory_space<vmem>>, %arg2: memref<9x32xf32, #tpu.memory_space<vmem>>, %arg3: memref<1x32xf32, #tpu.memory_space<vmem>>, %arg4: memref<1x256x32xf32, #tpu.memory_space<vmem>>, %arg5: memref<1x1x32xf32, #tpu.memory_space<vmem>>, %arg6: memref<1x1x32xf32, #tpu.memory_space<vmem>>) attributes {dimension_semantics = [#tpu.dimension_semantics<parallel>], iteration_bounds = array<i64: 2>, scalar_prefetch = 0 : i64, scratch_operands = 0 : i64, tpu.core_type = #tpu.core_type<tc>, window_params = [{transform_indices = @transform_0, window_bounds = array<i64: 1, 1, 18, 18, 1>}, {pipeline_mode = #tpu.pipeline_mode<synchronous>, transform_indices = @transform_1, window_bounds = array<i64: 9, 32>}, {pipeline_mode = #tpu.pipeline_mode<synchronous>, transform_indices = @transform_2, window_bounds = array<i64: 1, 32>}, {transform_indices = @transform_3, window_bounds = array<i64: 1, 256, 32>}, {transform_indices = @transform_4, window_bounds = array<i64: 1, 1, 32>}, {transform_indices = @transform_5, window_bounds = array<i64: 1, 1, 32>}]} {
    %cst = arith.constant 0.000000e+00 : f32
    %0 = vector.broadcast %cst : f32 to vector<16x16x32xf32>
    %c0 = arith.constant 0 : index
    %c0_0 = arith.constant 0 : index
    %c0_1 = arith.constant 0 : index
    %c0_2 = arith.constant 0 : index
    %c0_3 = arith.constant 0 : index
    %1 = vector.load %arg1[%c0, %c0_0, %c0_1, %c0_2, %c0_3] : memref<1x1x18x18x1xf32, #tpu.memory_space<vmem>>, vector<1x1x16x16x1xf32>
    %2 = vector.shape_cast %1 : vector<1x1x16x16x1xf32> to vector<16x16x1xf32>
    %c0_4 = arith.constant 0 : index
    %c0_5 = arith.constant 0 : index
    %3 = vector.load %arg2[%c0_4, %c0_5] : memref<9x32xf32, #tpu.memory_space<vmem>>, vector<1x32xf32>
    %4 = vector.shape_cast %3 : vector<1x32xf32> to vector<1x1x32xf32>
    %5 = vector.broadcast %2 : vector<16x16x1xf32> to vector<16x16x32xf32>
    %6 = vector.broadcast %4 : vector<1x1x32xf32> to vector<16x16x32xf32>
    %7 = arith.mulf %5, %6 : vector<16x16x32xf32>
    %8 = arith.addf %0, %7 : vector<16x16x32xf32>
    %c0_6 = arith.constant 0 : index
    %c0_7 = arith.constant 0 : index
    %c0_8 = arith.constant 0 : index
    %c1 = arith.constant 1 : index
    %c0_9 = arith.constant 0 : index
    %9 = vector.load %arg1[%c0_6, %c0_7, %c0_8, %c1, %c0_9] : memref<1x1x18x18x1xf32, #tpu.memory_space<vmem>>, vector<1x1x16x16x1xf32>
    %10 = vector.shape_cast %9 : vector<1x1x16x16x1xf32> to vector<16x16x1xf32>
    %c1_10 = arith.constant 1 : index
    %c0_11 = arith.constant 0 : index
    %11 = vector.load %arg2[%c1_10, %c0_11] : memref<9x32xf32, #tpu.memory_space<vmem>>, vector<1x32xf32>
    %12 = vector.shape_cast %11 : vector<1x32xf32> to vector<1x1x32xf32>
    %13 = vector.broadcast %10 : vector<16x16x1xf32> to vector<16x16x32xf32>
    %14 = vector.broadcast %12 : vector<1x1x32xf32> to vector<16x16x32xf32>
    %15 = arith.mulf %13, %14 : vector<16x16x32xf32>
    %16 = arith.addf %8, %15 : vector<16x16x32xf32>
    %c0_12 = arith.constant 0 : index
    %c0_13 = arith.constant 0 : index
    %c0_14 = arith.constant 0 : index
    %c2 = arith.constant 2 : index
    %c0_15 = arith.constant 0 : index
    %17 = vector.load %arg1[%c0_12, %c0_13, %c0_14, %c2, %c0_15] : memref<1x1x18x18x1xf32, #tpu.memory_space<vmem>>, vector<1x1x16x16x1xf32>
    %18 = vector.shape_cast %17 : vector<1x1x16x16x1xf32> to vector<16x16x1xf32>
    %c2_16 = arith.constant 2 : index
    %c0_17 = arith.constant 0 : index
    %19 = vector.load %arg2[%c2_16, %c0_17] : memref<9x32xf32, #tpu.memory_space<vmem>>, vector<1x32xf32>
    %20 = vector.shape_cast %19 : vector<1x32xf32> to vector<1x1x32xf32>
    %21 = vector.broadcast %18 : vector<16x16x1xf32> to vector<16x16x32xf32>
    %22 = vector.broadcast %20 : vector<1x1x32xf32> to vector<16x16x32xf32>
    %23 = arith.mulf %21, %22 : vector<16x16x32xf32>
    %24 = arith.addf %16, %23 : vector<16x16x32xf32>
    %c0_18 = arith.constant 0 : index
    %c0_19 = arith.constant 0 : index
    %c1_20 = arith.constant 1 : index
    %c0_21 = arith.constant 0 : index
    %c0_22 = arith.constant 0 : index
    %25 = vector.load %arg1[%c0_18, %c0_19, %c1_20, %c0_21, %c0_22] : memref<1x1x18x18x1xf32, #tpu.memory_space<vmem>>, vector<1x1x16x16x1xf32>
    %26 = vector.shape_cast %25 : vector<1x1x16x16x1xf32> to vector<16x16x1xf32>
    %c3 = arith.constant 3 : index
    %c0_23 = arith.constant 0 : index
    %27 = vector.load %arg2[%c3, %c0_23] : memref<9x32xf32, #tpu.memory_space<vmem>>, vector<1x32xf32>
    %28 = vector.shape_cast %27 : vector<1x32xf32> to vector<1x1x32xf32>
    %29 = vector.broadcast %26 : vector<16x16x1xf32> to vector<16x16x32xf32>
    %30 = vector.broadcast %28 : vector<1x1x32xf32> to vector<16x16x32xf32>
    %31 = arith.mulf %29, %30 : vector<16x16x32xf32>
    %32 = arith.addf %24, %31 : vector<16x16x32xf32>
    %c0_24 = arith.constant 0 : index
    %c0_25 = arith.constant 0 : index
    %c1_26 = arith.constant 1 : index
    %c1_27 = arith.constant 1 : index
    %c0_28 = arith.constant 0 : index
    %33 = vector.load %arg1[%c0_24, %c0_25, %c1_26, %c1_27, %c0_28] : memref<1x1x18x18x1xf32, #tpu.memory_space<vmem>>, vector<1x1x16x16x1xf32>
    %34 = vector.shape_cast %33 : vector<1x1x16x16x1xf32> to vector<16x16x1xf32>
    %c4 = arith.constant 4 : index
    %c0_29 = arith.constant 0 : index
    %35 = vector.load %arg2[%c4, %c0_29] : memref<9x32xf32, #tpu.memory_space<vmem>>, vector<1x32xf32>
    %36 = vector.shape_cast %35 : vector<1x32xf32> to vector<1x1x32xf32>
    %37 = vector.broadcast %34 : vector<16x16x1xf32> to vector<16x16x32xf32>
    %38 = vector.broadcast %36 : vector<1x1x32xf32> to vector<16x16x32xf32>
    %39 = arith.mulf %37, %38 : vector<16x16x32xf32>
    %40 = arith.addf %32, %39 : vector<16x16x32xf32>
    %c0_30 = arith.constant 0 : index
    %c0_31 = arith.constant 0 : index
    %c1_32 = arith.constant 1 : index
    %c2_33 = arith.constant 2 : index
    %c0_34 = arith.constant 0 : index
    %41 = vector.load %arg1[%c0_30, %c0_31, %c1_32, %c2_33, %c0_34] : memref<1x1x18x18x1xf32, #tpu.memory_space<vmem>>, vector<1x1x16x16x1xf32>
    %42 = vector.shape_cast %41 : vector<1x1x16x16x1xf32> to vector<16x16x1xf32>
    %c5 = arith.constant 5 : index
    %c0_35 = arith.constant 0 : index
    %43 = vector.load %arg2[%c5, %c0_35] : memref<9x32xf32, #tpu.memory_space<vmem>>, vector<1x32xf32>
    %44 = vector.shape_cast %43 : vector<1x32xf32> to vector<1x1x32xf32>
    %45 = vector.broadcast %42 : vector<16x16x1xf32> to vector<16x16x32xf32>
    %46 = vector.broadcast %44 : vector<1x1x32xf32> to vector<16x16x32xf32>
    %47 = arith.mulf %45, %46 : vector<16x16x32xf32>
    %48 = arith.addf %40, %47 : vector<16x16x32xf32>
    %c0_36 = arith.constant 0 : index
    %c0_37 = arith.constant 0 : index
    %c2_38 = arith.constant 2 : index
    %c0_39 = arith.constant 0 : index
    %c0_40 = arith.constant 0 : index
    %49 = vector.load %arg1[%c0_36, %c0_37, %c2_38, %c0_39, %c0_40] : memref<1x1x18x18x1xf32, #tpu.memory_space<vmem>>, vector<1x1x16x16x1xf32>
    %50 = vector.shape_cast %49 : vector<1x1x16x16x1xf32> to vector<16x16x1xf32>
    %c6 = arith.constant 6 : index
    %c0_41 = arith.constant 0 : index
    %51 = vector.load %arg2[%c6, %c0_41] : memref<9x32xf32, #tpu.memory_space<vmem>>, vector<1x32xf32>
    %52 = vector.shape_cast %51 : vector<1x32xf32> to vector<1x1x32xf32>
    %53 = vector.broadcast %50 : vector<16x16x1xf32> to vector<16x16x32xf32>
    %54 = vector.broadcast %52 : vector<1x1x32xf32> to vector<16x16x32xf32>
    %55 = arith.mulf %53, %54 : vector<16x16x32xf32>
    %56 = arith.addf %48, %55 : vector<16x16x32xf32>
    %c0_42 = arith.constant 0 : index
    %c0_43 = arith.constant 0 : index
    %c2_44 = arith.constant 2 : index
    %c1_45 = arith.constant 1 : index
    %c0_46 = arith.constant 0 : index
    %57 = vector.load %arg1[%c0_42, %c0_43, %c2_44, %c1_45, %c0_46] : memref<1x1x18x18x1xf32, #tpu.memory_space<vmem>>, vector<1x1x16x16x1xf32>
    %58 = vector.shape_cast %57 : vector<1x1x16x16x1xf32> to vector<16x16x1xf32>
    %c7 = arith.constant 7 : index
    %c0_47 = arith.constant 0 : index
    %59 = vector.load %arg2[%c7, %c0_47] : memref<9x32xf32, #tpu.memory_space<vmem>>, vector<1x32xf32>
    %60 = vector.shape_cast %59 : vector<1x32xf32> to vector<1x1x32xf32>
    %61 = vector.broadcast %58 : vector<16x16x1xf32> to vector<16x16x32xf32>
    %62 = vector.broadcast %60 : vector<1x1x32xf32> to vector<16x16x32xf32>
    %63 = arith.mulf %61, %62 : vector<16x16x32xf32>
    %64 = arith.addf %56, %63 : vector<16x16x32xf32>
    %c0_48 = arith.constant 0 : index
    %c0_49 = arith.constant 0 : index
    %c2_50 = arith.constant 2 : index
    %c2_51 = arith.constant 2 : index
    %c0_52 = arith.constant 0 : index
    %65 = vector.load %arg1[%c0_48, %c0_49, %c2_50, %c2_51, %c0_52] : memref<1x1x18x18x1xf32, #tpu.memory_space<vmem>>, vector<1x1x16x16x1xf32>
    %66 = vector.shape_cast %65 : vector<1x1x16x16x1xf32> to vector<16x16x1xf32>
    %c8 = arith.constant 8 : index
    %c0_53 = arith.constant 0 : index
    %67 = vector.load %arg2[%c8, %c0_53] : memref<9x32xf32, #tpu.memory_space<vmem>>, vector<1x32xf32>
    %68 = vector.shape_cast %67 : vector<1x32xf32> to vector<1x1x32xf32>
    %69 = vector.broadcast %66 : vector<16x16x1xf32> to vector<16x16x32xf32>
    %70 = vector.broadcast %68 : vector<1x1x32xf32> to vector<16x16x32xf32>
    %71 = arith.mulf %69, %70 : vector<16x16x32xf32>
    %72 = arith.addf %64, %71 : vector<16x16x32xf32>
    %73 = vector.shape_cast %72 : vector<16x16x32xf32> to vector<256x32xf32>
    %c0_54 = arith.constant 0 : index
    %c0_55 = arith.constant 0 : index
    %74 = vector.load %arg3[%c0_54, %c0_55] : memref<1x32xf32, #tpu.memory_space<vmem>>, vector<1x32xf32>
    %75 = vector.broadcast %74 : vector<1x32xf32> to vector<256x32xf32>
    %76 = arith.addf %73, %75 : vector<256x32xf32>
    %77 = math.tanh %76 : vector<256x32xf32>
    %78 = vector.shape_cast %77 : vector<256x32xf32> to vector<1x256x32xf32>
    %c0_56 = arith.constant 0 : index
    %c0_57 = arith.constant 0 : index
    %c0_58 = arith.constant 0 : index
    %79 = vector.load %arg4[%c0_56, %c0_57, %c0_58] : memref<1x256x32xf32, #tpu.memory_space<vmem>>, vector<1x256x32xf32>
    tpu.vector_store %arg4[%c0_56, %c0_57, %c0_58], %78 {strides = array<i32>} : memref<1x256x32xf32, #tpu.memory_space<vmem>>, vector<1x256x32xf32>,
    %cst_59 = arith.constant dense<0.000000e+00> : vector<32xf32>
    %80 = vector.multi_reduction <add>, %77, %cst_59 [0] : vector<256x32xf32> to vector<32xf32>
    %81 = vector.shape_cast %80 : vector<32xf32> to vector<1x32xf32>
    %82 = vector.shape_cast %81 : vector<1x32xf32> to vector<1x1x32xf32>
    %c0_60 = arith.constant 0 : index
    %c0_61 = arith.constant 0 : index
    %c0_62 = arith.constant 0 : index
    %83 = vector.load %arg5[%c0_60, %c0_61, %c0_62] : memref<1x1x32xf32, #tpu.memory_space<vmem>>, vector<1x1x32xf32>
    tpu.vector_store %arg5[%c0_60, %c0_61, %c0_62], %82 {strides = array<i32>} : memref<1x1x32xf32, #tpu.memory_space<vmem>>, vector<1x1x32xf32>,
    %84 = arith.mulf %77, %77 : vector<256x32xf32>
    %cst_63 = arith.constant dense<0.000000e+00> : vector<32xf32>
    %85 = vector.multi_reduction <add>, %84, %cst_63 [0] : vector<256x32xf32> to vector<32xf32>
    %86 = vector.shape_cast %85 : vector<32xf32> to vector<1x32xf32>
    %87 = vector.shape_cast %86 : vector<1x32xf32> to vector<1x1x32xf32>
    %c0_64 = arith.constant 0 : index
    %c0_65 = arith.constant 0 : index
    %c0_66 = arith.constant 0 : index
    %88 = vector.load %arg6[%c0_64, %c0_65, %c0_66] : memref<1x1x32xf32, #tpu.memory_space<vmem>>, vector<1x1x32xf32>
    tpu.vector_store %arg6[%c0_64, %c0_65, %c0_66], %87 {strides = array<i32>} : memref<1x1x32xf32, #tpu.memory_space<vmem>>, vector<1x1x32xf32>,
    return
  }
  func.func @transform_0(%arg0: i32) -> (i32, i32, i32, i32, i32) {
    %c0_i32 = arith.constant 0 : i32
    %c0_i32_0 = arith.constant 0 : i32
    %c0_i32_1 = arith.constant 0 : i32
    %c0_i32_2 = arith.constant 0 : i32
    %c0_i32_3 = arith.constant 0 : i32
    return %arg0, %c0_i32, %c0_i32_0, %c0_i32_1, %c0_i32_2 : i32, i32, i32, i32, i32
  }
  func.func @transform_1(%arg0: i32) -> (i32, i32) {
    %c0_i32 = arith.constant 0 : i32
    %c0_i32_0 = arith.constant 0 : i32
    %c0_i32_1 = arith.constant 0 : i32
    return %c0_i32, %c0_i32_0 : i32, i32
  }
  func.func @transform_2(%arg0: i32) -> (i32, i32) {
    %c0_i32 = arith.constant 0 : i32
    %c0_i32_0 = arith.constant 0 : i32
    %c0_i32_1 = arith.constant 0 : i32
    return %c0_i32, %c0_i32_0 : i32, i32
  }
  func.func @transform_3(%arg0: i32) -> (i32, i32, i32) {
    %c0_i32 = arith.constant 0 : i32
    %c0_i32_0 = arith.constant 0 : i32
    %c0_i32_1 = arith.constant 0 : i32
    return %arg0, %c0_i32, %c0_i32_0 : i32, i32, i32
  }
  func.func @transform_4(%arg0: i32) -> (i32, i32, i32) {
    %c0_i32 = arith.constant 0 : i32
    %c0_i32_0 = arith.constant 0 : i32
    %c0_i32_1 = arith.constant 0 : i32
    return %arg0, %c0_i32, %c0_i32_0 : i32, i32, i32
  }
  func.func @transform_5(%arg0: i32) -> (i32, i32, i32) {
    %c0_i32 = arith.constant 0 : i32
    %c0_i32_0 = arith.constant 0 : i32
    %c0_i32_1 = arith.constant 0 : i32
    return %arg0, %c0_i32, %c0_i32_0 : i32, i32, i32
  }
}

module attributes {stable_mosaic.version = 11 : i64} {
  func.func @_bn_apply_kernel(%arg0: i32, %arg1: memref<32x512xf32, #tpu.memory_space<vmem>>, %arg2: memref<1x512xf32, #tpu.memory_space<vmem>>, %arg3: memref<1x512xf32, #tpu.memory_space<vmem>>, %arg4: memref<32x512xf32, #tpu.memory_space<vmem>>) attributes {dimension_semantics = [#tpu.dimension_semantics<parallel>], iteration_bounds = array<i64: 1>, scalar_prefetch = 0 : i64, scratch_operands = 0 : i64, tpu.core_type = #tpu.core_type<tc>, window_params = [{transform_indices = @transform_0, window_bounds = array<i64: 32, 512>}, {pipeline_mode = #tpu.pipeline_mode<synchronous>, transform_indices = @transform_1, window_bounds = array<i64: 1, 512>}, {pipeline_mode = #tpu.pipeline_mode<synchronous>, transform_indices = @transform_2, window_bounds = array<i64: 1, 512>}, {transform_indices = @transform_3, window_bounds = array<i64: 32, 512>}]} {
    %c0 = arith.constant 0 : index
    %c0_0 = arith.constant 0 : index
    %0 = vector.load %arg1[%c0, %c0_0] : memref<32x512xf32, #tpu.memory_space<vmem>>, vector<32x512xf32>
    %c0_1 = arith.constant 0 : index
    %c0_2 = arith.constant 0 : index
    %1 = vector.load %arg2[%c0_1, %c0_2] : memref<1x512xf32, #tpu.memory_space<vmem>>, vector<1x512xf32>
    %2 = vector.broadcast %1 : vector<1x512xf32> to vector<32x512xf32>
    %3 = arith.mulf %0, %2 : vector<32x512xf32>
    %c0_3 = arith.constant 0 : index
    %c0_4 = arith.constant 0 : index
    %4 = vector.load %arg3[%c0_3, %c0_4] : memref<1x512xf32, #tpu.memory_space<vmem>>, vector<1x512xf32>
    %5 = vector.broadcast %4 : vector<1x512xf32> to vector<32x512xf32>
    %6 = arith.addf %3, %5 : vector<32x512xf32>
    %c0_5 = arith.constant 0 : index
    %c0_6 = arith.constant 0 : index
    %7 = vector.load %arg4[%c0_5, %c0_6] : memref<32x512xf32, #tpu.memory_space<vmem>>, vector<32x512xf32>
    tpu.vector_store %arg4[%c0_5, %c0_6], %6 {strides = array<i32>} : memref<32x512xf32, #tpu.memory_space<vmem>>, vector<32x512xf32>,
    return
  }
  func.func @transform_0(%arg0: i32) -> (i32, i32) {
    %c0_i32 = arith.constant 0 : i32
    %c0_i32_0 = arith.constant 0 : i32
    return %arg0, %c0_i32 : i32, i32
  }
  func.func @transform_1(%arg0: i32) -> (i32, i32) {
    %c0_i32 = arith.constant 0 : i32
    %c0_i32_0 = arith.constant 0 : i32
    %c0_i32_1 = arith.constant 0 : i32
    return %c0_i32, %c0_i32_0 : i32, i32
  }
  func.func @transform_2(%arg0: i32) -> (i32, i32) {
    %c0_i32 = arith.constant 0 : i32
    %c0_i32_0 = arith.constant 0 : i32
    %c0_i32_1 = arith.constant 0 : i32
    return %c0_i32, %c0_i32_0 : i32, i32
  }
  func.func @transform_3(%arg0: i32) -> (i32, i32) {
    %c0_i32 = arith.constant 0 : i32
    %c0_i32_0 = arith.constant 0 : i32
    return %arg0, %c0_i32 : i32, i32
  }
}

module attributes {stable_mosaic.version = 11 : i64} {
  func.func @_conv_tanh_stats_kernel(%arg0: i32, %arg1: memref<1x4x9x9x32xf32, #tpu.memory_space<vmem>>, %arg2: memref<288x64xbf16, #tpu.memory_space<vmem>>, %arg3: memref<1x64xf32, #tpu.memory_space<vmem>>, %arg4: memref<1x64x64xf32, #tpu.memory_space<vmem>>, %arg5: memref<1x1x64xf32, #tpu.memory_space<vmem>>, %arg6: memref<1x1x64xf32, #tpu.memory_space<vmem>>) attributes {dimension_semantics = [#tpu.dimension_semantics<parallel>], iteration_bounds = array<i64: 2>, scalar_prefetch = 0 : i64, scratch_operands = 0 : i64, tpu.core_type = #tpu.core_type<tc>, window_params = [{transform_indices = @transform_0, window_bounds = array<i64: 1, 4, 9, 9, 32>}, {pipeline_mode = #tpu.pipeline_mode<synchronous>, transform_indices = @transform_1, window_bounds = array<i64: 288, 64>}, {pipeline_mode = #tpu.pipeline_mode<synchronous>, transform_indices = @transform_2, window_bounds = array<i64: 1, 64>}, {transform_indices = @transform_3, window_bounds = array<i64: 1, 64, 64>}, {transform_indices = @transform_4, window_bounds = array<i64: 1, 1, 64>}, {transform_indices = @transform_5, window_bounds = array<i64: 1, 1, 64>}]} {
    %c0 = arith.constant 0 : index
    %c0_0 = arith.constant 0 : index
    %c0_1 = arith.constant 0 : index
    %c0_2 = arith.constant 0 : index
    %c0_3 = arith.constant 0 : index
    %0 = vector.load %arg1[%c0, %c0_0, %c0_1, %c0_2, %c0_3] : memref<1x4x9x9x32xf32, #tpu.memory_space<vmem>>, vector<1x1x8x8x32xf32>
    %1 = vector.shape_cast %0 : vector<1x1x8x8x32xf32> to vector<8x8x32xf32>
    %2 = vector.shape_cast %1 : vector<8x8x32xf32> to vector<64x32xf32>
    %c0_4 = arith.constant 0 : index
    %c1 = arith.constant 1 : index
    %c0_5 = arith.constant 0 : index
    %c0_6 = arith.constant 0 : index
    %c0_7 = arith.constant 0 : index
    %3 = vector.load %arg1[%c0_4, %c1, %c0_5, %c0_6, %c0_7] : memref<1x4x9x9x32xf32, #tpu.memory_space<vmem>>, vector<1x1x8x8x32xf32>
    %4 = vector.shape_cast %3 : vector<1x1x8x8x32xf32> to vector<8x8x32xf32>
    %5 = vector.shape_cast %4 : vector<8x8x32xf32> to vector<64x32xf32>
    %c0_8 = arith.constant 0 : index
    %c0_9 = arith.constant 0 : index
    %c0_10 = arith.constant 0 : index
    %c1_11 = arith.constant 1 : index
    %c0_12 = arith.constant 0 : index
    %6 = vector.load %arg1[%c0_8, %c0_9, %c0_10, %c1_11, %c0_12] : memref<1x4x9x9x32xf32, #tpu.memory_space<vmem>>, vector<1x1x8x8x32xf32>
    %7 = vector.shape_cast %6 : vector<1x1x8x8x32xf32> to vector<8x8x32xf32>
    %8 = vector.shape_cast %7 : vector<8x8x32xf32> to vector<64x32xf32>
    %c0_13 = arith.constant 0 : index
    %c2 = arith.constant 2 : index
    %c0_14 = arith.constant 0 : index
    %c0_15 = arith.constant 0 : index
    %c0_16 = arith.constant 0 : index
    %9 = vector.load %arg1[%c0_13, %c2, %c0_14, %c0_15, %c0_16] : memref<1x4x9x9x32xf32, #tpu.memory_space<vmem>>, vector<1x1x8x8x32xf32>
    %10 = vector.shape_cast %9 : vector<1x1x8x8x32xf32> to vector<8x8x32xf32>
    %11 = vector.shape_cast %10 : vector<8x8x32xf32> to vector<64x32xf32>
    %c0_17 = arith.constant 0 : index
    %c3 = arith.constant 3 : index
    %c0_18 = arith.constant 0 : index
    %c0_19 = arith.constant 0 : index
    %c0_20 = arith.constant 0 : index
    %12 = vector.load %arg1[%c0_17, %c3, %c0_18, %c0_19, %c0_20] : memref<1x4x9x9x32xf32, #tpu.memory_space<vmem>>, vector<1x1x8x8x32xf32>
    %13 = vector.shape_cast %12 : vector<1x1x8x8x32xf32> to vector<8x8x32xf32>
    %14 = vector.shape_cast %13 : vector<8x8x32xf32> to vector<64x32xf32>
    %c0_21 = arith.constant 0 : index
    %c2_22 = arith.constant 2 : index
    %c0_23 = arith.constant 0 : index
    %c1_24 = arith.constant 1 : index
    %c0_25 = arith.constant 0 : index
    %15 = vector.load %arg1[%c0_21, %c2_22, %c0_23, %c1_24, %c0_25] : memref<1x4x9x9x32xf32, #tpu.memory_space<vmem>>, vector<1x1x8x8x32xf32>
    %16 = vector.shape_cast %15 : vector<1x1x8x8x32xf32> to vector<8x8x32xf32>
    %17 = vector.shape_cast %16 : vector<8x8x32xf32> to vector<64x32xf32>
    %c0_26 = arith.constant 0 : index
    %c0_27 = arith.constant 0 : index
    %c1_28 = arith.constant 1 : index
    %c0_29 = arith.constant 0 : index
    %c0_30 = arith.constant 0 : index
    %18 = vector.load %arg1[%c0_26, %c0_27, %c1_28, %c0_29, %c0_30] : memref<1x4x9x9x32xf32, #tpu.memory_space<vmem>>, vector<1x1x8x8x32xf32>
    %19 = vector.shape_cast %18 : vector<1x1x8x8x32xf32> to vector<8x8x32xf32>
    %20 = vector.shape_cast %19 : vector<8x8x32xf32> to vector<64x32xf32>
    %c0_31 = arith.constant 0 : index
    %c1_32 = arith.constant 1 : index
    %c1_33 = arith.constant 1 : index
    %c0_34 = arith.constant 0 : index
    %c0_35 = arith.constant 0 : index
    %21 = vector.load %arg1[%c0_31, %c1_32, %c1_33, %c0_34, %c0_35] : memref<1x4x9x9x32xf32, #tpu.memory_space<vmem>>, vector<1x1x8x8x32xf32>
    %22 = vector.shape_cast %21 : vector<1x1x8x8x32xf32> to vector<8x8x32xf32>
    %23 = vector.shape_cast %22 : vector<8x8x32xf32> to vector<64x32xf32>
    %c0_36 = arith.constant 0 : index
    %c0_37 = arith.constant 0 : index
    %c1_38 = arith.constant 1 : index
    %c1_39 = arith.constant 1 : index
    %c0_40 = arith.constant 0 : index
    %24 = vector.load %arg1[%c0_36, %c0_37, %c1_38, %c1_39, %c0_40] : memref<1x4x9x9x32xf32, #tpu.memory_space<vmem>>, vector<1x1x8x8x32xf32>
    %25 = vector.shape_cast %24 : vector<1x1x8x8x32xf32> to vector<8x8x32xf32>
    %26 = vector.shape_cast %25 : vector<8x8x32xf32> to vector<64x32xf32>
    %27 = tpu.concatenate %2, %5, %8, %11, %14, %17, %20, %23, %26 in 1 : vector<64x32xf32>, vector<64x32xf32>, vector<64x32xf32>, vector<64x32xf32>, vector<64x32xf32>, vector<64x32xf32>, vector<64x32xf32>, vector<64x32xf32>, vector<64x32xf32> -> vector<64x288xf32>
    %28 = arith.truncf %27 : vector<64x288xf32> to vector<64x288xbf16>
    %c0_41 = arith.constant 0 : index
    %c0_42 = arith.constant 0 : index
    %29 = vector.load %arg2[%c0_41, %c0_42] : memref<288x64xbf16, #tpu.memory_space<vmem>>, vector<288x64xbf16>
    %cst = arith.constant dense<0.000000e+00> : vector<64x64xf32>
    %30 = tpu.matmul %28, %29, %cst {dimension_numbers = #tpu.dot_dimension_numbers<[1], [0], [0], [1], [0, 0, 1, 1], [], []>} : vector<64x288xbf16>, vector<288x64xbf16>, vector<64x64xf32> -> vector<64x64xf32>
    %c0_43 = arith.constant 0 : index
    %c0_44 = arith.constant 0 : index
    %31 = vector.load %arg3[%c0_43, %c0_44] : memref<1x64xf32, #tpu.memory_space<vmem>>, vector<1x64xf32>
    %32 = vector.broadcast %31 : vector<1x64xf32> to vector<64x64xf32>
    %33 = arith.addf %30, %32 : vector<64x64xf32>
    %34 = math.tanh %33 : vector<64x64xf32>
    %35 = vector.shape_cast %34 : vector<64x64xf32> to vector<1x64x64xf32>
    %c0_45 = arith.constant 0 : index
    %c0_46 = arith.constant 0 : index
    %c0_47 = arith.constant 0 : index
    %36 = vector.load %arg4[%c0_45, %c0_46, %c0_47] : memref<1x64x64xf32, #tpu.memory_space<vmem>>, vector<1x64x64xf32>
    tpu.vector_store %arg4[%c0_45, %c0_46, %c0_47], %35 {strides = array<i32>} : memref<1x64x64xf32, #tpu.memory_space<vmem>>, vector<1x64x64xf32>,
    %cst_48 = arith.constant dense<0.000000e+00> : vector<64xf32>
    %37 = vector.multi_reduction <add>, %34, %cst_48 [0] : vector<64x64xf32> to vector<64xf32>
    %38 = vector.shape_cast %37 : vector<64xf32> to vector<1x64xf32>
    %39 = vector.shape_cast %38 : vector<1x64xf32> to vector<1x1x64xf32>
    %c0_49 = arith.constant 0 : index
    %c0_50 = arith.constant 0 : index
    %c0_51 = arith.constant 0 : index
    %40 = vector.load %arg5[%c0_49, %c0_50, %c0_51] : memref<1x1x64xf32, #tpu.memory_space<vmem>>, vector<1x1x64xf32>
    tpu.vector_store %arg5[%c0_49, %c0_50, %c0_51], %39 {strides = array<i32>} : memref<1x1x64xf32, #tpu.memory_space<vmem>>, vector<1x1x64xf32>,
    %41 = arith.mulf %34, %34 : vector<64x64xf32>
    %cst_52 = arith.constant dense<0.000000e+00> : vector<64xf32>
    %42 = vector.multi_reduction <add>, %41, %cst_52 [0] : vector<64x64xf32> to vector<64xf32>
    %43 = vector.shape_cast %42 : vector<64xf32> to vector<1x64xf32>
    %44 = vector.shape_cast %43 : vector<1x64xf32> to vector<1x1x64xf32>
    %c0_53 = arith.constant 0 : index
    %c0_54 = arith.constant 0 : index
    %c0_55 = arith.constant 0 : index
    %45 = vector.load %arg6[%c0_53, %c0_54, %c0_55] : memref<1x1x64xf32, #tpu.memory_space<vmem>>, vector<1x1x64xf32>
    tpu.vector_store %arg6[%c0_53, %c0_54, %c0_55], %44 {strides = array<i32>} : memref<1x1x64xf32, #tpu.memory_space<vmem>>, vector<1x1x64xf32>,
    return
  }
  func.func @transform_0(%arg0: i32) -> (i32, i32, i32, i32, i32) {
    %c0_i32 = arith.constant 0 : i32
    %c0_i32_0 = arith.constant 0 : i32
    %c0_i32_1 = arith.constant 0 : i32
    %c0_i32_2 = arith.constant 0 : i32
    %c0_i32_3 = arith.constant 0 : i32
    return %arg0, %c0_i32, %c0_i32_0, %c0_i32_1, %c0_i32_2 : i32, i32, i32, i32, i32
  }
  func.func @transform_1(%arg0: i32) -> (i32, i32) {
    %c0_i32 = arith.constant 0 : i32
    %c0_i32_0 = arith.constant 0 : i32
    %c0_i32_1 = arith.constant 0 : i32
    return %c0_i32, %c0_i32_0 : i32, i32
  }
  func.func @transform_2(%arg0: i32) -> (i32, i32) {
    %c0_i32 = arith.constant 0 : i32
    %c0_i32_0 = arith.constant 0 : i32
    %c0_i32_1 = arith.constant 0 : i32
    return %c0_i32, %c0_i32_0 : i32, i32
  }
  func.func @transform_3(%arg0: i32) -> (i32, i32, i32) {
    %c0_i32 = arith.constant 0 : i32
    %c0_i32_0 = arith.constant 0 : i32
    %c0_i32_1 = arith.constant 0 : i32
    return %arg0, %c0_i32, %c0_i32_0 : i32, i32, i32
  }
  func.func @transform_4(%arg0: i32) -> (i32, i32, i32) {
    %c0_i32 = arith.constant 0 : i32
    %c0_i32_0 = arith.constant 0 : i32
    %c0_i32_1 = arith.constant 0 : i32
    return %arg0, %c0_i32, %c0_i32_0 : i32, i32, i32
  }
  func.func @transform_5(%arg0: i32) -> (i32, i32, i32) {
    %c0_i32 = arith.constant 0 : i32
    %c0_i32_0 = arith.constant 0 : i32
    %c0_i32_1 = arith.constant 0 : i32
    return %arg0, %c0_i32, %c0_i32_0 : i32, i32, i32
  }
}

module attributes {stable_mosaic.version = 11 : i64} {
  func.func @_bn_apply_kernel(%arg0: i32, %arg1: memref<16x512xf32, #tpu.memory_space<vmem>>, %arg2: memref<1x512xf32, #tpu.memory_space<vmem>>, %arg3: memref<1x512xf32, #tpu.memory_space<vmem>>, %arg4: memref<16x512xf32, #tpu.memory_space<vmem>>) attributes {dimension_semantics = [#tpu.dimension_semantics<parallel>], iteration_bounds = array<i64: 1>, scalar_prefetch = 0 : i64, scratch_operands = 0 : i64, tpu.core_type = #tpu.core_type<tc>, window_params = [{transform_indices = @transform_0, window_bounds = array<i64: 16, 512>}, {pipeline_mode = #tpu.pipeline_mode<synchronous>, transform_indices = @transform_1, window_bounds = array<i64: 1, 512>}, {pipeline_mode = #tpu.pipeline_mode<synchronous>, transform_indices = @transform_2, window_bounds = array<i64: 1, 512>}, {transform_indices = @transform_3, window_bounds = array<i64: 16, 512>}]} {
    %c0 = arith.constant 0 : index
    %c0_0 = arith.constant 0 : index
    %0 = vector.load %arg1[%c0, %c0_0] : memref<16x512xf32, #tpu.memory_space<vmem>>, vector<16x512xf32>
    %c0_1 = arith.constant 0 : index
    %c0_2 = arith.constant 0 : index
    %1 = vector.load %arg2[%c0_1, %c0_2] : memref<1x512xf32, #tpu.memory_space<vmem>>, vector<1x512xf32>
    %2 = vector.broadcast %1 : vector<1x512xf32> to vector<16x512xf32>
    %3 = arith.mulf %0, %2 : vector<16x512xf32>
    %c0_3 = arith.constant 0 : index
    %c0_4 = arith.constant 0 : index
    %4 = vector.load %arg3[%c0_3, %c0_4] : memref<1x512xf32, #tpu.memory_space<vmem>>, vector<1x512xf32>
    %5 = vector.broadcast %4 : vector<1x512xf32> to vector<16x512xf32>
    %6 = arith.addf %3, %5 : vector<16x512xf32>
    %c0_5 = arith.constant 0 : index
    %c0_6 = arith.constant 0 : index
    %7 = vector.load %arg4[%c0_5, %c0_6] : memref<16x512xf32, #tpu.memory_space<vmem>>, vector<16x512xf32>
    tpu.vector_store %arg4[%c0_5, %c0_6], %6 {strides = array<i32>} : memref<16x512xf32, #tpu.memory_space<vmem>>, vector<16x512xf32>,
    return
  }
  func.func @transform_0(%arg0: i32) -> (i32, i32) {
    %c0_i32 = arith.constant 0 : i32
    %c0_i32_0 = arith.constant 0 : i32
    return %arg0, %c0_i32 : i32, i32
  }
  func.func @transform_1(%arg0: i32) -> (i32, i32) {
    %c0_i32 = arith.constant 0 : i32
    %c0_i32_0 = arith.constant 0 : i32
    %c0_i32_1 = arith.constant 0 : i32
    return %c0_i32, %c0_i32_0 : i32, i32
  }
  func.func @transform_2(%arg0: i32) -> (i32, i32) {
    %c0_i32 = arith.constant 0 : i32
    %c0_i32_0 = arith.constant 0 : i32
    %c0_i32_1 = arith.constant 0 : i32
    return %c0_i32, %c0_i32_0 : i32, i32
  }
  func.func @transform_3(%arg0: i32) -> (i32, i32) {
    %c0_i32 = arith.constant 0 : i32
    %c0_i32_0 = arith.constant 0 : i32
    return %arg0, %c0_i32 : i32, i32
  }
}

module attributes {stable_mosaic.version = 11 : i64} {
  func.func @_conv_tanh_stats_kernel(%arg0: i32, %arg1: memref<1x4x5x5x64xf32, #tpu.memory_space<vmem>>, %arg2: memref<576x64xbf16, #tpu.memory_space<vmem>>, %arg3: memref<1x64xf32, #tpu.memory_space<vmem>>, %arg4: memref<1x16x64xf32, #tpu.memory_space<vmem>>, %arg5: memref<1x1x64xf32, #tpu.memory_space<vmem>>, %arg6: memref<1x1x64xf32, #tpu.memory_space<vmem>>) attributes {dimension_semantics = [#tpu.dimension_semantics<parallel>], iteration_bounds = array<i64: 2>, scalar_prefetch = 0 : i64, scratch_operands = 0 : i64, tpu.core_type = #tpu.core_type<tc>, window_params = [{transform_indices = @transform_0, window_bounds = array<i64: 1, 4, 5, 5, 64>}, {pipeline_mode = #tpu.pipeline_mode<synchronous>, transform_indices = @transform_1, window_bounds = array<i64: 576, 64>}, {pipeline_mode = #tpu.pipeline_mode<synchronous>, transform_indices = @transform_2, window_bounds = array<i64: 1, 64>}, {transform_indices = @transform_3, window_bounds = array<i64: 1, 16, 64>}, {transform_indices = @transform_4, window_bounds = array<i64: 1, 1, 64>}, {transform_indices = @transform_5, window_bounds = array<i64: 1, 1, 64>}]} {
    %c0 = arith.constant 0 : index
    %c0_0 = arith.constant 0 : index
    %c0_1 = arith.constant 0 : index
    %c0_2 = arith.constant 0 : index
    %c0_3 = arith.constant 0 : index
    %0 = vector.load %arg1[%c0, %c0_0, %c0_1, %c0_2, %c0_3] : memref<1x4x5x5x64xf32, #tpu.memory_space<vmem>>, vector<1x1x4x4x64xf32>
    %1 = vector.shape_cast %0 : vector<1x1x4x4x64xf32> to vector<4x4x64xf32>
    %2 = vector.shape_cast %1 : vector<4x4x64xf32> to vector<16x64xf32>
    %c0_4 = arith.constant 0 : index
    %c1 = arith.constant 1 : index
    %c0_5 = arith.constant 0 : index
    %c0_6 = arith.constant 0 : index
    %c0_7 = arith.constant 0 : index
    %3 = vector.load %arg1[%c0_4, %c1, %c0_5, %c0_6, %c0_7] : memref<1x4x5x5x64xf32, #tpu.memory_space<vmem>>, vector<1x1x4x4x64xf32>
    %4 = vector.shape_cast %3 : vector<1x1x4x4x64xf32> to vector<4x4x64xf32>
    %5 = vector.shape_cast %4 : vector<4x4x64xf32> to vector<16x64xf32>
    %c0_8 = arith.constant 0 : index
    %c0_9 = arith.constant 0 : index
    %c0_10 = arith.constant 0 : index
    %c1_11 = arith.constant 1 : index
    %c0_12 = arith.constant 0 : index
    %6 = vector.load %arg1[%c0_8, %c0_9, %c0_10, %c1_11, %c0_12] : memref<1x4x5x5x64xf32, #tpu.memory_space<vmem>>, vector<1x1x4x4x64xf32>
    %7 = vector.shape_cast %6 : vector<1x1x4x4x64xf32> to vector<4x4x64xf32>
    %8 = vector.shape_cast %7 : vector<4x4x64xf32> to vector<16x64xf32>
    %c0_13 = arith.constant 0 : index
    %c2 = arith.constant 2 : index
    %c0_14 = arith.constant 0 : index
    %c0_15 = arith.constant 0 : index
    %c0_16 = arith.constant 0 : index
    %9 = vector.load %arg1[%c0_13, %c2, %c0_14, %c0_15, %c0_16] : memref<1x4x5x5x64xf32, #tpu.memory_space<vmem>>, vector<1x1x4x4x64xf32>
    %10 = vector.shape_cast %9 : vector<1x1x4x4x64xf32> to vector<4x4x64xf32>
    %11 = vector.shape_cast %10 : vector<4x4x64xf32> to vector<16x64xf32>
    %c0_17 = arith.constant 0 : index
    %c3 = arith.constant 3 : index
    %c0_18 = arith.constant 0 : index
    %c0_19 = arith.constant 0 : index
    %c0_20 = arith.constant 0 : index
    %12 = vector.load %arg1[%c0_17, %c3, %c0_18, %c0_19, %c0_20] : memref<1x4x5x5x64xf32, #tpu.memory_space<vmem>>, vector<1x1x4x4x64xf32>
    %13 = vector.shape_cast %12 : vector<1x1x4x4x64xf32> to vector<4x4x64xf32>
    %14 = vector.shape_cast %13 : vector<4x4x64xf32> to vector<16x64xf32>
    %c0_21 = arith.constant 0 : index
    %c2_22 = arith.constant 2 : index
    %c0_23 = arith.constant 0 : index
    %c1_24 = arith.constant 1 : index
    %c0_25 = arith.constant 0 : index
    %15 = vector.load %arg1[%c0_21, %c2_22, %c0_23, %c1_24, %c0_25] : memref<1x4x5x5x64xf32, #tpu.memory_space<vmem>>, vector<1x1x4x4x64xf32>
    %16 = vector.shape_cast %15 : vector<1x1x4x4x64xf32> to vector<4x4x64xf32>
    %17 = vector.shape_cast %16 : vector<4x4x64xf32> to vector<16x64xf32>
    %c0_26 = arith.constant 0 : index
    %c0_27 = arith.constant 0 : index
    %c1_28 = arith.constant 1 : index
    %c0_29 = arith.constant 0 : index
    %c0_30 = arith.constant 0 : index
    %18 = vector.load %arg1[%c0_26, %c0_27, %c1_28, %c0_29, %c0_30] : memref<1x4x5x5x64xf32, #tpu.memory_space<vmem>>, vector<1x1x4x4x64xf32>
    %19 = vector.shape_cast %18 : vector<1x1x4x4x64xf32> to vector<4x4x64xf32>
    %20 = vector.shape_cast %19 : vector<4x4x64xf32> to vector<16x64xf32>
    %c0_31 = arith.constant 0 : index
    %c1_32 = arith.constant 1 : index
    %c1_33 = arith.constant 1 : index
    %c0_34 = arith.constant 0 : index
    %c0_35 = arith.constant 0 : index
    %21 = vector.load %arg1[%c0_31, %c1_32, %c1_33, %c0_34, %c0_35] : memref<1x4x5x5x64xf32, #tpu.memory_space<vmem>>, vector<1x1x4x4x64xf32>
    %22 = vector.shape_cast %21 : vector<1x1x4x4x64xf32> to vector<4x4x64xf32>
    %23 = vector.shape_cast %22 : vector<4x4x64xf32> to vector<16x64xf32>
    %c0_36 = arith.constant 0 : index
    %c0_37 = arith.constant 0 : index
    %c1_38 = arith.constant 1 : index
    %c1_39 = arith.constant 1 : index
    %c0_40 = arith.constant 0 : index
    %24 = vector.load %arg1[%c0_36, %c0_37, %c1_38, %c1_39, %c0_40] : memref<1x4x5x5x64xf32, #tpu.memory_space<vmem>>, vector<1x1x4x4x64xf32>
    %25 = vector.shape_cast %24 : vector<1x1x4x4x64xf32> to vector<4x4x64xf32>
    %26 = vector.shape_cast %25 : vector<4x4x64xf32> to vector<16x64xf32>
    %27 = tpu.concatenate %2, %5, %8, %11, %14, %17, %20, %23, %26 in 1 : vector<16x64xf32>, vector<16x64xf32>, vector<16x64xf32>, vector<16x64xf32>, vector<16x64xf32>, vector<16x64xf32>, vector<16x64xf32>, vector<16x64xf32>, vector<16x64xf32> -> vector<16x576xf32>
    %28 = arith.truncf %27 : vector<16x576xf32> to vector<16x576xbf16>
    %c0_41 = arith.constant 0 : index
    %c0_42 = arith.constant 0 : index
    %29 = vector.load %arg2[%c0_41, %c0_42] : memref<576x64xbf16, #tpu.memory_space<vmem>>, vector<576x64xbf16>
    %cst = arith.constant dense<0.000000e+00> : vector<16x64xf32>
    %30 = tpu.matmul %28, %29, %cst {dimension_numbers = #tpu.dot_dimension_numbers<[1], [0], [0], [1], [0, 0, 1, 1], [], []>} : vector<16x576xbf16>, vector<576x64xbf16>, vector<16x64xf32> -> vector<16x64xf32>
    %c0_43 = arith.constant 0 : index
    %c0_44 = arith.constant 0 : index
    %31 = vector.load %arg3[%c0_43, %c0_44] : memref<1x64xf32, #tpu.memory_space<vmem>>, vector<1x64xf32>
    %32 = vector.broadcast %31 : vector<1x64xf32> to vector<16x64xf32>
    %33 = arith.addf %30, %32 : vector<16x64xf32>
    %34 = math.tanh %33 : vector<16x64xf32>
    %35 = vector.shape_cast %34 : vector<16x64xf32> to vector<1x16x64xf32>
    %c0_45 = arith.constant 0 : index
    %c0_46 = arith.constant 0 : index
    %c0_47 = arith.constant 0 : index
    %36 = vector.load %arg4[%c0_45, %c0_46, %c0_47] : memref<1x16x64xf32, #tpu.memory_space<vmem>>, vector<1x16x64xf32>
    tpu.vector_store %arg4[%c0_45, %c0_46, %c0_47], %35 {strides = array<i32>} : memref<1x16x64xf32, #tpu.memory_space<vmem>>, vector<1x16x64xf32>,
    %cst_48 = arith.constant dense<0.000000e+00> : vector<64xf32>
    %37 = vector.multi_reduction <add>, %34, %cst_48 [0] : vector<16x64xf32> to vector<64xf32>
    %38 = vector.shape_cast %37 : vector<64xf32> to vector<1x64xf32>
    %39 = vector.shape_cast %38 : vector<1x64xf32> to vector<1x1x64xf32>
    %c0_49 = arith.constant 0 : index
    %c0_50 = arith.constant 0 : index
    %c0_51 = arith.constant 0 : index
    %40 = vector.load %arg5[%c0_49, %c0_50, %c0_51] : memref<1x1x64xf32, #tpu.memory_space<vmem>>, vector<1x1x64xf32>
    tpu.vector_store %arg5[%c0_49, %c0_50, %c0_51], %39 {strides = array<i32>} : memref<1x1x64xf32, #tpu.memory_space<vmem>>, vector<1x1x64xf32>,
    %41 = arith.mulf %34, %34 : vector<16x64xf32>
    %cst_52 = arith.constant dense<0.000000e+00> : vector<64xf32>
    %42 = vector.multi_reduction <add>, %41, %cst_52 [0] : vector<16x64xf32> to vector<64xf32>
    %43 = vector.shape_cast %42 : vector<64xf32> to vector<1x64xf32>
    %44 = vector.shape_cast %43 : vector<1x64xf32> to vector<1x1x64xf32>
    %c0_53 = arith.constant 0 : index
    %c0_54 = arith.constant 0 : index
    %c0_55 = arith.constant 0 : index
    %45 = vector.load %arg6[%c0_53, %c0_54, %c0_55] : memref<1x1x64xf32, #tpu.memory_space<vmem>>, vector<1x1x64xf32>
    tpu.vector_store %arg6[%c0_53, %c0_54, %c0_55], %44 {strides = array<i32>} : memref<1x1x64xf32, #tpu.memory_space<vmem>>, vector<1x1x64xf32>,
    return
  }
  func.func @transform_0(%arg0: i32) -> (i32, i32, i32, i32, i32) {
    %c0_i32 = arith.constant 0 : i32
    %c0_i32_0 = arith.constant 0 : i32
    %c0_i32_1 = arith.constant 0 : i32
    %c0_i32_2 = arith.constant 0 : i32
    %c0_i32_3 = arith.constant 0 : i32
    return %arg0, %c0_i32, %c0_i32_0, %c0_i32_1, %c0_i32_2 : i32, i32, i32, i32, i32
  }
  func.func @transform_1(%arg0: i32) -> (i32, i32) {
    %c0_i32 = arith.constant 0 : i32
    %c0_i32_0 = arith.constant 0 : i32
    %c0_i32_1 = arith.constant 0 : i32
    return %c0_i32, %c0_i32_0 : i32, i32
  }
  func.func @transform_2(%arg0: i32) -> (i32, i32) {
    %c0_i32 = arith.constant 0 : i32
    %c0_i32_0 = arith.constant 0 : i32
    %c0_i32_1 = arith.constant 0 : i32
    return %c0_i32, %c0_i32_0 : i32, i32
  }
  func.func @transform_3(%arg0: i32) -> (i32, i32, i32) {
    %c0_i32 = arith.constant 0 : i32
    %c0_i32_0 = arith.constant 0 : i32
    %c0_i32_1 = arith.constant 0 : i32
    return %arg0, %c0_i32, %c0_i32_0 : i32, i32, i32
  }
  func.func @transform_4(%arg0: i32) -> (i32, i32, i32) {
    %c0_i32 = arith.constant 0 : i32
    %c0_i32_0 = arith.constant 0 : i32
    %c0_i32_1 = arith.constant 0 : i32
    return %arg0, %c0_i32, %c0_i32_0 : i32, i32, i32
  }
  func.func @transform_5(%arg0: i32) -> (i32, i32, i32) {
    %c0_i32 = arith.constant 0 : i32
    %c0_i32_0 = arith.constant 0 : i32
    %c0_i32_1 = arith.constant 0 : i32
    return %arg0, %c0_i32, %c0_i32_0 : i32, i32, i32
  }
}

module attributes {stable_mosaic.version = 11 : i64} {
  func.func @_bn_apply_kernel(%arg0: i32, %arg1: memref<8x256xf32, #tpu.memory_space<vmem>>, %arg2: memref<1x256xf32, #tpu.memory_space<vmem>>, %arg3: memref<1x256xf32, #tpu.memory_space<vmem>>, %arg4: memref<8x256xf32, #tpu.memory_space<vmem>>) attributes {dimension_semantics = [#tpu.dimension_semantics<parallel>], iteration_bounds = array<i64: 1>, scalar_prefetch = 0 : i64, scratch_operands = 0 : i64, tpu.core_type = #tpu.core_type<tc>, window_params = [{transform_indices = @transform_0, window_bounds = array<i64: 8, 256>}, {pipeline_mode = #tpu.pipeline_mode<synchronous>, transform_indices = @transform_1, window_bounds = array<i64: 1, 256>}, {pipeline_mode = #tpu.pipeline_mode<synchronous>, transform_indices = @transform_2, window_bounds = array<i64: 1, 256>}, {transform_indices = @transform_3, window_bounds = array<i64: 8, 256>}]} {
    %c0 = arith.constant 0 : index
    %c0_0 = arith.constant 0 : index
    %0 = vector.load %arg1[%c0, %c0_0] : memref<8x256xf32, #tpu.memory_space<vmem>>, vector<8x256xf32>
    %c0_1 = arith.constant 0 : index
    %c0_2 = arith.constant 0 : index
    %1 = vector.load %arg2[%c0_1, %c0_2] : memref<1x256xf32, #tpu.memory_space<vmem>>, vector<1x256xf32>
    %2 = vector.broadcast %1 : vector<1x256xf32> to vector<8x256xf32>
    %3 = arith.mulf %0, %2 : vector<8x256xf32>
    %c0_3 = arith.constant 0 : index
    %c0_4 = arith.constant 0 : index
    %4 = vector.load %arg3[%c0_3, %c0_4] : memref<1x256xf32, #tpu.memory_space<vmem>>, vector<1x256xf32>
    %5 = vector.broadcast %4 : vector<1x256xf32> to vector<8x256xf32>
    %6 = arith.addf %3, %5 : vector<8x256xf32>
    %c0_5 = arith.constant 0 : index
    %c0_6 = arith.constant 0 : index
    %7 = vector.load %arg4[%c0_5, %c0_6] : memref<8x256xf32, #tpu.memory_space<vmem>>, vector<8x256xf32>
    tpu.vector_store %arg4[%c0_5, %c0_6], %6 {strides = array<i32>} : memref<8x256xf32, #tpu.memory_space<vmem>>, vector<8x256xf32>,
    return
  }
  func.func @transform_0(%arg0: i32) -> (i32, i32) {
    %c0_i32 = arith.constant 0 : i32
    %c0_i32_0 = arith.constant 0 : i32
    return %arg0, %c0_i32 : i32, i32
  }
  func.func @transform_1(%arg0: i32) -> (i32, i32) {
    %c0_i32 = arith.constant 0 : i32
    %c0_i32_0 = arith.constant 0 : i32
    %c0_i32_1 = arith.constant 0 : i32
    return %c0_i32, %c0_i32_0 : i32, i32
  }
  func.func @transform_2(%arg0: i32) -> (i32, i32) {
    %c0_i32 = arith.constant 0 : i32
    %c0_i32_0 = arith.constant 0 : i32
    %c0_i32_1 = arith.constant 0 : i32
    return %c0_i32, %c0_i32_0 : i32, i32
  }
  func.func @transform_3(%arg0: i32) -> (i32, i32) {
    %c0_i32 = arith.constant 0 : i32
    %c0_i32_0 = arith.constant 0 : i32
    return %arg0, %c0_i32 : i32, i32
  }
}

</mosaic_0001>

<llo_original>
// kernel: tile.33
$region0: #{tile.33}
  #allocation0 [shape = 's32[1]{0}', space=sflag, size = 0x4, scoped, tag = 'scoped memory for tile.33']
  %s0 = inlined_call_operand.vmem [shape: f32[32], index: 0, kind: input, shape index: {}]
  %s1 = inlined_call_operand.vmem [shape: f32[16,32], index: 1, kind: output, shape index: {}]
  // Predicated region
  $region2: #{tile.33} parent=0 // pred_check
    _
  $region3: #{tile.33} parent=0 // pred_check_branch
    %3 = sbr.rel (0) target = $region5
  $region4: #{tile.33} parent=0 // pred_region
    _
  $region5: #{tile.33} parent=0 // pred_fallthru
    _
  %v4 = vld [vmem:[%s0] ss:$0 sm:$0xff]
  %5 = vst [vmem:[%s1] sm:$0xff] %v4
  %s6 = scalar_lea.vmem %s1, 8
  %7 = vst [vmem:[%s6] sm:$0xff] %v4

// kernel: tile.34
$region0: #{tile.34}
  %s0 = inlined_call_operand.vmem [shape: f32[16,32], index: 0, kind: input, shape index: {}]
  %s1 = inlined_call_operand.vmem [shape: f32[1,512], index: 1, kind: output, shape index: {}]
  $region1: #{tile.34} parent=0
    #allocation0 [shape = 'u8[16384]{0}', space=vmem, size = 0x4000, scoped, tag = 'scoped mem for output reshape']
    %v2 = vld [vmem:[%s0] ss:$4 sm:$0xf]
    %vm3 = vcmask 261120
    %4 = vst.msk [vmem:[#allocation0] ss:$8 sm:$0xf] %vm3, %v2
    %s5 = scalar_lea.vmem %s0, 3
    %v6 = vld [vmem:[%s5] ss:$4 sm:$0xf]
    %7 = vrot.lane.b32.xlu0 %v6, 96
    %v8 = vpop.permute.xlu0 %7
    %vm9 = vcmask 1048320
    %10 = vst.msk [vmem:[#allocation0] ss:$8 sm:$0xf] %vm9, %v8
    %s11 = scalar_lea.vmem %s0, 2
    %v12 = vld [vmem:[%s11] ss:$4 sm:$0xf]
    %13 = vrot.lane.b32.xlu0 %v12, 64
    %v14 = vpop.permute.xlu0 %13
    %vm15 = vcmask 785920
    %16 = vst.msk [vmem:[#allocation0] ss:$8 sm:$0xf] %vm15, %v14
    %s17 = scalar_lea.vmem %s0, 1
    %v18 = vld [vmem:[%s17] ss:$4 sm:$0xf]
    %19 = vrot.lane.b32.xlu0 %v18, 32
    %v20 = vpop.permute.xlu0 %19
    %vm21 = vcmask 523520
    %22 = vst.msk [vmem:[#allocation0] ss:$8 sm:$0xf] %vm21, %v20
    %s24 = sshllo.u32 0, 1
    %v26 = vld [vmem:[#allocation0] sm:%s24]
    %s27 = sshllo.u32 0, 1
    %28 = vst [vmem:[%s1] sm:%s27] %v26
    %s29 = scalar_lea.vmem [#allocation0], 8
    %v30 = vld [vmem:[%s29] sm:%s24]
    %s31 = sshllo.u32 0, 1
    %s32 = scalar_lea.vmem %s1, 1
    %33 = vst [vmem:[%s32] sm:%s31] %v30
    %s34 = scalar_lea.vmem [#allocation0], 16
    %v35 = vld [vmem:[%s34] sm:%s24]
    %s36 = sshllo.u32 0, 1
    %s37 = smul.addr 1, 2
    %s38 = scalar_lea.vmem %s1, %s37
    %39 = vst [vmem:[%s38] sm:%s36] %v35
    %s40 = scalar_lea.vmem [#allocation0], 24
    %v41 = vld [vmem:[%s40] sm:%s24]
    %s42 = sshllo.u32 0, 1
    %s43 = smul.addr 1, 3
    %s44 = scalar_lea.vmem %s1, %s43
    %45 = vst [vmem:[%s44] sm:%s42] %v41

// kernel: cnn_encoder_forward.7
$region0: #{cnn_encoder_forward.7}
  #allocation0 [shape = 'u32[]', space=smem, size = 0x4, offset = 0x4, fixed_abs, tag = 'smem constant byte address 0x4 - core index']
  #allocation1 [shape = 'u32[144,128]{1,0:T(1,128)}', space=vmem, size = 0x12000, scoped, tag = 'internal scratch']
  %s0 = inlined_call_operand.vmem [shape: f32[32,512], index: 0, kind: input, shape index: {}]
  %s1 = inlined_call_operand.vmem [shape: f32[1,512], index: 1, kind: input, shape index: {}]
  %s2 = inlined_call_operand.vmem [shape: f32[1,512], index: 2, kind: input, shape index: {}]
  %s3 = inlined_call_operand.vmem [shape: f32[32,512], index: 3, kind: output, shape index: {}]
  %s4 = sld [smem:[#allocation0]]
  $region22: #{cnn_encoder_forward.7} parent=0
    _
  %s6 = ssub.s32 1, %s4
  %s7 = scalar_select 0, %s6, %s4
  // Predicated region
  $region2: #{cnn_encoder_forward.7} parent=0 // pred_check
    _
  $region3: #{cnn_encoder_forward.7} parent=0 // pred_check_branch
    %9 = sbr.rel (0) target = $region5
  $region4: #{cnn_encoder_forward.7} parent=0 // pred_region
    _
  $region5: #{cnn_encoder_forward.7} parent=0 // pred_fallthru
    _
  // Predicated region
  $region6: #{cnn_encoder_forward.7} parent=0 // pred_check
    _
  $region7: #{cnn_encoder_forward.7} parent=0 // pred_check_branch
    %11 = sbr.rel (0) target = $region9
  $region8: #{cnn_encoder_forward.7} parent=0 // pred_region
    _
  $region9: #{cnn_encoder_forward.7} parent=0 // pred_fallthru
    _
  // Predicated region
  $region10: #{cnn_encoder_forward.7} parent=0 // pred_check
    _
  $region11: #{cnn_encoder_forward.7} parent=0 // pred_check_branch
    %13 = sbr.rel (0) target = $region13
  $region12: #{cnn_encoder_forward.7} parent=0 // pred_region
    _
  $region13: #{cnn_encoder_forward.7} parent=0 // pred_fallthru
    _
  %v14 = vld [vmem:[%s0] sm:$0xff]
  %v15 = vld [vmem:[%s0 + $0x8] sm:$0xff]
  %v16 = vld [vmem:[%s0 + $0x10] sm:$0xff]
  %v17 = vld [vmem:[%s0 + $0x18] sm:$0xff]
  %v18 = vld [vmem:[%s0 + $0x20] sm:$0xff]
  %v19 = vld [vmem:[%s0 + $0x28] sm:$0xff]
  %v20 = vld [vmem:[%s0 + $0x30] sm:$0xff]
  %v21 = vld [vmem:[%s0 + $0x38] sm:$0xff]
  %v22 = vld [vmem:[%s0 + $0x40] sm:$0xff]
  %v23 = vld [vmem:[%s0 + $0x48] sm:$0xff]
  %v24 = vld [vmem:[%s0 + $0x50] sm:$0xff]
  %v25 = vld [vmem:[%s0 + $0x58] sm:$0xff]
  %v26 = vld [vmem:[%s0 + $0x60] sm:$0xff]
  %v27 = vld [vmem:[%s0 + $0x68] sm:$0xff]
  %v28 = vld [vmem:[%s0 + $0x70] sm:$0xff]
  %v29 = vld [vmem:[%s0 + $0x78] sm:$0xff]
  %v30 = vld [vmem:[%s1] sm:$0xf]
  %v32 = vlaneseq
  %v33 = vshrl.u32 %v32, 7
  %v34 = vsub.s32 0, %v33
  %v35 = vrot.slane %v30, %v34
  %v36 = vlaneseq
  %v37 = vshrl.u32 %v36, 7
  %v38 = vsub.s32 1, %v37
  %v39 = vrot.slane %v30, %v38
  %v40 = vlaneseq
  %v41 = vshrl.u32 %v40, 7
  %v42 = vsub.s32 2, %v41
  %v43 = vrot.slane %v30, %v42
  %v44 = vlaneseq
  %v45 = vshrl.u32 %v44, 7
  %v46 = vsub.s32 3, %v45
  %v47 = vrot.slane %v30, %v46
  %v52 = vmul.f32 %v14, %v35
  %v53 = vmul.f32 %v15, %v39
  %v54 = vmul.f32 %v16, %v43
  %v55 = vmul.f32 %v17, %v47
  %v56 = vmul.f32 %v18, %v35
  %v57 = vmul.f32 %v19, %v39
  %v58 = vmul.f32 %v20, %v43
  %v59 = vmul.f32 %v21, %v47
  %v60 = vmul.f32 %v22, %v35
  %v61 = vmul.f32 %v23, %v39
  %v62 = vmul.f32 %v24, %v43
  %v63 = vmul.f32 %v25, %v47
  %v64 = vmul.f32 %v26, %v35
  %v65 = vmul.f32 %v27, %v39
  %v66 = vmul.f32 %v28, %v43
  %v67 = vmul.f32 %v29, %v47
  %v68 = vld [vmem:[%s2] sm:$0xf]
  %v70 = vlaneseq
  %v71 = vshrl.u32 %v70, 7
  %v72 = vsub.s32 0, %v71
  %v73 = vrot.slane %v68, %v72
  %v74 = vlaneseq
  %v75 = vshrl.u32 %v74, 7
  %v76 = vsub.s32 1, %v75
  %v77 = vrot.slane %v68, %v76
  %v78 = vlaneseq
  %v79 = vshrl.u32 %v78, 7
  %v80 = vsub.s32 2, %v79
  %v81 = vrot.slane %v68, %v80
  %v82 = vlaneseq
  %v83 = vshrl.u32 %v82, 7
  %v84 = vsub.s32 3, %v83
  %v85 = vrot.slane %v68, %v84
  %v90 = vadd.f32 %v52, %v73
  %v91 = vadd.f32 %v53, %v77
  %v92 = vadd.f32 %v54, %v81
  %v93 = vadd.f32 %v55, %v85
  %v94 = vadd.f32 %v56, %v73
  %v95 = vadd.f32 %v57, %v77
  %v96 = vadd.f32 %v58, %v81
  %v97 = vadd.f32 %v59, %v85
  %v98 = vadd.f32 %v60, %v73
  %v99 = vadd.f32 %v61, %v77
  %v100 = vadd.f32 %v62, %v81
  %v101 = vadd.f32 %v63, %v85
  %v102 = vadd.f32 %v64, %v73
  %v103 = vadd.f32 %v65, %v77
  %v104 = vadd.f32 %v66, %v81
  %v105 = vadd.f32 %v67, %v85
  %106 = vst [vmem:[%s3] sm:$0xff] %v90
  %107 = vst [vmem:[%s3 + $0x8] sm:$0xff] %v91
  %108 = vst [vmem:[%s3 + $0x10] sm:$0xff] %v92
  %109 = vst [vmem:[%s3 + $0x18] sm:$0xff] %v93
  %110 = vst [vmem:[%s3 + $0x20] sm:$0xff] %v94
  %111 = vst [vmem:[%s3 + $0x28] sm:$0xff] %v95
  %112 = vst [vmem:[%s3 + $0x30] sm:$0xff] %v96
  %113 = vst [vmem:[%s3 + $0x38] sm:$0xff] %v97
  %114 = vst [vmem:[%s3 + $0x40] sm:$0xff] %v98
  %115 = vst [vmem:[%s3 + $0x48] sm:$0xff] %v99
  %116 = vst [vmem:[%s3 + $0x50] sm:$0xff] %v100
  %117 = vst [vmem:[%s3 + $0x58] sm:$0xff] %v101
  %118 = vst [vmem:[%s3 + $0x60] sm:$0xff] %v102
  %119 = vst [vmem:[%s3 + $0x68] sm:$0xff] %v103
  %120 = vst [vmem:[%s3 + $0x70] sm:$0xff] %v104
  %121 = vst [vmem:[%s3 + $0x78] sm:$0xff] %v105
  // Predicated region
  $region14: #{cnn_encoder_forward.7} parent=0 // pred_check
    _
  $region15: #{cnn_encoder_forward.7} parent=0 // pred_check_branch
    %123 = sbr.rel (0) target = $region17
  $region16: #{cnn_encoder_forward.7} parent=0 // pred_region
    _
  $region17: #{cnn_encoder_forward.7} parent=0 // pred_fallthru
    _
  // Predicated region
  $region18: #{cnn_encoder_forward.7} parent=0 // pred_check
    _
  $region19: #{cnn_encoder_forward.7} parent=0 // pred_check_branch
    %125 = sbr.rel (0) target = $region21
  $region20: #{cnn_encoder_forward.7} parent=0 // pred_region
    _
  $region21: #{cnn_encoder_forward.7} parent=0 // pred_fallthru
    _

// kernel: tile.43
$region0: #{tile.43}
  #allocation0 [shape = 's32[1]{0}', space=sflag, size = 0x4, scoped, tag = 'scoped memory for tile.43']
  %s0 = inlined_call_operand.vmem [shape: f32[64], index: 0, kind: input, shape index: {}]
  %s1 = inlined_call_operand.vmem [shape: f32[8,64], index: 1, kind: output, shape index: {}]
  // Predicated region
  $region2: #{tile.43} parent=0 // pred_check
    _
  $region3: #{tile.43} parent=0 // pred_check_branch
    %3 = sbr.rel (0) target = $region5
  $region4: #{tile.43} parent=0 // pred_region
    _
  $region5: #{tile.43} parent=0 // pred_fallthru
    _
  %v4 = vld [vmem:[%s0] ss:$0 sm:$0xff]
  %5 = vst [vmem:[%s1] sm:$0xff] %v4

// kernel: tile.44
$region0: #{tile.44}
  %s0 = inlined_call_operand.vmem [shape: f32[8,64], index: 0, kind: input, shape index: {}]
  %s1 = inlined_call_operand.vmem [shape: f32[1,512], index: 1, kind: output, shape index: {}]
  $region1: #{tile.44} parent=0
    #allocation0 [shape = 'u8[16384]{0}', space=vmem, size = 0x4000, scoped, tag = 'scoped mem for output reshape']
    %v2 = vld [vmem:[%s0] ss:$2 sm:$0xf]
    %vm3 = vcmask 523264
    %4 = vst.msk [vmem:[#allocation0] ss:$8 sm:$0xf] %vm3, %v2
    %s5 = scalar_lea.vmem %s0, 1
    %v6 = vld [vmem:[%s5] ss:$2 sm:$0xf]
    %7 = vrot.lane.b32.xlu0 %v6, 64
    %v8 = vpop.permute.xlu0 %7
    %vm9 = vcmask 1048064
    %10 = vst.msk [vmem:[#allocation0] ss:$8 sm:$0xf] %vm9, %v8
    %s12 = sshllo.u32 0, 1
    %v14 = vld [vmem:[#allocation0] sm:%s12]
    %s15 = sshllo.u32 0, 1
    %16 = vst [vmem:[%s1] sm:%s15] %v14
    %s17 = scalar_lea.vmem [#allocation0], 8
    %v18 = vld [vmem:[%s17] sm:%s12]
    %s19 = sshllo.u32 0, 1
    %s20 = scalar_lea.vmem %s1, 1
    %21 = vst [vmem:[%s20] sm:%s19] %v18
    %s22 = scalar_lea.vmem [#allocation0], 16
    %v23 = vld [vmem:[%s22] sm:%s12]
    %s24 = sshllo.u32 0, 1
    %s25 = smul.addr 1, 2
    %s26 = scalar_lea.vmem %s1, %s25
    %27 = vst [vmem:[%s26] sm:%s24] %v23
    %s28 = scalar_lea.vmem [#allocation0], 24
    %v29 = vld [vmem:[%s28] sm:%s12]
    %s30 = sshllo.u32 0, 1
    %s31 = smul.addr 1, 3
    %s32 = scalar_lea.vmem %s1, %s31
    %33 = vst [vmem:[%s32] sm:%s30] %v29

// kernel: cnn_encoder_forward.6
$region0: #{cnn_encoder_forward.6}
  #allocation0 [shape = 'u32[]', space=smem, size = 0x4, offset = 0x4, fixed_abs, tag = 'smem constant byte address 0x4 - core index']
  #allocation1 [shape = 'u32[144,128]{1,0:T(1,128)}', space=vmem, size = 0x12000, scoped, tag = 'internal scratch']
  %s0 = inlined_call_operand.vmem [shape: f32[2,1,18,18,1], index: 0, kind: input, shape index: {}]
  %s1 = inlined_call_operand.vmem [shape: f32[9,32], index: 1, kind: input, shape index: {}]
  %s2 = inlined_call_operand.vmem [shape: f32[1,32], index: 2, kind: input, shape index: {}]
  %s3 = inlined_call_operand.vmem [shape: f32[2,256,32], index: 3, kind: output, shape index: {0}]
  %s4 = inlined_call_operand.vmem [shape: f32[2,1,32], index: 4, kind: output, shape index: {1}]
  %s5 = inlined_call_operand.vmem [shape: f32[2,1,32], index: 5, kind: output, shape index: {2}]
  %6 = xla_tuple %s3, %s4, %s5
  %s7 = sld [smem:[#allocation0]]
  $region61: #{cnn_encoder_forward.6} parent=0
    _
  %s9 = ssub.s32 1, %s7
  %s10 = scalar_select 0, %s9, %s7
  loop: start=0, step=1, limit=4
  $region2: #{cnn_encoder_forward.6} parent=0 // loop_pre_header
    _
  $region3: #{cnn_encoder_forward.6} parent=0 // loop_header
    %s12 = sphi 0, %s16
    %p13 = scmp.ge.s32.totalorder %s12, 4
    %s22 = sphi 0, %s24
    %s25 = sphi 0, %s22
    %s26 = sphi 0, %s25
    %s42 = sphi 0, %s26
    %s46 = sphi 0, %s46
    %s48 = sphi 0, %s46
    %s49 = sphi 0, %s48
    %s63 = sphi 0, %s49
    %s67 = sphi 0, %s67
    %s69 = sphi 0, %s67
    %s70 = sphi 0, %s69
    %s84 = sphi 0, %s70
    %s90 = sphi 0, %s92
    %s93 = sphi 0, %s90
    %s94 = sphi 0, %s93
    %s110 = sphi 0, %s94
    %s116 = sphi 0, %s118
    %s119 = sphi 0, %s116
    %s120 = sphi 0, %s119
    %s136 = sphi 0, %s120
    %s142 = sphi 0, %s144
    %s145 = sphi 0, %s142
    %s146 = sphi 0, %s145
    %s162 = sphi 0, %s146
  $region4: #{cnn_encoder_forward.6} parent=0 // loop_header_branch
    %15 = sbr.rel (%p13) target = $region8
  $region5: #{cnn_encoder_forward.6} parent=0 // loop_body
    %s17 = ssub.s32 %s12, 1
    %s18 = ssub.s32 %s12, 2
    %s19 = sadd.s32 %s12, 1
    %s20 = ssub.s32 %s12, %s19
    %p21 = scmp.eq.s32.totalorder %s20, 0
    %s23 = sadd.s32 %s22, 1
    %s24 = scalar_select %p21, %s22, %s23
    %p27 = pneg %p21
    %p28 = scmp.eq.s32.totalorder %s12, 1
    %p29 = por %p27, %p28
    %p30 = scmp.ne.s32.totalorder %s22, %s25
    %p31 = scmp.eq.s32.totalorder %s12, 0
    %p32 = por %p30, %p31
    %p33 = scmp.ne.s32.totalorder %s22, %s25
    %p34 = scmp.eq.s32.totalorder %s17, 1
    %p35 = por %p33, %p34
    %p36 = scmp.ne.s32.totalorder %s25, %s26
    %p37 = scmp.eq.s32.totalorder %s17, 0
    %p38 = por %p36, %p37
    %p39 = scmp.ne.s32.totalorder %s25, %s26
    %p40 = scmp.eq.s32.totalorder %s18, 1
    %p41 = por %p39, %p40
    %p43 = scmp.ne.s32.totalorder %s26, %s42
    %p44 = scmp.eq.s32.totalorder %s18, 0
    %p45 = por %p43, %p44
    %s47 = sadd.s32 %s46, 1
    %p50 = scmp.eq.s32.totalorder %s12, 1
    %p51 = scmp.ne.s32.totalorder %s46, %s48
    %p52 = scmp.eq.s32.totalorder %s12, 0
    %p53 = por %p51, %p52
    %p54 = scmp.ne.s32.totalorder %s46, %s48
    %p55 = scmp.eq.s32.totalorder %s17, 1
    %p56 = por %p54, %p55
    %p57 = scmp.ne.s32.totalorder %s48, %s49
    %p58 = scmp.eq.s32.totalorder %s17, 0
    %p59 = por %p57, %p58
    %p60 = scmp.ne.s32.totalorder %s48, %s49
    %p61 = scmp.eq.s32.totalorder %s18, 1
    %p62 = por %p60, %p61
    %p64 = scmp.ne.s32.totalorder %s49, %s63
    %p65 = scmp.eq.s32.totalorder %s18, 0
    %p66 = por %p64, %p65
    %s68 = sadd.s32 %s67, 1
    %p71 = scmp.eq.s32.totalorder %s12, 1
    %p72 = scmp.ne.s32.totalorder %s67, %s69
    %p73 = scmp.eq.s32.totalorder %s12, 0
    %p74 = por %p72, %p73
    %p75 = scmp.ne.s32.totalorder %s67, %s69
    %p76 = scmp.eq.s32.totalorder %s17, 1
    %p77 = por %p75, %p76
    %p78 = scmp.ne.s32.totalorder %s69, %s70
    %p79 = scmp.eq.s32.totalorder %s17, 0
    %p80 = por %p78, %p79
    %p81 = scmp.ne.s32.totalorder %s69, %s70
    %p82 = scmp.eq.s32.totalorder %s18, 1
    %p83 = por %p81, %p82
    %p85 = scmp.ne.s32.totalorder %s70, %s84
    %p86 = scmp.eq.s32.totalorder %s18, 0
    %p87 = por %p85, %p86
    %s88 = ssub.s32 %s12, %s19
    %p89 = scmp.eq.s32.totalorder %s88, 0
    %s91 = sadd.s32 %s90, 1
    %s92 = scalar_select %p89, %s90, %s91
    %p95 = pneg %p89
    %p96 = scmp.eq.s32.totalorder %s12, 1
    %p97 = por %p95, %p96
    %p98 = scmp.ne.s32.totalorder %s90, %s93
    %p99 = scmp.eq.s32.totalorder %s12, 0
    %p100 = por %p98, %p99
    %p101 = scmp.ne.s32.totalorder %s90, %s93
    %p102 = scmp.eq.s32.totalorder %s17, 1
    %p103 = por %p101, %p102
    %p104 = scmp.ne.s32.totalorder %s93, %s94
    %p105 = scmp.eq.s32.totalorder %s17, 0
    %p106 = por %p104, %p105
    %p107 = scmp.ne.s32.totalorder %s93, %s94
    %p108 = scmp.eq.s32.totalorder %s18, 1
    %p109 = por %p107, %p108
    %p111 = scmp.ne.s32.totalorder %s94, %s110
    %p112 = scmp.eq.s32.totalorder %s18, 0
    %p113 = por %p111, %p112
    %s114 = ssub.s32 %s12, %s19
    %p115 = scmp.eq.s32.totalorder %s114, 0
    %s117 = sadd.s32 %s116, 1
    %s118 = scalar_select %p115, %s116, %s117
    %p121 = pneg %p115
    %p122 = scmp.eq.s32.totalorder %s12, 1
    %p123 = por %p121, %p122
    %p124 = scmp.ne.s32.totalorder %s116, %s119
    %p125 = scmp.eq.s32.totalorder %s12, 0
    %p126 = por %p124, %p125
    %p127 = scmp.ne.s32.totalorder %s116, %s119
    %p128 = scmp.eq.s32.totalorder %s17, 1
    %p129 = por %p127, %p128
    %p130 = scmp.ne.s32.totalorder %s119, %s120
    %p131 = scmp.eq.s32.totalorder %s17, 0
    %p132 = por %p130, %p131
    %p133 = scmp.ne.s32.totalorder %s119, %s120
    %p134 = scmp.eq.s32.totalorder %s18, 1
    %p135 = por %p133, %p134
    %p137 = scmp.ne.s32.totalorder %s120, %s136
    %p138 = scmp.eq.s32.totalorder %s18, 0
    %p139 = por %p137, %p138
    %s140 = ssub.s32 %s12, %s19
    %p141 = scmp.eq.s32.totalorder %s140, 0
    %s143 = sadd.s32 %s142, 1
    %s144 = scalar_select %p141, %s142, %s143
    %p147 = pneg %p141
    %p148 = scmp.eq.s32.totalorder %s12, 1
    %p149 = por %p147, %p148
    %p150 = scmp.ne.s32.totalorder %s142, %s145
    %p151 = scmp.eq.s32.totalorder %s12, 0
    %p152 = por %p150, %p151
    %p153 = scmp.ne.s32.totalorder %s142, %s145
    %p154 = scmp.eq.s32.totalorder %s17, 1
    %p155 = por %p153, %p154
    %p156 = scmp.ne.s32.totalorder %s145, %s146
    %p157 = scmp.eq.s32.totalorder %s17, 0
    %p158 = por %p156, %p157
    %p159 = scmp.ne.s32.totalorder %s145, %s146
    %p160 = scmp.eq.s32.totalorder %s18, 1
    %p161 = por %p159, %p160
    %p163 = scmp.ne.s32.totalorder %s146, %s162
    %p164 = scmp.eq.s32.totalorder %s18, 0
    %p165 = por %p163, %p164
    %p166 = scmp.le.s32.totalorder 1, %s12
    %p167 = scmp.lt.s32.totalorder %s12, 3
    %p168 = pnand %p166, %p167
    %p169 = pneg %p168
    // Predicated region
    $region9: #{cnn_encoder_forward.6} parent=5 // pred_check
      _
    $region10: #{cnn_encoder_forward.6} parent=5 // pred_check_branch
      %171 = sbr.rel (%p168) target = $region12
    $region11: #{cnn_encoder_forward.6} parent=5 // pred_region
      %s172 = ssub.s32 %s12, 1
      // Predicated region
      $region13: #{cnn_encoder_forward.6} parent=11 // pred_check
        %p173 = pneg %p59
      $region14: #{cnn_encoder_forward.6} parent=11 // pred_check_branch
        %175 = sbr.rel (%p173) target = $region16
      $region15: #{cnn_encoder_forward.6} parent=11 // pred_region
        _
      $region16: #{cnn_encoder_forward.6} parent=11 // pred_fallthru
        _
      // Predicated region
      $region17: #{cnn_encoder_forward.6} parent=11 // pred_check
        %p176 = pneg %p80
      $region18: #{cnn_encoder_forward.6} parent=11 // pred_check_branch
        %178 = sbr.rel (%p176) target = $region20
      $region19: #{cnn_encoder_forward.6} parent=11 // pred_region
        _
      $region20: #{cnn_encoder_forward.6} parent=11 // pred_fallthru
        _
    $region12: #{cnn_encoder_forward.6} parent=5 // pred_fallthru
      _
    %p179 = scmp.lt.s32.totalorder %s12, 2
    // Predicated region
    $region21: #{cnn_encoder_forward.6} parent=5 // pred_check
      %p180 = pneg %p179
    $region22: #{cnn_encoder_forward.6} parent=5 // pred_check_branch
      %182 = sbr.rel (%p180) target = $region24
    $region23: #{cnn_encoder_forward.6} parent=5 // pred_region
      // Predicated region
      $region25: #{cnn_encoder_forward.6} parent=23 // pred_check
        %p183 = pneg %p32
      $region26: #{cnn_encoder_forward.6} parent=23 // pred_check_branch
        %185 = sbr.rel (%p183) target = $region28
      $region27: #{cnn_encoder_forward.6} parent=23 // pred_region
        %p186 = scmp.lt.s32.totalorder %s12, 1
        %s187 = scalar_select %p186, %s12, 1
        %s188 = smul.addr %s187, 54
        %s189 = smul.addr %s188, 8
        %s190 = scalar_lea.vmem %s0, %s189
      $region28: #{cnn_encoder_forward.6} parent=23 // pred_fallthru
        _
    $region24: #{cnn_encoder_forward.6} parent=5 // pred_fallthru
      _
    %p191 = scmp.le.s32.totalorder 1, %s12
    %p192 = scmp.lt.s32.totalorder %s12, 3
    %p193 = pnand %p191, %p192
    %p194 = pneg %p193
    // Predicated region
    $region29: #{cnn_encoder_forward.6} parent=5 // pred_check
      _
    $region30: #{cnn_encoder_forward.6} parent=5 // pred_check_branch
      %196 = sbr.rel (%p193) target = $region32
    $region31: #{cnn_encoder_forward.6} parent=5 // pred_region
      %s197 = ssub.s32 %s12, 1
      %p198 = scmp.lt.s32.totalorder %s17, 1
      %s199 = scalar_select %p198, %s17, 1
      %s200 = smul.addr %s199, 54
      %s201 = smul.addr %s200, 8
      %s202 = scalar_lea.vmem %s0, %s201
      %p203 = pneg %p38
      %p204 = pneg %p35
      %p205 = pneg %p59
      %p206 = pneg %p56
      %p207 = pneg %p80
      %p208 = pneg %p77
      %p209 = pneg %p106
      %p210 = pneg %p103
      %p211 = scmp.lt.s32.totalorder %s17, 1
      %s212 = scalar_select %p211, %s17, 1
      %s213 = smul.addr %s212, 32
      %s214 = smul.addr %s213, 8
      %s215 = scalar_lea.vmem %s3, %s214
      %p216 = pneg %p132
      %p217 = pneg %p129
      %p218 = scmp.lt.s32.totalorder %s17, 1
      %s219 = scalar_select %p218, %s17, 1
      %s220 = scalar_lea.vmem %s4, %s219
      %p221 = pneg %p158
      %p222 = pneg %p155
      %p223 = scmp.lt.s32.totalorder %s17, 1
      %s224 = scalar_select %p223, %s17, 1
      %s225 = scalar_lea.vmem %s5, %s224
      %p226 = scmp.lt.s32.totalorder %s17, 1
      %s227 = scalar_select %p226, %s17, 1
      %s228 = smul.addr %s227, 54
      %s229 = smul.addr %s228, 8
      %s230 = scalar_lea.vmem %s0, %s229
      %p231 = scmp.lt.s32.totalorder %s17, 1
      %s232 = scalar_select %p231, %s17, 1
      %s233 = smul.addr %s232, 32
      %s234 = smul.addr %s233, 8
      %s235 = scalar_lea.vmem %s3, %s234
      %p236 = scmp.lt.s32.totalorder %s17, 1
      %s237 = scalar_select %p236, %s17, 1
      %s238 = scalar_lea.vmem %s4, %s237
      %p239 = scmp.lt.s32.totalorder %s17, 1
      %s240 = scalar_select %p239, %s17, 1
      %s241 = scalar_lea.vmem %s5, %s240
      %v242 = vld [vmem:[%s230] sm:$0xff]
      %v243 = vld [vmem:[%s230 + $0x8] sm:$0xff]
      %v244 = vld [vmem:[%s230 + $0x18] sm:$0xff]
      %v245 = vld [vmem:[%s230 + $0x20] sm:$0xff]
      %v246 = vld [vmem:[%s230 + $0x30] sm:$0xff]
      %v247 = vld [vmem:[%s230 + $0x38] sm:$0xff]
      %v248 = vld [vmem:[%s230 + $0x48] sm:$0xff]
      %v249 = vld [vmem:[%s230 + $0x50] sm:$0xff]
      %v250 = vld [vmem:[%s230 + $0x60] sm:$0xff]
      %v251 = vld [vmem:[%s230 + $0x68] sm:$0xff]
      %v252 = vld [vmem:[%s230 + $0x78] sm:$0xff]
      %v253 = vld [vmem:[%s230 + $0x80] sm:$0xff]
      %v254 = vld [vmem:[%s230 + $0x90] sm:$0xff]
      %v255 = vld [vmem:[%s230 + $0x98] sm:$0xff]
      %v256 = vld [vmem:[%s230 + $0xa8] sm:$0xff]
      %v257 = vld [vmem:[%s230 + $0xb0] sm:$0xff]
      %v258 = vld [vmem:[%s230 + $0xc0] sm:$0xff]
      %v259 = vld [vmem:[%s230 + $0xc8] sm:$0xff]
      %v260 = vld [vmem:[%s230 + $0xd8] sm:$0xff]
      %v261 = vld [vmem:[%s230 + $0xe0] sm:$0xff]
      %v262 = vld [vmem:[%s230 + $0xf0] sm:$0xff]
      %v263 = vld [vmem:[%s230 + $0xf8] sm:$0xff]
      %v264 = vld [vmem:[%s230 + $0x108] sm:$0xff]
      %v265 = vld [vmem:[%s230 + $0x110] sm:$0xff]
      %v266 = vld [vmem:[%s230 + $0x120] sm:$0xff]
      %v267 = vld [vmem:[%s230 + $0x128] sm:$0xff]
      %v268 = vld [vmem:[%s230 + $0x138] sm:$0xff]
      %v269 = vld [vmem:[%s230 + $0x140] sm:$0xff]
      %v270 = vld [vmem:[%s230 + $0x150] sm:$0xff]
      %v271 = vld [vmem:[%s230 + $0x158] sm:$0xff]
      %v272 = vld [vmem:[%s230 + $0x168] sm:$0xff]
      %v273 = vld [vmem:[%s230 + $0x170] sm:$0xff]
      %v274 = vld [vmem:[%s1] sm:$0x1]
      %276 = vset.pattern.permute.xlu0 0
      %277 = vperm.xlu0 %276, %v242
      %v278 = vpop.permute.xlu0 %277
      %281 = vset.pattern.permute.xlu0 0
      %282 = vperm.xlu0 %281, %v243
      %v283 = vpop.permute.xlu0 %282
      %286 = vset.pattern.permute.xlu0 0
      %287 = vperm.xlu0 %286, %v244
      %v288 = vpop.permute.xlu0 %287
      %291 = vset.pattern.permute.xlu0 0
      %292 = vperm.xlu0 %291, %v245
      %v293 = vpop.permute.xlu0 %292
      %296 = vset.pattern.permute.xlu0 0
      %297 = vperm.xlu0 %296, %v246
      %v298 = vpop.permute.xlu0 %297
      %301 = vset.pattern.permute.xlu0 0
      %302 = vperm.xlu0 %301, %v247
      %v303 = vpop.permute.xlu0 %302
      %306 = vset.pattern.permute.xlu0 0
      %307 = vperm.xlu0 %306, %v248
      %v308 = vpop.permute.xlu0 %307
      %311 = vset.pattern.permute.xlu0 0
      %312 = vperm.xlu0 %311, %v249
      %v313 = vpop.permute.xlu0 %312
      %316 = vset.pattern.permute.xlu0 0
      %317 = vperm.xlu0 %316, %v250
      %v318 = vpop.permute.xlu0 %317
      %321 = vset.pattern.permute.xlu0 0
      %322 = vperm.xlu0 %321, %v251
      %v323 = vpop.permute.xlu0 %322
      %326 = vset.pattern.permute.xlu0 0
      %327 = vperm.xlu0 %326, %v252
      %v328 = vpop.permute.xlu0 %327
      %331 = vset.pattern.permute.xlu0 0
      %332 = vperm.xlu0 %331, %v253
      %v333 = vpop.permute.xlu0 %332
      %336 = vset.pattern.permute.xlu0 0
      %337 = vperm.xlu0 %336, %v254
      %v338 = vpop.permute.xlu0 %337
      %341 = vset.pattern.permute.xlu0 0
      %342 = vperm.xlu0 %341, %v255
      %v343 = vpop.permute.xlu0 %342
      %346 = vset.pattern.permute.xlu0 0
      %347 = vperm.xlu0 %346, %v256
      %v348 = vpop.permute.xlu0 %347
      %351 = vset.pattern.permute.xlu0 0
      %352 = vperm.xlu0 %351, %v257
      %v353 = vpop.permute.xlu0 %352
      %356 = vset.pattern.permute.xlu0 0
      %357 = vperm.xlu0 %356, %v258
      %v358 = vpop.permute.xlu0 %357
      %361 = vset.pattern.permute.xlu0 0
      %362 = vperm.xlu0 %361, %v259
      %v363 = vpop.permute.xlu0 %362
      %366 = vset.pattern.permute.xlu0 0
      %367 = vperm.xlu0 %366, %v260
      %v368 = vpop.permute.xlu0 %367
      %371 = vset.pattern.permute.xlu0 0
      %372 = vperm.xlu0 %371, %v261
      %v373 = vpop.permute.xlu0 %372
      %376 = vset.pattern.permute.xlu0 0
      %377 = vperm.xlu0 %376, %v262
      %v378 = vpop.permute.xlu0 %377
      %381 = vset.pattern.permute.xlu0 0
      %382 = vperm.xlu0 %381, %v263
      %v383 = vpop.permute.xlu0 %382
      %386 = vset.pattern.permute.xlu0 0
      %387 = vperm.xlu0 %386, %v264
      %v388 = vpop.permute.xlu0 %387
      %391 = vset.pattern.permute.xlu0 0
      %392 = vperm.xlu0 %391, %v265
      %v393 = vpop.permute.xlu0 %392
      %396 = vset.pattern.permute.xlu0 0
      %397 = vperm.xlu0 %396, %v266
      %v398 = vpop.permute.xlu0 %397
      %401 = vset.pattern.permute.xlu0 0
      %402 = vperm.xlu0 %401, %v267
      %v403 = vpop.permute.xlu0 %402
      %406 = vset.pattern.permute.xlu0 0
      %407 = vperm.xlu0 %406, %v268
      %v408 = vpop.permute.xlu0 %407
      %411 = vset.pattern.permute.xlu0 0
      %412 = vperm.xlu0 %411, %v269
      %v413 = vpop.permute.xlu0 %412
      %416 = vset.pattern.permute.xlu0 0
      %417 = vperm.xlu0 %416, %v270
      %v418 = vpop.permute.xlu0 %417
      %421 = vset.pattern.permute.xlu0 0
      %422 = vperm.xlu0 %421, %v271
      %v423 = vpop.permute.xlu0 %422
      %426 = vset.pattern.permute.xlu0 0
      %427 = vperm.xlu0 %426, %v272
      %v428 = vpop.permute.xlu0 %427
      %431 = vset.pattern.permute.xlu0 0
      %432 = vperm.xlu0 %431, %v273
      %v433 = vpop.permute.xlu0 %432
      %v435 = vlaneseq
      %v436 = vshrl.u32 %v435, 7
      %v437 = vsub.s32 0, %v436
      %v438 = vrot.slane %v274, %v437
      %v439 = vmul.f32 %v278, %v438
      %v440 = vmul.f32 %v283, %v438
      %v441 = vmul.f32 %v288, %v438
      %v442 = vmul.f32 %v293, %v438
      %v443 = vmul.f32 %v298, %v438
      %v444 = vmul.f32 %v303, %v438
      %v445 = vmul.f32 %v308, %v438
      %v446 = vmul.f32 %v313, %v438
      %v447 = vmul.f32 %v318, %v438
      %v448 = vmul.f32 %v323, %v438
      %v449 = vmul.f32 %v328, %v438
      %v450 = vmul.f32 %v333, %v438
      %v451 = vmul.f32 %v338, %v438
      %v452 = vmul.f32 %v343, %v438
      %v453 = vmul.f32 %v348, %v438
      %v454 = vmul.f32 %v353, %v438
      %v455 = vmul.f32 %v358, %v438
      %v456 = vmul.f32 %v363, %v438
      %v457 = vmul.f32 %v368, %v438
      %v458 = vmul.f32 %v373, %v438
      %v459 = vmul.f32 %v378, %v438
      %v460 = vmul.f32 %v383, %v438
      %v461 = vmul.f32 %v388, %v438
      %v462 = vmul.f32 %v393, %v438
      %v463 = vmul.f32 %v398, %v438
      %v464 = vmul.f32 %v403, %v438
      %v465 = vmul.f32 %v408, %v438
      %v466 = vmul.f32 %v413, %v438
      %v467 = vmul.f32 %v418, %v438
      %v468 = vmul.f32 %v423, %v438
      %v469 = vmul.f32 %v428, %v438
      %v470 = vmul.f32 %v433, %v438
      %v471 = vadd.f32 %v439, 0.0
      %v472 = vadd.f32 %v440, 0.0
      %v473 = vadd.f32 %v441, 0.0
      %v474 = vadd.f32 %v442, 0.0
      %v475 = vadd.f32 %v443, 0.0
      %v476 = vadd.f32 %v444, 0.0
      %v477 = vadd.f32 %v445, 0.0
      %v478 = vadd.f32 %v446, 0.0
      %v479 = vadd.f32 %v447, 0.0
      %v480 = vadd.f32 %v448, 0.0
      %v481 = vadd.f32 %v449, 0.0
      %v482 = vadd.f32 %v450, 0.0
      %v483 = vadd.f32 %v451, 0.0
      %v484 = vadd.f32 %v452, 0.0
      %v485 = vadd.f32 %v453, 0.0
      %v486 = vadd.f32 %v454, 0.0
      %v487 = vadd.f32 %v455, 0.0
      %v488 = vadd.f32 %v456, 0.0
      %v489 = vadd.f32 %v457, 0.0
      %v490 = vadd.f32 %v458, 0.0
      %v491 = vadd.f32 %v459, 0.0
      %v492 = vadd.f32 %v460, 0.0
      %v493 = vadd.f32 %v461, 0.0
      %v494 = vadd.f32 %v462, 0.0
      %v495 = vadd.f32 %v463, 0.0
      %v496 = vadd.f32 %v464, 0.0
      %v497 = vadd.f32 %v465, 0.0
      %v498 = vadd.f32 %v466, 0.0
      %v499 = vadd.f32 %v467, 0.0
      %v500 = vadd.f32 %v468, 0.0
      %v501 = vadd.f32 %v469, 0.0
      %v502 = vadd.f32 %v470, 0.0
      %v503 = vld [vmem:[%s230 + $0x1] sm:$0xff]
      %v504 = vld [vmem:[%s230 + $0x9] sm:$0xff]
      %v505 = vld [vmem:[%s230 + $0x19] sm:$0xff]
      %v506 = vld [vmem:[%s230 + $0x21] sm:$0xff]
      %v507 = vld [vmem:[%s230 + $0x31] sm:$0xff]
      %v508 = vld [vmem:[%s230 + $0x39] sm:$0xff]
      %v509 = vld [vmem:[%s230 + $0x49] sm:$0xff]
      %v510 = vld [vmem:[%s230 + $0x51] sm:$0xff]
      %v511 = vld [vmem:[%s230 + $0x61] sm:$0xff]
      %v512 = vld [vmem:[%s230 + $0x69] sm:$0xff]
      %v513 = vld [vmem:[%s230 + $0x79] sm:$0xff]
      %v514 = vld [vmem:[%s230 + $0x81] sm:$0xff]
      %v515 = vld [vmem:[%s230 + $0x91] sm:$0xff]
      %v516 = vld [vmem:[%s230 + $0x99] sm:$0xff]
      %v517 = vld [vmem:[%s230 + $0xa9] sm:$0xff]
      %v518 = vld [vmem:[%s230 + $0xb1] sm:$0xff]
      %v519 = vld [vmem:[%s230 + $0xc1] sm:$0xff]
      %v520 = vld [vmem:[%s230 + $0xc9] sm:$0xff]
      %v521 = vld [vmem:[%s230 + $0xd9] sm:$0xff]
      %v522 = vld [vmem:[%s230 + $0xe1] sm:$0xff]
      %v523 = vld [vmem:[%s230 + $0xf1] sm:$0xff]
      %v524 = vld [vmem:[%s230 + $0xf9] sm:$0xff]
      %v525 = vld [vmem:[%s230 + $0x109] sm:$0xff]
      %v526 = vld [vmem:[%s230 + $0x111] sm:$0xff]
      %v527 = vld [vmem:[%s230 + $0x121] sm:$0xff]
      %v528 = vld [vmem:[%s230 + $0x129] sm:$0xff]
      %v529 = vld [vmem:[%s230 + $0x139] sm:$0xff]
      %v530 = vld [vmem:[%s230 + $0x141] sm:$0xff]
      %v531 = vld [vmem:[%s230 + $0x151] sm:$0xff]
      %v532 = vld [vmem:[%s230 + $0x159] sm:$0xff]
      %v533 = vld [vmem:[%s230 + $0x169] sm:$0xff]
      %v534 = vld [vmem:[%s230 + $0x171] sm:$0xff]
      %v535 = vld [vmem:[%s1 + $0x1] sm:$0x1]
      %537 = vset.pattern.permute.xlu0 0
      %538 = vperm.xlu0 %537, %v503
      %v539 = vpop.permute.xlu0 %538
      %542 = vset.pattern.permute.xlu0 0
      %543 = vperm.xlu0 %542, %v504
      %v544 = vpop.permute.xlu0 %543
      %547 = vset.pattern.permute.xlu0 0
      %548 = vperm.xlu0 %547, %v505
      %v549 = vpop.permute.xlu0 %548
      %552 = vset.pattern.permute.xlu0 0
      %553 = vperm.xlu0 %552, %v506
      %v554 = vpop.permute.xlu0 %553
      %557 = vset.pattern.permute.xlu0 0
      %558 = vperm.xlu0 %557, %v507
      %v559 = vpop.permute.xlu0 %558
      %562 = vset.pattern.permute.xlu0 0
      %563 = vperm.xlu0 %562, %v508
      %v564 = vpop.permute.xlu0 %563
      %567 = vset.pattern.permute.xlu0 0
      %568 = vperm.xlu0 %567, %v509
      %v569 = vpop.permute.xlu0 %568
      %572 = vset.pattern.permute.xlu0 0
      %573 = vperm.xlu0 %572, %v510
      %v574 = vpop.permute.xlu0 %573
      %577 = vset.pattern.permute.xlu0 0
      %578 = vperm.xlu0 %577, %v511
      %v579 = vpop.permute.xlu0 %578
      %582 = vset.pattern.permute.xlu0 0
      %583 = vperm.xlu0 %582, %v512
      %v584 = vpop.permute.xlu0 %583
      %587 = vset.pattern.permute.xlu0 0
      %588 = vperm.xlu0 %587, %v513
      %v589 = vpop.permute.xlu0 %588
      %592 = vset.pattern.permute.xlu0 0
      %593 = vperm.xlu0 %592, %v514
      %v594 = vpop.permute.xlu0 %593
      %597 = vset.pattern.permute.xlu0 0
      %598 = vperm.xlu0 %597, %v515
      %v599 = vpop.permute.xlu0 %598
      %602 = vset.pattern.permute.xlu0 0
      %603 = vperm.xlu0 %602, %v516
      %v604 = vpop.permute.xlu0 %603
      %607 = vset.pattern.permute.xlu0 0
      %608 = vperm.xlu0 %607, %v517
      %v609 = vpop.permute.xlu0 %608
      %612 = vset.pattern.permute.xlu0 0
      %613 = vperm.xlu0 %612, %v518
      %v614 = vpop.permute.xlu0 %613
      %617 = vset.pattern.permute.xlu0 0
      %618 = vperm.xlu0 %617, %v519
      %v619 = vpop.permute.xlu0 %618
      %622 = vset.pattern.permute.xlu0 0
      %623 = vperm.xlu0 %622, %v520
      %v624 = vpop.permute.xlu0 %623
      %627 = vset.pattern.permute.xlu0 0
      %628 = vperm.xlu0 %627, %v521
      %v629 = vpop.permute.xlu0 %628
      %632 = vset.pattern.permute.xlu0 0
      %633 = vperm.xlu0 %632, %v522
      %v634 = vpop.permute.xlu0 %633
      %637 = vset.pattern.permute.xlu0 0
      %638 = vperm.xlu0 %637, %v523
      %v639 = vpop.permute.xlu0 %638
      %642 = vset.pattern.permute.xlu0 0
      %643 = vperm.xlu0 %642, %v524
      %v644 = vpop.permute.xlu0 %643
      %647 = vset.pattern.permute.xlu0 0
      %648 = vperm.xlu0 %647, %v525
      %v649 = vpop.permute.xlu0 %648
      %652 = vset.pattern.permute.xlu0 0
      %653 = vperm.xlu0 %652, %v526
      %v654 = vpop.permute.xlu0 %653
      %657 = vset.pattern.permute.xlu0 0
      %658 = vperm.xlu0 %657, %v527
      %v659 = vpop.permute.xlu0 %658
      %662 = vset.pattern.permute.xlu0 0
      %663 = vperm.xlu0 %662, %v528
      %v664 = vpop.permute.xlu0 %663
      %667 = vset.pattern.permute.xlu0 0
      %668 = vperm.xlu0 %667, %v529
      %v669 = vpop.permute.xlu0 %668
      %672 = vset.pattern.permute.xlu0 0
      %673 = vperm.xlu0 %672, %v530
      %v674 = vpop.permute.xlu0 %673
      %677 = vset.pattern.permute.xlu0 0
      %678 = vperm.xlu0 %677, %v531
      %v679 = vpop.permute.xlu0 %678
      %682 = vset.pattern.permute.xlu0 0
      %683 = vperm.xlu0 %682, %v532
      %v684 = vpop.permute.xlu0 %683
      %687 = vset.pattern.permute.xlu0 0
      %688 = vperm.xlu0 %687, %v533
      %v689 = vpop.permute.xlu0 %688
      %692 = vset.pattern.permute.xlu0 0
      %693 = vperm.xlu0 %692, %v534
      %v694 = vpop.permute.xlu0 %693
      %v696 = vlaneseq
      %v697 = vshrl.u32 %v696, 7
      %v698 = vsub.s32 0, %v697
      %v699 = vrot.slane %v535, %v698
      %v700 = vmul.f32 %v539, %v699
      %v701 = vmul.f32 %v544, %v699
      %v702 = vmul.f32 %v549, %v699
      %v703 = vmul.f32 %v554, %v699
      %v704 = vmul.f32 %v559, %v699
      %v705 = vmul.f32 %v564, %v699
      %v706 = vmul.f32 %v569, %v699
      %v707 = vmul.f32 %v574, %v699
      %v708 = vmul.f32 %v579, %v699
      %v709 = vmul.f32 %v584, %v699
      %v710 = vmul.f32 %v589, %v699
      %v711 = vmul.f32 %v594, %v699
      %v712 = vmul.f32 %v599, %v699
      %v713 = vmul.f32 %v604, %v699
      %v714 = vmul.f32 %v609, %v699
      %v715 = vmul.f32 %v614, %v699
      %v716 = vmul.f32 %v619, %v699
      %v717 = vmul.f32 %v624, %v699
      %v718 = vmul.f32 %v629, %v699
      %v719 = vmul.f32 %v634, %v699
      %v720 = vmul.f32 %v639, %v699
      %v721 = vmul.f32 %v644, %v699
      %v722 = vmul.f32 %v649, %v699
      %v723 = vmul.f32 %v654, %v699
      %v724 = vmul.f32 %v659, %v699
      %v725 = vmul.f32 %v664, %v699
      %v726 = vmul.f32 %v669, %v699
      %v727 = vmul.f32 %v674, %v699
      %v728 = vmul.f32 %v679, %v699
      %v729 = vmul.f32 %v684, %v699
      %v730 = vmul.f32 %v689, %v699
      %v731 = vmul.f32 %v694, %v699
      %v732 = vadd.f32 %v471, %v700
      %v733 = vadd.f32 %v472, %v701
      %v734 = vadd.f32 %v473, %v702
      %v735 = vadd.f32 %v474, %v703
      %v736 = vadd.f32 %v475, %v704
      %v737 = vadd.f32 %v476, %v705
      %v738 = vadd.f32 %v477, %v706
      %v739 = vadd.f32 %v478, %v707
      %v740 = vadd.f32 %v479, %v708
      %v741 = vadd.f32 %v480, %v709
      %v742 = vadd.f32 %v481, %v710
      %v743 = vadd.f32 %v482, %v711
      %v744 = vadd.f32 %v483, %v712
      %v745 = vadd.f32 %v484, %v713
      %v746 = vadd.f32 %v485, %v714
      %v747 = vadd.f32 %v486, %v715
      %v748 = vadd.f32 %v487, %v716
      %v749 = vadd.f32 %v488, %v717
      %v750 = vadd.f32 %v489, %v718
      %v751 = vadd.f32 %v490, %v719
      %v752 = vadd.f32 %v491, %v720
      %v753 = vadd.f32 %v492, %v721
      %v754 = vadd.f32 %v493, %v722
      %v755 = vadd.f32 %v494, %v723
      %v756 = vadd.f32 %v495, %v724
      %v757 = vadd.f32 %v496, %v725
      %v758 = vadd.f32 %v497, %v726
      %v759 = vadd.f32 %v498, %v727
      %v760 = vadd.f32 %v499, %v728
      %v761 = vadd.f32 %v500, %v729
      %v762 = vadd.f32 %v501, %v730
      %v763 = vadd.f32 %v502, %v731
      %v764 = vld [vmem:[%s230 + $0x2] sm:$0xff]
      %v765 = vld [vmem:[%s230 + $0xa] sm:$0xff]
      %v766 = vld [vmem:[%s230 + $0x1a] sm:$0xff]
      %v767 = vld [vmem:[%s230 + $0x22] sm:$0xff]
      %v768 = vld [vmem:[%s230 + $0x32] sm:$0xff]
      %v769 = vld [vmem:[%s230 + $0x3a] sm:$0xff]
      %v770 = vld [vmem:[%s230 + $0x4a] sm:$0xff]
      %v771 = vld [vmem:[%s230 + $0x52] sm:$0xff]
      %v772 = vld [vmem:[%s230 + $0x62] sm:$0xff]
      %v773 = vld [vmem:[%s230 + $0x6a] sm:$0xff]
      %v774 = vld [vmem:[%s230 + $0x7a] sm:$0xff]
      %v775 = vld [vmem:[%s230 + $0x82] sm:$0xff]
      %v776 = vld [vmem:[%s230 + $0x92] sm:$0xff]
      %v777 = vld [vmem:[%s230 + $0x9a] sm:$0xff]
      %v778 = vld [vmem:[%s230 + $0xaa] sm:$0xff]
      %v779 = vld [vmem:[%s230 + $0xb2] sm:$0xff]
      %v780 = vld [vmem:[%s230 + $0xc2] sm:$0xff]
      %v781 = vld [vmem:[%s230 + $0xca] sm:$0xff]
      %v782 = vld [vmem:[%s230 + $0xda] sm:$0xff]
      %v783 = vld [vmem:[%s230 + $0xe2] sm:$0xff]
      %v784 = vld [vmem:[%s230 + $0xf2] sm:$0xff]
      %v785 = vld [vmem:[%s230 + $0xfa] sm:$0xff]
      %v786 = vld [vmem:[%s230 + $0x10a] sm:$0xff]
      %v787 = vld [vmem:[%s230 + $0x112] sm:$0xff]
      %v788 = vld [vmem:[%s230 + $0x122] sm:$0xff]
      %v789 = vld [vmem:[%s230 + $0x12a] sm:$0xff]
      %v790 = vld [vmem:[%s230 + $0x13a] sm:$0xff]
      %v791 = vld [vmem:[%s230 + $0x142] sm:$0xff]
      %v792 = vld [vmem:[%s230 + $0x152] sm:$0xff]
      %v793 = vld [vmem:[%s230 + $0x15a] sm:$0xff]
      %v794 = vld [vmem:[%s230 + $0x16a] sm:$0xff]
      %v795 = vld [vmem:[%s230 + $0x172] sm:$0xff]
      %v796 = vld [vmem:[%s1 + $0x2] sm:$0x1]
      %798 = vset.pattern.permute.xlu0 0
      %799 = vperm.xlu0 %798, %v764
      %v800 = vpop.permute.xlu0 %799
      %803 = vset.pattern.permute.xlu0 0
      %804 = vperm.xlu0 %803, %v765
      %v805 = vpop.permute.xlu0 %804
      %808 = vset.pattern.permute.xlu0 0
      %809 = vperm.xlu0 %808, %v766
      %v810 = vpop.permute.xlu0 %809
      %813 = vset.pattern.permute.xlu0 0
      %814 = vperm.xlu0 %813, %v767
      %v815 = vpop.permute.xlu0 %814
      %818 = vset.pattern.permute.xlu0 0
      %819 = vperm.xlu0 %818, %v768
      %v820 = vpop.permute.xlu0 %819
      %823 = vset.pattern.permute.xlu0 0
      %824 = vperm.xlu0 %823, %v769
      %v825 = vpop.permute.xlu0 %824
      %828 = vset.pattern.permute.xlu0 0
      %829 = vperm.xlu0 %828, %v770
      %v830 = vpop.permute.xlu0 %829
      %833 = vset.pattern.permute.xlu0 0
      %834 = vperm.xlu0 %833, %v771
      %v835 = vpop.permute.xlu0 %834
      %838 = vset.pattern.permute.xlu0 0
      %839 = vperm.xlu0 %838, %v772
      %v840 = vpop.permute.xlu0 %839
      %843 = vset.pattern.permute.xlu0 0
      %844 = vperm.xlu0 %843, %v773
      %v845 = vpop.permute.xlu0 %844
      %848 = vset.pattern.permute.xlu0 0
      %849 = vperm.xlu0 %848, %v774
      %v850 = vpop.permute.xlu0 %849
      %853 = vset.pattern.permute.xlu0 0
      %854 = vperm.xlu0 %853, %v775
      %v855 = vpop.permute.xlu0 %854
      %858 = vset.pattern.permute.xlu0 0
      %859 = vperm.xlu0 %858, %v776
      %v860 = vpop.permute.xlu0 %859
      %863 = vset.pattern.permute.xlu0 0
      %864 = vperm.xlu0 %863, %v777
      %v865 = vpop.permute.xlu0 %864
      %868 = vset.pattern.permute.xlu0 0
      %869 = vperm.xlu0 %868, %v778
      %v870 = vpop.permute.xlu0 %869
      %873 = vset.pattern.permute.xlu0 0
      %874 = vperm.xlu0 %873, %v779
      %v875 = vpop.permute.xlu0 %874
      %878 = vset.pattern.permute.xlu0 0
      %879 = vperm.xlu0 %878, %v780
      %v880 = vpop.permute.xlu0 %879
      %883 = vset.pattern.permute.xlu0 0
      %884 = vperm.xlu0 %883, %v781
      %v885 = vpop.permute.xlu0 %884
      %888 = vset.pattern.permute.xlu0 0
      %889 = vperm.xlu0 %888, %v782
      %v890 = vpop.permute.xlu0 %889
      %893 = vset.pattern.permute.xlu0 0
      %894 = vperm.xlu0 %893, %v783
      %v895 = vpop.permute.xlu0 %894
      %898 = vset.pattern.permute.xlu0 0
      %899 = vperm.xlu0 %898, %v784
      %v900 = vpop.permute.xlu0 %899
      %903 = vset.pattern.permute.xlu0 0
      %904 = vperm.xlu0 %903, %v785
      %v905 = vpop.permute.xlu0 %904
      %908 = vset.pattern.permute.xlu0 0
      %909 = vperm.xlu0 %908, %v786
      %v910 = vpop.permute.xlu0 %909
      %913 = vset.pattern.permute.xlu0 0
      %914 = vperm.xlu0 %913, %v787
      %v915 = vpop.permute.xlu0 %914
      %918 = vset.pattern.permute.xlu0 0
      %919 = vperm.xlu0 %918, %v788
      %v920 = vpop.permute.xlu0 %919
      %923 = vset.pattern.permute.xlu0 0
      %924 = vperm.xlu0 %923, %v789
      %v925 = vpop.permute.xlu0 %924
      %928 = vset.pattern.permute.xlu0 0
      %929 = vperm.xlu0 %928, %v790
      %v930 = vpop.permute.xlu0 %929
      %933 = vset.pattern.permute.xlu0 0
      %934 = vperm.xlu0 %933, %v791
      %v935 = vpop.permute.xlu0 %934
      %938 = vset.pattern.permute.xlu0 0
      %939 = vperm.xlu0 %938, %v792
      %v940 = vpop.permute.xlu0 %939
      %943 = vset.pattern.permute.xlu0 0
      %944 = vperm.xlu0 %943, %v793
      %v945 = vpop.permute.xlu0 %944
      %948 = vset.pattern.permute.xlu0 0
      %949 = vperm.xlu0 %948, %v794
      %v950 = vpop.permute.xlu0 %949
      %953 = vset.pattern.permute.xlu0 0
      %954 = vperm.xlu0 %953, %v795
      %v955 = vpop.permute.xlu0 %954
      %v957 = vlaneseq
      %v958 = vshrl.u32 %v957, 7
      %v959 = vsub.s32 0, %v958
      %v960 = vrot.slane %v796, %v959
      %v961 = vmul.f32 %v800, %v960
      %v962 = vmul.f32 %v805, %v960
      %v963 = vmul.f32 %v810, %v960
      %v964 = vmul.f32 %v815, %v960
      %v965 = vmul.f32 %v820, %v960
      %v966 = vmul.f32 %v825, %v960
      %v967 = vmul.f32 %v830, %v960
      %v968 = vmul.f32 %v835, %v960
      %v969 = vmul.f32 %v840, %v960
      %v970 = vmul.f32 %v845, %v960
      %v971 = vmul.f32 %v850, %v960
      %v972 = vmul.f32 %v855, %v960
      %v973 = vmul.f32 %v860, %v960
      %v974 = vmul.f32 %v865, %v960
      %v975 = vmul.f32 %v870, %v960
      %v976 = vmul.f32 %v875, %v960
      %v977 = vmul.f32 %v880, %v960
      %v978 = vmul.f32 %v885, %v960
      %v979 = vmul.f32 %v890, %v960
      %v980 = vmul.f32 %v895, %v960
      %v981 = vmul.f32 %v900, %v960
      %v982 = vmul.f32 %v905, %v960
      %v983 = vmul.f32 %v910, %v960
      %v984 = vmul.f32 %v915, %v960
      %v985 = vmul.f32 %v920, %v960
      %v986 = vmul.f32 %v925, %v960
      %v987 = vmul.f32 %v930, %v960
      %v988 = vmul.f32 %v935, %v960
      %v989 = vmul.f32 %v940, %v960
      %v990 = vmul.f32 %v945, %v960
      %v991 = vmul.f32 %v950, %v960
      %v992 = vmul.f32 %v955, %v960
      %v993 = vadd.f32 %v732, %v961
      %v994 = vadd.f32 %v733, %v962
      %v995 = vadd.f32 %v734, %v963
      %v996 = vadd.f32 %v735, %v964
      %v997 = vadd.f32 %v736, %v965
      %v998 = vadd.f32 %v737, %v966
      %v999 = vadd.f32 %v738, %v967
      %v1000 = vadd.f32 %v739, %v968
      %v1001 = vadd.f32 %v740, %v969
      %v1002 = vadd.f32 %v741, %v970
      %v1003 = vadd.f32 %v742, %v971
      %v1004 = vadd.f32 %v743, %v972
      %v1005 = vadd.f32 %v744, %v973
      %v1006 = vadd.f32 %v745, %v974
      %v1007 = vadd.f32 %v746, %v975
      %v1008 = vadd.f32 %v747, %v976
      %v1009 = vadd.f32 %v748, %v977
      %v1010 = vadd.f32 %v749, %v978
      %v1011 = vadd.f32 %v750, %v979
      %v1012 = vadd.f32 %v751, %v980
      %v1013 = vadd.f32 %v752, %v981
      %v1014 = vadd.f32 %v753, %v982
      %v1015 = vadd.f32 %v754, %v983
      %v1016 = vadd.f32 %v755, %v984
      %v1017 = vadd.f32 %v756, %v985
      %v1018 = vadd.f32 %v757, %v986
      %v1019 = vadd.f32 %v758, %v987
      %v1020 = vadd.f32 %v759, %v988
      %v1021 = vadd.f32 %v760, %v989
      %v1022 = vadd.f32 %v761, %v990
      %v1023 = vadd.f32 %v762, %v991
      %v1024 = vadd.f32 %v763, %v992
      %s1025 = scalar_lea.vmem %s230, 24
      %v1026 = vld [vmem:[%s1025] sm:$0xff]
      %v1027 = vld [vmem:[%s1025 + $0x8] sm:$0xff]
      %v1028 = vld [vmem:[%s1025 + $0x18] sm:$0xff]
      %v1029 = vld [vmem:[%s1025 + $0x20] sm:$0xff]
      %v1030 = vld [vmem:[%s1025 + $0x30] sm:$0xff]
      %v1031 = vld [vmem:[%s1025 + $0x38] sm:$0xff]
      %v1032 = vld [vmem:[%s1025 + $0x48] sm:$0xff]
      %v1033 = vld [vmem:[%s1025 + $0x50] sm:$0xff]
      %v1034 = vld [vmem:[%s1025 + $0x60] sm:$0xff]
      %v1035 = vld [vmem:[%s1025 + $0x68] sm:$0xff]
      %v1036 = vld [vmem:[%s1025 + $0x78] sm:$0xff]
      %v1037 = vld [vmem:[%s1025 + $0x80] sm:$0xff]
      %v1038 = vld [vmem:[%s1025 + $0x90] sm:$0xff]
      %v1039 = vld [vmem:[%s1025 + $0x98] sm:$0xff]
      %v1040 = vld [vmem:[%s1025 + $0xa8] sm:$0xff]
      %v1041 = vld [vmem:[%s1025 + $0xb0] sm:$0xff]
      %v1042 = vld [vmem:[%s1025 + $0xc0] sm:$0xff]
      %v1043 = vld [vmem:[%s1025 + $0xc8] sm:$0xff]
      %v1044 = vld [vmem:[%s1025 + $0xd8] sm:$0xff]
      %v1045 = vld [vmem:[%s1025 + $0xe0] sm:$0xff]
      %v1046 = vld [vmem:[%s1025 + $0xf0] sm:$0xff]
      %v1047 = vld [vmem:[%s1025 + $0xf8] sm:$0xff]
      %v1048 = vld [vmem:[%s1025 + $0x108] sm:$0xff]
      %v1049 = vld [vmem:[%s1025 + $0x110] sm:$0xff]
      %v1050 = vld [vmem:[%s1025 + $0x120] sm:$0xff]
      %v1051 = vld [vmem:[%s1025 + $0x128] sm:$0xff]
      %v1052 = vld [vmem:[%s1025 + $0x138] sm:$0xff]
      %v1053 = vld [vmem:[%s1025 + $0x140] sm:$0xff]
      %v1054 = vld [vmem:[%s1025 + $0x150] sm:$0xff]
      %v1055 = vld [vmem:[%s1025 + $0x158] sm:$0xff]
      %v1056 = vld [vmem:[%s1025 + $0x168] sm:$0xff]
      %v1057 = vld [vmem:[%s1025 + $0x170] sm:$0xff]
      %v1058 = vld [vmem:[%s1 + $0x3] sm:$0x1]
      %1060 = vset.pattern.permute.xlu0 0
      %1061 = vperm.xlu0 %1060, %v1026
      %v1062 = vpop.permute.xlu0 %1061
      %1065 = vset.pattern.permute.xlu0 0
      %1066 = vperm.xlu0 %1065, %v1027
      %v1067 = vpop.permute.xlu0 %1066
      %1070 = vset.pattern.permute.xlu0 0
      %1071 = vperm.xlu0 %1070, %v1028
      %v1072 = vpop.permute.xlu0 %1071
      %1075 = vset.pattern.permute.xlu0 0
      %1076 = vperm.xlu0 %1075, %v1029
      %v1077 = vpop.permute.xlu0 %1076
      %1080 = vset.pattern.permute.xlu0 0
      %1081 = vperm.xlu0 %1080, %v1030
      %v1082 = vpop.permute.xlu0 %1081
      %1085 = vset.pattern.permute.xlu0 0
      %1086 = vperm.xlu0 %1085, %v1031
      %v1087 = vpop.permute.xlu0 %1086
      %1090 = vset.pattern.permute.xlu0 0
      %1091 = vperm.xlu0 %1090, %v1032
      %v1092 = vpop.permute.xlu0 %1091
      %1095 = vset.pattern.permute.xlu0 0
      %1096 = vperm.xlu0 %1095, %v1033
      %v1097 = vpop.permute.xlu0 %1096
      %1100 = vset.pattern.permute.xlu0 0
      %1101 = vperm.xlu0 %1100, %v1034
      %v1102 = vpop.permute.xlu0 %1101
      %1105 = vset.pattern.permute.xlu0 0
      %1106 = vperm.xlu0 %1105, %v1035
      %v1107 = vpop.permute.xlu0 %1106
      %1110 = vset.pattern.permute.xlu0 0
      %1111 = vperm.xlu0 %1110, %v1036
      %v1112 = vpop.permute.xlu0 %1111
      %1115 = vset.pattern.permute.xlu0 0
      %1116 = vperm.xlu0 %1115, %v1037
      %v1117 = vpop.permute.xlu0 %1116
      %1120 = vset.pattern.permute.xlu0 0
      %1121 = vperm.xlu0 %1120, %v1038
      %v1122 = vpop.permute.xlu0 %1121
      %1125 = vset.pattern.permute.xlu0 0
      %1126 = vperm.xlu0 %1125, %v1039
      %v1127 = vpop.permute.xlu0 %1126
      %1130 = vset.pattern.permute.xlu0 0
      %1131 = vperm.xlu0 %1130, %v1040
      %v1132 = vpop.permute.xlu0 %1131
      %1135 = vset.pattern.permute.xlu0 0
      %1136 = vperm.xlu0 %1135, %v1041
      %v1137 = vpop.permute.xlu0 %1136
      %1140 = vset.pattern.permute.xlu0 0
      %1141 = vperm.xlu0 %1140, %v1042
      %v1142 = vpop.permute.xlu0 %1141
      %1145 = vset.pattern.permute.xlu0 0
      %1146 = vperm.xlu0 %1145, %v1043
      %v1147 = vpop.permute.xlu0 %1146
      %1150 = vset.pattern.permute.xlu0 0
      %1151 = vperm.xlu0 %1150, %v1044
      %v1152 = vpop.permute.xlu0 %1151
      %1155 = vset.pattern.permute.xlu0 0
      %1156 = vperm.xlu0 %1155, %v1045
      %v1157 = vpop.permute.xlu0 %1156
      %1160 = vset.pattern.permute.xlu0 0
      %1161 = vperm.xlu0 %1160, %v1046
      %v1162 = vpop.permute.xlu0 %1161
      %1165 = vset.pattern.permute.xlu0 0
      %1166 = vperm.xlu0 %1165, %v1047
      %v1167 = vpop.permute.xlu0 %1166
      %1170 = vset.pattern.permute.xlu0 0
      %1171 = vperm.xlu0 %1170, %v1048
      %v1172 = vpop.permute.xlu0 %1171
      %1175 = vset.pattern.permute.xlu0 0
      %1176 = vperm.xlu0 %1175, %v1049
      %v1177 = vpop.permute.xlu0 %1176
      %1180 = vset.pattern.permute.xlu0 0
      %1181 = vperm.xlu0 %1180, %v1050
      %v1182 = vpop.permute.xlu0 %1181
      %1185 = vset.pattern.permute.xlu0 0
      %1186 = vperm.xlu0 %1185, %v1051
      %v1187 = vpop.permute.xlu0 %1186
      %1190 = vset.pattern.permute.xlu0 0
      %1191 = vperm.xlu0 %1190, %v1052
      %v1192 = vpop.permute.xlu0 %1191
      %1195 = vset.pattern.permute.xlu0 0
      %1196 = vperm.xlu0 %1195, %v1053
      %v1197 = vpop.permute.xlu0 %1196
      %1200 = vset.pattern.permute.xlu0 0
      %1201 = vperm.xlu0 %1200, %v1054
      %v1202 = vpop.permute.xlu0 %1201
      %1205 = vset.pattern.permute.xlu0 0
      %1206 = vperm.xlu0 %1205, %v1055
      %v1207 = vpop.permute.xlu0 %1206
      %1210 = vset.pattern.permute.xlu0 0
      %1211 = vperm.xlu0 %1210, %v1056
      %v1212 = vpop.permute.xlu0 %1211
      %1215 = vset.pattern.permute.xlu0 0
      %1216 = vperm.xlu0 %1215, %v1057
      %v1217 = vpop.permute.xlu0 %1216
      %v1219 = vlaneseq
      %v1220 = vshrl.u32 %v1219, 7
      %v1221 = vsub.s32 0, %v1220
      %v1222 = vrot.slane %v1058, %v1221
      %v1223 = vmul.f32 %v1062, %v1222
      %v1224 = vmul.f32 %v1067, %v1222
      %v1225 = vmul.f32 %v1072, %v1222
      %v1226 = vmul.f32 %v1077, %v1222
      %v1227 = vmul.f32 %v1082, %v1222
      %v1228 = vmul.f32 %v1087, %v1222
      %v1229 = vmul.f32 %v1092, %v1222
      %v1230 = vmul.f32 %v1097, %v1222
      %v1231 = vmul.f32 %v1102, %v1222
      %v1232 = vmul.f32 %v1107, %v1222
      %v1233 = vmul.f32 %v1112, %v1222
      %v1234 = vmul.f32 %v1117, %v1222
      %v1235 = vmul.f32 %v1122, %v1222
      %v1236 = vmul.f32 %v1127, %v1222
      %v1237 = vmul.f32 %v1132, %v1222
      %v1238 = vmul.f32 %v1137, %v1222
      %v1239 = vmul.f32 %v1142, %v1222
      %v1240 = vmul.f32 %v1147, %v1222
      %v1241 = vmul.f32 %v1152, %v1222
      %v1242 = vmul.f32 %v1157, %v1222
      %v1243 = vmul.f32 %v1162, %v1222
      %v1244 = vmul.f32 %v1167, %v1222
      %v1245 = vmul.f32 %v1172, %v1222
      %v1246 = vmul.f32 %v1177, %v1222
      %v1247 = vmul.f32 %v1182, %v1222
      %v1248 = vmul.f32 %v1187, %v1222
      %v1249 = vmul.f32 %v1192, %v1222
      %v1250 = vmul.f32 %v1197, %v1222
      %v1251 = vmul.f32 %v1202, %v1222
      %v1252 = vmul.f32 %v1207, %v1222
      %v1253 = vmul.f32 %v1212, %v1222
      %v1254 = vmul.f32 %v1217, %v1222
      %v1255 = vadd.f32 %v993, %v1223
      %v1256 = vadd.f32 %v994, %v1224
      %v1257 = vadd.f32 %v995, %v1225
      %v1258 = vadd.f32 %v996, %v1226
      %v1259 = vadd.f32 %v997, %v1227
      %v1260 = vadd.f32 %v998, %v1228
      %v1261 = vadd.f32 %v999, %v1229
      %v1262 = vadd.f32 %v1000, %v1230
      %v1263 = vadd.f32 %v1001, %v1231
      %v1264 = vadd.f32 %v1002, %v1232
      %v1265 = vadd.f32 %v1003, %v1233
      %v1266 = vadd.f32 %v1004, %v1234
      %v1267 = vadd.f32 %v1005, %v1235
      %v1268 = vadd.f32 %v1006, %v1236
      %v1269 = vadd.f32 %v1007, %v1237
      %v1270 = vadd.f32 %v1008, %v1238
      %v1271 = vadd.f32 %v1009, %v1239
      %v1272 = vadd.f32 %v1010, %v1240
      %v1273 = vadd.f32 %v1011, %v1241
      %v1274 = vadd.f32 %v1012, %v1242
      %v1275 = vadd.f32 %v1013, %v1243
      %v1276 = vadd.f32 %v1014, %v1244
      %v1277 = vadd.f32 %v1015, %v1245
      %v1278 = vadd.f32 %v1016, %v1246
      %v1279 = vadd.f32 %v1017, %v1247
      %v1280 = vadd.f32 %v1018, %v1248
      %v1281 = vadd.f32 %v1019, %v1249
      %v1282 = vadd.f32 %v1020, %v1250
      %v1283 = vadd.f32 %v1021, %v1251
      %v1284 = vadd.f32 %v1022, %v1252
      %v1285 = vadd.f32 %v1023, %v1253
      %v1286 = vadd.f32 %v1024, %v1254
      %v1287 = vld [vmem:[%s1025 + $0x1] sm:$0xff]
      %v1288 = vld [vmem:[%s1025 + $0x9] sm:$0xff]
      %v1289 = vld [vmem:[%s1025 + $0x19] sm:$0xff]
      %v1290 = vld [vmem:[%s1025 + $0x21] sm:$0xff]
      %v1291 = vld [vmem:[%s1025 + $0x31] sm:$0xff]
      %v1292 = vld [vmem:[%s1025 + $0x39] sm:$0xff]
      %v1293 = vld [vmem:[%s1025 + $0x49] sm:$0xff]
      %v1294 = vld [vmem:[%s1025 + $0x51] sm:$0xff]
      %v1295 = vld [vmem:[%s1025 + $0x61] sm:$0xff]
      %v1296 = vld [vmem:[%s1025 + $0x69] sm:$0xff]
      %v1297 = vld [vmem:[%s1025 + $0x79] sm:$0xff]
      %v1298 = vld [vmem:[%s1025 + $0x81] sm:$0xff]
      %v1299 = vld [vmem:[%s1025 + $0x91] sm:$0xff]
      %v1300 = vld [vmem:[%s1025 + $0x99] sm:$0xff]
      %v1301 = vld [vmem:[%s1025 + $0xa9] sm:$0xff]
      %v1302 = vld [vmem:[%s1025 + $0xb1] sm:$0xff]
      %v1303 = vld [vmem:[%s1025 + $0xc1] sm:$0xff]
      %v1304 = vld [vmem:[%s1025 + $0xc9] sm:$0xff]
      %v1305 = vld [vmem:[%s1025 + $0xd9] sm:$0xff]
      %v1306 = vld [vmem:[%s1025 + $0xe1] sm:$0xff]
      %v1307 = vld [vmem:[%s1025 + $0xf1] sm:$0xff]
      %v1308 = vld [vmem:[%s1025 + $0xf9] sm:$0xff]
      %v1309 = vld [vmem:[%s1025 + $0x109] sm:$0xff]
      %v1310 = vld [vmem:[%s1025 + $0x111] sm:$0xff]
      %v1311 = vld [vmem:[%s1025 + $0x121] sm:$0xff]
      %v1312 = vld [vmem:[%s1025 + $0x129] sm:$0xff]
      %v1313 = vld [vmem:[%s1025 + $0x139] sm:$0xff]
      %v1314 = vld [vmem:[%s1025 + $0x141] sm:$0xff]
      %v1315 = vld [vmem:[%s1025 + $0x151] sm:$0xff]
      %v1316 = vld [vmem:[%s1025 + $0x159] sm:$0xff]
      %v1317 = vld [vmem:[%s1025 + $0x169] sm:$0xff]
      %v1318 = vld [vmem:[%s1025 + $0x171] sm:$0xff]
      %v1319 = vld [vmem:[%s1 + $0x4] sm:$0x1]
      %1321 = vset.pattern.permute.xlu0 0
      %1322 = vperm.xlu0 %1321, %v1287
      %v1323 = vpop.permute.xlu0 %1322
      %1326 = vset.pattern.permute.xlu0 0
      %1327 = vperm.xlu0 %1326, %v1288
      %v1328 = vpop.permute.xlu0 %1327
      %1331 = vset.pattern.permute.xlu0 0
      %1332 = vperm.xlu0 %1331, %v1289
      %v1333 = vpop.permute.xlu0 %1332
      %1336 = vset.pattern.permute.xlu0 0
      %1337 = vperm.xlu0 %1336, %v1290
      %v1338 = vpop.permute.xlu0 %1337
      %1341 = vset.pattern.permute.xlu0 0
      %1342 = vperm.xlu0 %1341, %v1291
      %v1343 = vpop.permute.xlu0 %1342
      %1346 = vset.pattern.permute.xlu0 0
      %1347 = vperm.xlu0 %1346, %v1292
      %v1348 = vpop.permute.xlu0 %1347
      %1351 = vset.pattern.permute.xlu0 0
      %1352 = vperm.xlu0 %1351, %v1293
      %v1353 = vpop.permute.xlu0 %1352
      %1356 = vset.pattern.permute.xlu0 0
      %1357 = vperm.xlu0 %1356, %v1294
      %v1358 = vpop.permute.xlu0 %1357
      %1361 = vset.pattern.permute.xlu0 0
      %1362 = vperm.xlu0 %1361, %v1295
      %v1363 = vpop.permute.xlu0 %1362
      %1366 = vset.pattern.permute.xlu0 0
      %1367 = vperm.xlu0 %1366, %v1296
      %v1368 = vpop.permute.xlu0 %1367
      %1371 = vset.pattern.permute.xlu0 0
      %1372 = vperm.xlu0 %1371, %v1297
      %v1373 = vpop.permute.xlu0 %1372
      %1376 = vset.pattern.permute.xlu0 0
      %1377 = vperm.xlu0 %1376, %v1298
      %v1378 = vpop.permute.xlu0 %1377
      %1381 = vset.pattern.permute.xlu0 0
      %1382 = vperm.xlu0 %1381, %v1299
      %v1383 = vpop.permute.xlu0 %1382
      %1386 = vset.pattern.permute.xlu0 0
      %1387 = vperm.xlu0 %1386, %v1300
      %v1388 = vpop.permute.xlu0 %1387
      %1391 = vset.pattern.permute.xlu0 0
      %1392 = vperm.xlu0 %1391, %v1301
      %v1393 = vpop.permute.xlu0 %1392
      %1396 = vset.pattern.permute.xlu0 0
      %1397 = vperm.xlu0 %1396, %v1302
      %v1398 = vpop.permute.xlu0 %1397
      %1401 = vset.pattern.permute.xlu0 0
      %1402 = vperm.xlu0 %1401, %v1303
      %v1403 = vpop.permute.xlu0 %1402
      %1406 = vset.pattern.permute.xlu0 0
      %1407 = vperm.xlu0 %1406, %v1304
      %v1408 = vpop.permute.xlu0 %1407
      %1411 = vset.pattern.permute.xlu0 0
      %1412 = vperm.xlu0 %1411, %v1305
      %v1413 = vpop.permute.xlu0 %1412
      %1416 = vset.pattern.permute.xlu0 0
      %1417 = vperm.xlu0 %1416, %v1306
      %v1418 = vpop.permute.xlu0 %1417
      %1421 = vset.pattern.permute.xlu0 0
      %1422 = vperm.xlu0 %1421, %v1307
      %v1423 = vpop.permute.xlu0 %1422
      %1426 = vset.pattern.permute.xlu0 0
      %1427 = vperm.xlu0 %1426, %v1308
      %v1428 = vpop.permute.xlu0 %1427
      %1431 = vset.pattern.permute.xlu0 0
      %1432 = vperm.xlu0 %1431, %v1309
      %v1433 = vpop.permute.xlu0 %1432
      %1436 = vset.pattern.permute.xlu0 0
      %1437 = vperm.xlu0 %1436, %v1310
      %v1438 = vpop.permute.xlu0 %1437
      %1441 = vset.pattern.permute.xlu0 0
      %1442 = vperm.xlu0 %1441, %v1311
      %v1443 = vpop.permute.xlu0 %1442
      %1446 = vset.pattern.permute.xlu0 0
      %1447 = vperm.xlu0 %1446, %v1312
      %v1448 = vpop.permute.xlu0 %1447
      %1451 = vset.pattern.permute.xlu0 0
      %1452 = vperm.xlu0 %1451, %v1313
      %v1453 = vpop.permute.xlu0 %1452
      %1456 = vset.pattern.permute.xlu0 0
      %1457 = vperm.xlu0 %1456, %v1314
      %v1458 = vpop.permute.xlu0 %1457
      %1461 = vset.pattern.permute.xlu0 0
      %1462 = vperm.xlu0 %1461, %v1315
      %v1463 = vpop.permute.xlu0 %1462
      %1466 = vset.pattern.permute.xlu0 0
      %1467 = vperm.xlu0 %1466, %v1316
      %v1468 = vpop.permute.xlu0 %1467
      %1471 = vset.pattern.permute.xlu0 0
      %1472 = vperm.xlu0 %1471, %v1317
      %v1473 = vpop.permute.xlu0 %1472
      %1476 = vset.pattern.permute.xlu0 0
      %1477 = vperm.xlu0 %1476, %v1318
      %v1478 = vpop.permute.xlu0 %1477
      %v1480 = vlaneseq
      %v1481 = vshrl.u32 %v1480, 7
      %v1482 = vsub.s32 0, %v1481
      %v1483 = vrot.slane %v1319, %v1482
      %v1484 = vmul.f32 %v1323, %v1483
      %v1485 = vmul.f32 %v1328, %v1483
      %v1486 = vmul.f32 %v1333, %v1483
      %v1487 = vmul.f32 %v1338, %v1483
      %v1488 = vmul.f32 %v1343, %v1483
      %v1489 = vmul.f32 %v1348, %v1483
      %v1490 = vmul.f32 %v1353, %v1483
      %v1491 = vmul.f32 %v1358, %v1483
      %v1492 = vmul.f32 %v1363, %v1483
      %v1493 = vmul.f32 %v1368, %v1483
      %v1494 = vmul.f32 %v1373, %v1483
      %v1495 = vmul.f32 %v1378, %v1483
      %v1496 = vmul.f32 %v1383, %v1483
      %v1497 = vmul.f32 %v1388, %v1483
      %v1498 = vmul.f32 %v1393, %v1483
      %v1499 = vmul.f32 %v1398, %v1483
      %v1500 = vmul.f32 %v1403, %v1483
      %v1501 = vmul.f32 %v1408, %v1483
      %v1502 = vmul.f32 %v1413, %v1483
      %v1503 = vmul.f32 %v1418, %v1483
      %v1504 = vmul.f32 %v1423, %v1483
      %v1505 = vmul.f32 %v1428, %v1483
      %v1506 = vmul.f32 %v1433, %v1483
      %v1507 = vmul.f32 %v1438, %v1483
      %v1508 = vmul.f32 %v1443, %v1483
      %v1509 = vmul.f32 %v1448, %v1483
      %v1510 = vmul.f32 %v1453, %v1483
      %v1511 = vmul.f32 %v1458, %v1483
      %v1512 = vmul.f32 %v1463, %v1483
      %v1513 = vmul.f32 %v1468, %v1483
      %v1514 = vmul.f32 %v1473, %v1483
      %v1515 = vmul.f32 %v1478, %v1483
      %v1516 = vadd.f32 %v1255, %v1484
      %v1517 = vadd.f32 %v1256, %v1485
      %v1518 = vadd.f32 %v1257, %v1486
      %v1519 = vadd.f32 %v1258, %v1487
      %v1520 = vadd.f32 %v1259, %v1488
      %v1521 = vadd.f32 %v1260, %v1489
      %v1522 = vadd.f32 %v1261, %v1490
      %v1523 = vadd.f32 %v1262, %v1491
      %v1524 = vadd.f32 %v1263, %v1492
      %v1525 = vadd.f32 %v1264, %v1493
      %v1526 = vadd.f32 %v1265, %v1494
      %v1527 = vadd.f32 %v1266, %v1495
      %v1528 = vadd.f32 %v1267, %v1496
      %v1529 = vadd.f32 %v1268, %v1497
      %v1530 = vadd.f32 %v1269, %v1498
      %v1531 = vadd.f32 %v1270, %v1499
      %v1532 = vadd.f32 %v1271, %v1500
      %v1533 = vadd.f32 %v1272, %v1501
      %v1534 = vadd.f32 %v1273, %v1502
      %v1535 = vadd.f32 %v1274, %v1503
      %v1536 = vadd.f32 %v1275, %v1504
      %v1537 = vadd.f32 %v1276, %v1505
      %v1538 = vadd.f32 %v1277, %v1506
      %v1539 = vadd.f32 %v1278, %v1507
      %v1540 = vadd.f32 %v1279, %v1508
      %v1541 = vadd.f32 %v1280, %v1509
      %v1542 = vadd.f32 %v1281, %v1510
      %v1543 = vadd.f32 %v1282, %v1511
      %v1544 = vadd.f32 %v1283, %v1512
      %v1545 = vadd.f32 %v1284, %v1513
      %v1546 = vadd.f32 %v1285, %v1514
      %v1547 = vadd.f32 %v1286, %v1515
      %v1548 = vld [vmem:[%s1025 + $0x2] sm:$0xff]
      %v1549 = vld [vmem:[%s1025 + $0xa] sm:$0xff]
      %v1550 = vld [vmem:[%s1025 + $0x1a] sm:$0xff]
      %v1551 = vld [vmem:[%s1025 + $0x22] sm:$0xff]
      %v1552 = vld [vmem:[%s1025 + $0x32] sm:$0xff]
      %v1553 = vld [vmem:[%s1025 + $0x3a] sm:$0xff]
      %v1554 = vld [vmem:[%s1025 + $0x4a] sm:$0xff]
      %v1555 = vld [vmem:[%s1025 + $0x52] sm:$0xff]
      %v1556 = vld [vmem:[%s1025 + $0x62] sm:$0xff]
      %v1557 = vld [vmem:[%s1025 + $0x6a] sm:$0xff]
      %v1558 = vld [vmem:[%s1025 + $0x7a] sm:$0xff]
      %v1559 = vld [vmem:[%s1025 + $0x82] sm:$0xff]
      %v1560 = vld [vmem:[%s1025 + $0x92] sm:$0xff]
      %v1561 = vld [vmem:[%s1025 + $0x9a] sm:$0xff]
      %v1562 = vld [vmem:[%s1025 + $0xaa] sm:$0xff]
      %v1563 = vld [vmem:[%s1025 + $0xb2] sm:$0xff]
      %v1564 = vld [vmem:[%s1025 + $0xc2] sm:$0xff]
      %v1565 = vld [vmem:[%s1025 + $0xca] sm:$0xff]
      %v1566 = vld [vmem:[%s1025 + $0xda] sm:$0xff]
      %v1567 = vld [vmem:[%s1025 + $0xe2] sm:$0xff]
      %v1568 = vld [vmem:[%s1025 + $0xf2] sm:$0xff]
      %v1569 = vld [vmem:[%s1025 + $0xfa] sm:$0xff]
      %v1570 = vld [vmem:[%s1025 + $0x10a] sm:$0xff]
      %v1571 = vld [vmem:[%s1025 + $0x112] sm:$0xff]
      %v1572 = vld [vmem:[%s1025 + $0x122] sm:$0xff]
      %v1573 = vld [vmem:[%s1025 + $0x12a] sm:$0xff]
      %v1574 = vld [vmem:[%s1025 + $0x13a] sm:$0xff]
      %v1575 = vld [vmem:[%s1025 + $0x142] sm:$0xff]
      %v1576 = vld [vmem:[%s1025 + $0x152] sm:$0xff]
      %v1577 = vld [vmem:[%s1025 + $0x15a] sm:$0xff]
      %v1578 = vld [vmem:[%s1025 + $0x16a] sm:$0xff]
      %v1579 = vld [vmem:[%s1025 + $0x172] sm:$0xff]
      %v1580 = vld [vmem:[%s1 + $0x5] sm:$0x1]
      %1582 = vset.pattern.permute.xlu0 0
      %1583 = vperm.xlu0 %1582, %v1548
      %v1584 = vpop.permute.xlu0 %1583
      %1587 = vset.pattern.permute.xlu0 0
      %1588 = vperm.xlu0 %1587, %v1549
      %v1589 = vpop.permute.xlu0 %1588
      %1592 = vset.pattern.permute.xlu0 0
      %1593 = vperm.xlu0 %1592, %v1550
      %v1594 = vpop.permute.xlu0 %1593
      %1597 = vset.pattern.permute.xlu0 0
      %1598 = vperm.xlu0 %1597, %v1551
      %v1599 = vpop.permute.xlu0 %1598
      %1602 = vset.pattern.permute.xlu0 0
      %1603 = vperm.xlu0 %1602, %v1552
      %v1604 = vpop.permute.xlu0 %1603
      %1607 = vset.pattern.permute.xlu0 0
      %1608 = vperm.xlu0 %1607, %v1553
      %v1609 = vpop.permute.xlu0 %1608
      %1612 = vset.pattern.permute.xlu0 0
      %1613 = vperm.xlu0 %1612, %v1554
      %v1614 = vpop.permute.xlu0 %1613
      %1617 = vset.pattern.permute.xlu0 0
      %1618 = vperm.xlu0 %1617, %v1555
      %v1619 = vpop.permute.xlu0 %1618
      %1622 = vset.pattern.permute.xlu0 0
      %1623 = vperm.xlu0 %1622, %v1556
      %v1624 = vpop.permute.xlu0 %1623
      %1627 = vset.pattern.permute.xlu0 0
      %1628 = vperm.xlu0 %1627, %v1557
      %v1629 = vpop.permute.xlu0 %1628
      %1632 = vset.pattern.permute.xlu0 0
      %1633 = vperm.xlu0 %1632, %v1558
      %v1634 = vpop.permute.xlu0 %1633
      %1637 = vset.pattern.permute.xlu0 0
      %1638 = vperm.xlu0 %1637, %v1559
      %v1639 = vpop.permute.xlu0 %1638
      %1642 = vset.pattern.permute.xlu0 0
      %1643 = vperm.xlu0 %1642, %v1560
      %v1644 = vpop.permute.xlu0 %1643
      %1647 = vset.pattern.permute.xlu0 0
      %1648 = vperm.xlu0 %1647, %v1561
      %v1649 = vpop.permute.xlu0 %1648
      %1652 = vset.pattern.permute.xlu0 0
      %1653 = vperm.xlu0 %1652, %v1562
      %v1654 = vpop.permute.xlu0 %1653
      %1657 = vset.pattern.permute.xlu0 0
      %1658 = vperm.xlu0 %1657, %v1563
      %v1659 = vpop.permute.xlu0 %1658
      %1662 = vset.pattern.permute.xlu0 0
      %1663 = vperm.xlu0 %1662, %v1564
      %v1664 = vpop.permute.xlu0 %1663
      %1667 = vset.pattern.permute.xlu0 0
      %1668 = vperm.xlu0 %1667, %v1565
      %v1669 = vpop.permute.xlu0 %1668
      %1672 = vset.pattern.permute.xlu0 0
      %1673 = vperm.xlu0 %1672, %v1566
      %v1674 = vpop.permute.xlu0 %1673
      %1677 = vset.pattern.permute.xlu0 0
      %1678 = vperm.xlu0 %1677, %v1567
      %v1679 = vpop.permute.xlu0 %1678
      %1682 = vset.pattern.permute.xlu0 0
      %1683 = vperm.xlu0 %1682, %v1568
      %v1684 = vpop.permute.xlu0 %1683
      %1687 = vset.pattern.permute.xlu0 0
      %1688 = vperm.xlu0 %1687, %v1569
      %v1689 = vpop.permute.xlu0 %1688
      %1692 = vset.pattern.permute.xlu0 0
      %1693 = vperm.xlu0 %1692, %v1570
      %v1694 = vpop.permute.xlu0 %1693
      %1697 = vset.pattern.permute.xlu0 0
      %1698 = vperm.xlu0 %1697, %v1571
      %v1699 = vpop.permute.xlu0 %1698
      %1702 = vset.pattern.permute.xlu0 0
      %1703 = vperm.xlu0 %1702, %v1572
      %v1704 = vpop.permute.xlu0 %1703
      %1707 = vset.pattern.permute.xlu0 0
      %1708 = vperm.xlu0 %1707, %v1573
      %v1709 = vpop.permute.xlu0 %1708
      %1712 = vset.pattern.permute.xlu0 0
      %1713 = vperm.xlu0 %1712, %v1574
      %v1714 = vpop.permute.xlu0 %1713
      %1717 = vset.pattern.permute.xlu0 0
      %1718 = vperm.xlu0 %1717, %v1575
      %v1719 = vpop.permute.xlu0 %1718
      %1722 = vset.pattern.permute.xlu0 0
      %1723 = vperm.xlu0 %1722, %v1576
      %v1724 = vpop.permute.xlu0 %1723
      %1727 = vset.pattern.permute.xlu0 0
      %1728 = vperm.xlu0 %1727, %v1577
      %v1729 = vpop.permute.xlu0 %1728
      %1732 = vset.pattern.permute.xlu0 0
      %1733 = vperm.xlu0 %1732, %v1578
      %v1734 = vpop.permute.xlu0 %1733
      %1737 = vset.pattern.permute.xlu0 0
      %1738 = vperm.xlu0 %1737, %v1579
      %v1739 = vpop.permute.xlu0 %1738
      %v1741 = vlaneseq
      %v1742 = vshrl.u32 %v1741, 7
      %v1743 = vsub.s32 0, %v1742
      %v1744 = vrot.slane %v1580, %v1743
      %v1745 = vmul.f32 %v1584, %v1744
      %v1746 = vmul.f32 %v1589, %v1744
      %v1747 = vmul.f32 %v1594, %v1744
      %v1748 = vmul.f32 %v1599, %v1744
      %v1749 = vmul.f32 %v1604, %v1744
      %v1750 = vmul.f32 %v1609, %v1744
      %v1751 = vmul.f32 %v1614, %v1744
      %v1752 = vmul.f32 %v1619, %v1744
      %v1753 = vmul.f32 %v1624, %v1744
      %v1754 = vmul.f32 %v1629, %v1744
      %v1755 = vmul.f32 %v1634, %v1744
      %v1756 = vmul.f32 %v1639, %v1744
      %v1757 = vmul.f32 %v1644, %v1744
      %v1758 = vmul.f32 %v1649, %v1744
      %v1759 = vmul.f32 %v1654, %v1744
      %v1760 = vmul.f32 %v1659, %v1744
      %v1761 = vmul.f32 %v1664, %v1744
      %v1762 = vmul.f32 %v1669, %v1744
      %v1763 = vmul.f32 %v1674, %v1744
      %v1764 = vmul.f32 %v1679, %v1744
      %v1765 = vmul.f32 %v1684, %v1744
      %v1766 = vmul.f32 %v1689, %v1744
      %v1767 = vmul.f32 %v1694, %v1744
      %v1768 = vmul.f32 %v1699, %v1744
      %v1769 = vmul.f32 %v1704, %v1744
      %v1770 = vmul.f32 %v1709, %v1744
      %v1771 = vmul.f32 %v1714, %v1744
      %v1772 = vmul.f32 %v1719, %v1744
      %v1773 = vmul.f32 %v1724, %v1744
      %v1774 = vmul.f32 %v1729, %v1744
      %v1775 = vmul.f32 %v1734, %v1744
      %v1776 = vmul.f32 %v1739, %v1744
      %v1777 = vadd.f32 %v1516, %v1745
      %v1778 = vadd.f32 %v1517, %v1746
      %v1779 = vadd.f32 %v1518, %v1747
      %v1780 = vadd.f32 %v1519, %v1748
      %v1781 = vadd.f32 %v1520, %v1749
      %v1782 = vadd.f32 %v1521, %v1750
      %v1783 = vadd.f32 %v1522, %v1751
      %v1784 = vadd.f32 %v1523, %v1752
      %v1785 = vadd.f32 %v1524, %v1753
      %v1786 = vadd.f32 %v1525, %v1754
      %v1787 = vadd.f32 %v1526, %v1755
      %v1788 = vadd.f32 %v1527, %v1756
      %v1789 = vadd.f32 %v1528, %v1757
      %v1790 = vadd.f32 %v1529, %v1758
      %v1791 = vadd.f32 %v1530, %v1759
      %v1792 = vadd.f32 %v1531, %v1760
      %v1793 = vadd.f32 %v1532, %v1761
      %v1794 = vadd.f32 %v1533, %v1762
      %v1795 = vadd.f32 %v1534, %v1763
      %v1796 = vadd.f32 %v1535, %v1764
      %v1797 = vadd.f32 %v1536, %v1765
      %v1798 = vadd.f32 %v1537, %v1766
      %v1799 = vadd.f32 %v1538, %v1767
      %v1800 = vadd.f32 %v1539, %v1768
      %v1801 = vadd.f32 %v1540, %v1769
      %v1802 = vadd.f32 %v1541, %v1770
      %v1803 = vadd.f32 %v1542, %v1771
      %v1804 = vadd.f32 %v1543, %v1772
      %v1805 = vadd.f32 %v1544, %v1773
      %v1806 = vadd.f32 %v1545, %v1774
      %v1807 = vadd.f32 %v1546, %v1775
      %v1808 = vadd.f32 %v1547, %v1776
      %s1809 = scalar_lea.vmem %s230, 48
      %v1810 = vld [vmem:[%s1809] sm:$0xff]
      %v1811 = vld [vmem:[%s1809 + $0x8] sm:$0xff]
      %v1812 = vld [vmem:[%s1809 + $0x18] sm:$0xff]
      %v1813 = vld [vmem:[%s1809 + $0x20] sm:$0xff]
      %v1814 = vld [vmem:[%s1809 + $0x30] sm:$0xff]
      %v1815 = vld [vmem:[%s1809 + $0x38] sm:$0xff]
      %v1816 = vld [vmem:[%s1809 + $0x48] sm:$0xff]
      %v1817 = vld [vmem:[%s1809 + $0x50] sm:$0xff]
      %v1818 = vld [vmem:[%s1809 + $0x60] sm:$0xff]
      %v1819 = vld [vmem:[%s1809 + $0x68] sm:$0xff]
      %v1820 = vld [vmem:[%s1809 + $0x78] sm:$0xff]
      %v1821 = vld [vmem:[%s1809 + $0x80] sm:$0xff]
      %v1822 = vld [vmem:[%s1809 + $0x90] sm:$0xff]
      %v1823 = vld [vmem:[%s1809 + $0x98] sm:$0xff]
      %v1824 = vld [vmem:[%s1809 + $0xa8] sm:$0xff]
      %v1825 = vld [vmem:[%s1809 + $0xb0] sm:$0xff]
      %v1826 = vld [vmem:[%s1809 + $0xc0] sm:$0xff]
      %v1827 = vld [vmem:[%s1809 + $0xc8] sm:$0xff]
      %v1828 = vld [vmem:[%s1809 + $0xd8] sm:$0xff]
      %v1829 = vld [vmem:[%s1809 + $0xe0] sm:$0xff]
      %v1830 = vld [vmem:[%s1809 + $0xf0] sm:$0xff]
      %v1831 = vld [vmem:[%s1809 + $0xf8] sm:$0xff]
      %v1832 = vld [vmem:[%s1809 + $0x108] sm:$0xff]
      %v1833 = vld [vmem:[%s1809 + $0x110] sm:$0xff]
      %v1834 = vld [vmem:[%s1809 + $0x120] sm:$0xff]
      %v1835 = vld [vmem:[%s1809 + $0x128] sm:$0xff]
      %v1836 = vld [vmem:[%s1809 + $0x138] sm:$0xff]
      %v1837 = vld [vmem:[%s1809 + $0x140] sm:$0xff]
      %v1838 = vld [vmem:[%s1809 + $0x150] sm:$0xff]
      %v1839 = vld [vmem:[%s1809 + $0x158] sm:$0xff]
      %v1840 = vld [vmem:[%s1809 + $0x168] sm:$0xff]
      %v1841 = vld [vmem:[%s1809 + $0x170] sm:$0xff]
      %v1842 = vld [vmem:[%s1 + $0x6] sm:$0x1]
      %1844 = vset.pattern.permute.xlu0 0
      %1845 = vperm.xlu0 %1844, %v1810
      %v1846 = vpop.permute.xlu0 %1845
      %1849 = vset.pattern.permute.xlu0 0
      %1850 = vperm.xlu0 %1849, %v1811
      %v1851 = vpop.permute.xlu0 %1850
      %1854 = vset.pattern.permute.xlu0 0
      %1855 = vperm.xlu0 %1854, %v1812
      %v1856 = vpop.permute.xlu0 %1855
      %1859 = vset.pattern.permute.xlu0 0
      %1860 = vperm.xlu0 %1859, %v1813
      %v1861 = vpop.permute.xlu0 %1860
      %1864 = vset.pattern.permute.xlu0 0
      %1865 = vperm.xlu0 %1864, %v1814
      %v1866 = vpop.permute.xlu0 %1865
      %1869 = vset.pattern.permute.xlu0 0
      %1870 = vperm.xlu0 %1869, %v1815
      %v1871 = vpop.permute.xlu0 %1870
      %1874 = vset.pattern.permute.xlu0 0
      %1875 = vperm.xlu0 %1874, %v1816
      %v1876 = vpop.permute.xlu0 %1875
      %1879 = vset.pattern.permute.xlu0 0
      %1880 = vperm.xlu0 %1879, %v1817
      %v1881 = vpop.permute.xlu0 %1880
      %1884 = vset.pattern.permute.xlu0 0
      %1885 = vperm.xlu0 %1884, %v1818
      %v1886 = vpop.permute.xlu0 %1885
      %1889 = vset.pattern.permute.xlu0 0
      %1890 = vperm.xlu0 %1889, %v1819
      %v1891 = vpop.permute.xlu0 %1890
      %1894 = vset.pattern.permute.xlu0 0
      %1895 = vperm.xlu0 %1894, %v1820
      %v1896 = vpop.permute.xlu0 %1895
      %1899 = vset.pattern.permute.xlu0 0
      %1900 = vperm.xlu0 %1899, %v1821
      %v1901 = vpop.permute.xlu0 %1900
      %1904 = vset.pattern.permute.xlu0 0
      %1905 = vperm.xlu0 %1904, %v1822
      %v1906 = vpop.permute.xlu0 %1905
      %1909 = vset.pattern.permute.xlu0 0
      %1910 = vperm.xlu0 %1909, %v1823
      %v1911 = vpop.permute.xlu0 %1910
      %1914 = vset.pattern.permute.xlu0 0
      %1915 = vperm.xlu0 %1914, %v1824
      %v1916 = vpop.permute.xlu0 %1915
      %1919 = vset.pattern.permute.xlu0 0
      %1920 = vperm.xlu0 %1919, %v1825
      %v1921 = vpop.permute.xlu0 %1920
      %1924 = vset.pattern.permute.xlu0 0
      %1925 = vperm.xlu0 %1924, %v1826
      %v1926 = vpop.permute.xlu0 %1925
      %1929 = vset.pattern.permute.xlu0 0
      %1930 = vperm.xlu0 %1929, %v1827
      %v1931 = vpop.permute.xlu0 %1930
      %1934 = vset.pattern.permute.xlu0 0
      %1935 = vperm.xlu0 %1934, %v1828
      %v1936 = vpop.permute.xlu0 %1935
      %1939 = vset.pattern.permute.xlu0 0
      %1940 = vperm.xlu0 %1939, %v1829
      %v1941 = vpop.permute.xlu0 %1940
      %1944 = vset.pattern.permute.xlu0 0
      %1945 = vperm.xlu0 %1944, %v1830
      %v1946 = vpop.permute.xlu0 %1945
      %1949 = vset.pattern.permute.xlu0 0
      %1950 = vperm.xlu0 %1949, %v1831
      %v1951 = vpop.permute.xlu0 %1950
      %1954 = vset.pattern.permute.xlu0 0
      %1955 = vperm.xlu0 %1954, %v1832
      %v1956 = vpop.permute.xlu0 %1955
      %1959 = vset.pattern.permute.xlu0 0
      %1960 = vperm.xlu0 %1959, %v1833
      %v1961 = vpop.permute.xlu0 %1960
      %1964 = vset.pattern.permute.xlu0 0
      %1965 = vperm.xlu0 %1964, %v1834
      %v1966 = vpop.permute.xlu0 %1965
      %1969 = vset.pattern.permute.xlu0 0
      %1970 = vperm.xlu0 %1969, %v1835
      %v1971 = vpop.permute.xlu0 %1970
      %1974 = vset.pattern.permute.xlu0 0
      %1975 = vperm.xlu0 %1974, %v1836
      %v1976 = vpop.permute.xlu0 %1975
      %1979 = vset.pattern.permute.xlu0 0
      %1980 = vperm.xlu0 %1979, %v1837
      %v1981 = vpop.permute.xlu0 %1980
      %1984 = vset.pattern.permute.xlu0 0
      %1985 = vperm.xlu0 %1984, %v1838
      %v1986 = vpop.permute.xlu0 %1985
      %1989 = vset.pattern.permute.xlu0 0
      %1990 = vperm.xlu0 %1989, %v1839
      %v1991 = vpop.permute.xlu0 %1990
      %1994 = vset.pattern.permute.xlu0 0
      %1995 = vperm.xlu0 %1994, %v1840
      %v1996 = vpop.permute.xlu0 %1995
      %1999 = vset.pattern.permute.xlu0 0
      %2000 = vperm.xlu0 %1999, %v1841
      %v2001 = vpop.permute.xlu0 %2000
      %v2003 = vlaneseq
      %v2004 = vshrl.u32 %v2003, 7
      %v2005 = vsub.s32 0, %v2004
      %v2006 = vrot.slane %v1842, %v2005
      %v2007 = vmul.f32 %v1846, %v2006
      %v2008 = vmul.f32 %v1851, %v2006
      %v2009 = vmul.f32 %v1856, %v2006
      %v2010 = vmul.f32 %v1861, %v2006
      %v2011 = vmul.f32 %v1866, %v2006
      %v2012 = vmul.f32 %v1871, %v2006
      %v2013 = vmul.f32 %v1876, %v2006
      %v2014 = vmul.f32 %v1881, %v2006
      %v2015 = vmul.f32 %v1886, %v2006
      %v2016 = vmul.f32 %v1891, %v2006
      %v2017 = vmul.f32 %v1896, %v2006
      %v2018 = vmul.f32 %v1901, %v2006
      %v2019 = vmul.f32 %v1906, %v2006
      %v2020 = vmul.f32 %v1911, %v2006
      %v2021 = vmul.f32 %v1916, %v2006
      %v2022 = vmul.f32 %v1921, %v2006
      %v2023 = vmul.f32 %v1926, %v2006
      %v2024 = vmul.f32 %v1931, %v2006
      %v2025 = vmul.f32 %v1936, %v2006
      %v2026 = vmul.f32 %v1941, %v2006
      %v2027 = vmul.f32 %v1946, %v2006
      %v2028 = vmul.f32 %v1951, %v2006
      %v2029 = vmul.f32 %v1956, %v2006
      %v2030 = vmul.f32 %v1961, %v2006
      %v2031 = vmul.f32 %v1966, %v2006
      %v2032 = vmul.f32 %v1971, %v2006
      %v2033 = vmul.f32 %v1976, %v2006
      %v2034 = vmul.f32 %v1981, %v2006
      %v2035 = vmul.f32 %v1986, %v2006
      %v2036 = vmul.f32 %v1991, %v2006
      %v2037 = vmul.f32 %v1996, %v2006
      %v2038 = vmul.f32 %v2001, %v2006
      %v2039 = vadd.f32 %v1777, %v2007
      %v2040 = vadd.f32 %v1778, %v2008
      %v2041 = vadd.f32 %v1779, %v2009
      %v2042 = vadd.f32 %v1780, %v2010
      %v2043 = vadd.f32 %v1781, %v2011
      %v2044 = vadd.f32 %v1782, %v2012
      %v2045 = vadd.f32 %v1783, %v2013
      %v2046 = vadd.f32 %v1784, %v2014
      %v2047 = vadd.f32 %v1785, %v2015
      %v2048 = vadd.f32 %v1786, %v2016
      %v2049 = vadd.f32 %v1787, %v2017
      %v2050 = vadd.f32 %v1788, %v2018
      %v2051 = vadd.f32 %v1789, %v2019
      %v2052 = vadd.f32 %v1790, %v2020
      %v2053 = vadd.f32 %v1791, %v2021
      %v2054 = vadd.f32 %v1792, %v2022
      %v2055 = vadd.f32 %v1793, %v2023
      %v2056 = vadd.f32 %v1794, %v2024
      %v2057 = vadd.f32 %v1795, %v2025
      %v2058 = vadd.f32 %v1796, %v2026
      %v2059 = vadd.f32 %v1797, %v2027
      %v2060 = vadd.f32 %v1798, %v2028
      %v2061 = vadd.f32 %v1799, %v2029
      %v2062 = vadd.f32 %v1800, %v2030
      %v2063 = vadd.f32 %v1801, %v2031
      %v2064 = vadd.f32 %v1802, %v2032
      %v2065 = vadd.f32 %v1803, %v2033
      %v2066 = vadd.f32 %v1804, %v2034
      %v2067 = vadd.f32 %v1805, %v2035
      %v2068 = vadd.f32 %v1806, %v2036
      %v2069 = vadd.f32 %v1807, %v2037
      %v2070 = vadd.f32 %v1808, %v2038
      %v2071 = vld [vmem:[%s1809 + $0x1] sm:$0xff]
      %v2072 = vld [vmem:[%s1809 + $0x9] sm:$0xff]
      %v2073 = vld [vmem:[%s1809 + $0x19] sm:$0xff]
      %v2074 = vld [vmem:[%s1809 + $0x21] sm:$0xff]
      %v2075 = vld [vmem:[%s1809 + $0x31] sm:$0xff]
      %v2076 = vld [vmem:[%s1809 + $0x39] sm:$0xff]
      %v2077 = vld [vmem:[%s1809 + $0x49] sm:$0xff]
      %v2078 = vld [vmem:[%s1809 + $0x51] sm:$0xff]
      %v2079 = vld [vmem:[%s1809 + $0x61] sm:$0xff]
      %v2080 = vld [vmem:[%s1809 + $0x69] sm:$0xff]
      %v2081 = vld [vmem:[%s1809 + $0x79] sm:$0xff]
      %v2082 = vld [vmem:[%s1809 + $0x81] sm:$0xff]
      %v2083 = vld [vmem:[%s1809 + $0x91] sm:$0xff]
      %v2084 = vld [vmem:[%s1809 + $0x99] sm:$0xff]
      %v2085 = vld [vmem:[%s1809 + $0xa9] sm:$0xff]
      %v2086 = vld [vmem:[%s1809 + $0xb1] sm:$0xff]
      %v2087 = vld [vmem:[%s1809 + $0xc1] sm:$0xff]
      %v2088 = vld [vmem:[%s1809 + $0xc9] sm:$0xff]
      %v2089 = vld [vmem:[%s1809 + $0xd9] sm:$0xff]
      %v2090 = vld [vmem:[%s1809 + $0xe1] sm:$0xff]
      %v2091 = vld [vmem:[%s1809 + $0xf1] sm:$0xff]
      %v2092 = vld [vmem:[%s1809 + $0xf9] sm:$0xff]
      %v2093 = vld [vmem:[%s1809 + $0x109] sm:$0xff]
      %v2094 = vld [vmem:[%s1809 + $0x111] sm:$0xff]
      %v2095 = vld [vmem:[%s1809 + $0x121] sm:$0xff]
      %v2096 = vld [vmem:[%s1809 + $0x129] sm:$0xff]
      %v2097 = vld [vmem:[%s1809 + $0x139] sm:$0xff]
      %v2098 = vld [vmem:[%s1809 + $0x141] sm:$0xff]
      %v2099 = vld [vmem:[%s1809 + $0x151] sm:$0xff]
      %v2100 = vld [vmem:[%s1809 + $0x159] sm:$0xff]
      %v2101 = vld [vmem:[%s1809 + $0x169] sm:$0xff]
      %v2102 = vld [vmem:[%s1809 + $0x171] sm:$0xff]
      %v2103 = vld [vmem:[%s1 + $0x7] sm:$0x1]
      %2105 = vset.pattern.permute.xlu0 0
      %2106 = vperm.xlu0 %2105, %v2071
      %v2107 = vpop.permute.xlu0 %2106
      %2110 = vset.pattern.permute.xlu0 0
      %2111 = vperm.xlu0 %2110, %v2072
      %v2112 = vpop.permute.xlu0 %2111
      %2115 = vset.pattern.permute.xlu0 0
      %2116 = vperm.xlu0 %2115, %v2073
      %v2117 = vpop.permute.xlu0 %2116
      %2120 = vset.pattern.permute.xlu0 0
      %2121 = vperm.xlu0 %2120, %v2074
      %v2122 = vpop.permute.xlu0 %2121
      %2125 = vset.pattern.permute.xlu0 0
      %2126 = vperm.xlu0 %2125, %v2075
      %v2127 = vpop.permute.xlu0 %2126
      %2130 = vset.pattern.permute.xlu0 0
      %2131 = vperm.xlu0 %2130, %v2076
      %v2132 = vpop.permute.xlu0 %2131
      %2135 = vset.pattern.permute.xlu0 0
      %2136 = vperm.xlu0 %2135, %v2077
      %v2137 = vpop.permute.xlu0 %2136
      %2140 = vset.pattern.permute.xlu0 0
      %2141 = vperm.xlu0 %2140, %v2078
      %v2142 = vpop.permute.xlu0 %2141
      %2145 = vset.pattern.permute.xlu0 0
      %2146 = vperm.xlu0 %2145, %v2079
      %v2147 = vpop.permute.xlu0 %2146
      %2150 = vset.pattern.permute.xlu0 0
      %2151 = vperm.xlu0 %2150, %v2080
      %v2152 = vpop.permute.xlu0 %2151
      %2155 = vset.pattern.permute.xlu0 0
      %2156 = vperm.xlu0 %2155, %v2081
      %v2157 = vpop.permute.xlu0 %2156
      %2160 = vset.pattern.permute.xlu0 0
      %2161 = vperm.xlu0 %2160, %v2082
      %v2162 = vpop.permute.xlu0 %2161
      %2165 = vset.pattern.permute.xlu0 0
      %2166 = vperm.xlu0 %2165, %v2083
      %v2167 = vpop.permute.xlu0 %2166
      %2170 = vset.pattern.permute.xlu0 0
      %2171 = vperm.xlu0 %2170, %v2084
      %v2172 = vpop.permute.xlu0 %2171
      %2175 = vset.pattern.permute.xlu0 0
      %2176 = vperm.xlu0 %2175, %v2085
      %v2177 = vpop.permute.xlu0 %2176
      %2180 = vset.pattern.permute.xlu0 0
      %2181 = vperm.xlu0 %2180, %v2086
      %v2182 = vpop.permute.xlu0 %2181
      %2185 = vset.pattern.permute.xlu0 0
      %2186 = vperm.xlu0 %2185, %v2087
      %v2187 = vpop.permute.xlu0 %2186
      %2190 = vset.pattern.permute.xlu0 0
      %2191 = vperm.xlu0 %2190, %v2088
      %v2192 = vpop.permute.xlu0 %2191
      %2195 = vset.pattern.permute.xlu0 0
      %2196 = vperm.xlu0 %2195, %v2089
      %v2197 = vpop.permute.xlu0 %2196
      %2200 = vset.pattern.permute.xlu0 0
      %2201 = vperm.xlu0 %2200, %v2090
      %v2202 = vpop.permute.xlu0 %2201
      %2205 = vset.pattern.permute.xlu0 0
      %2206 = vperm.xlu0 %2205, %v2091
      %v2207 = vpop.permute.xlu0 %2206
      %2210 = vset.pattern.permute.xlu0 0
      %2211 = vperm.xlu0 %2210, %v2092
      %v2212 = vpop.permute.xlu0 %2211
      %2215 = vset.pattern.permute.xlu0 0
      %2216 = vperm.xlu0 %2215, %v2093
      %v2217 = vpop.permute.xlu0 %2216
      %2220 = vset.pattern.permute.xlu0 0
      %2221 = vperm.xlu0 %2220, %v2094
      %v2222 = vpop.permute.xlu0 %2221
      %2225 = vset.pattern.permute.xlu0 0
      %2226 = vperm.xlu0 %2225, %v2095
      %v2227 = vpop.permute.xlu0 %2226
      %2230 = vset.pattern.permute.xlu0 0
      %2231 = vperm.xlu0 %2230, %v2096
      %v2232 = vpop.permute.xlu0 %2231
      %2235 = vset.pattern.permute.xlu0 0
      %2236 = vperm.xlu0 %2235, %v2097
      %v2237 = vpop.permute.xlu0 %2236
      %2240 = vset.pattern.permute.xlu0 0
      %2241 = vperm.xlu0 %2240, %v2098
      %v2242 = vpop.permute.xlu0 %2241
      %2245 = vset.pattern.permute.xlu0 0
      %2246 = vperm.xlu0 %2245, %v2099
      %v2247 = vpop.permute.xlu0 %2246
      %2250 = vset.pattern.permute.xlu0 0
      %2251 = vperm.xlu0 %2250, %v2100
      %v2252 = vpop.permute.xlu0 %2251
      %2255 = vset.pattern.permute.xlu0 0
      %2256 = vperm.xlu0 %2255, %v2101
      %v2257 = vpop.permute.xlu0 %2256
      %2260 = vset.pattern.permute.xlu0 0
      %2261 = vperm.xlu0 %2260, %v2102
      %v2262 = vpop.permute.xlu0 %2261
      %v2264 = vlaneseq
      %v2265 = vshrl.u32 %v2264, 7
      %v2266 = vsub.s32 0, %v2265
      %v2267 = vrot.slane %v2103, %v2266
      %v2268 = vmul.f32 %v2107, %v2267
      %v2269 = vmul.f32 %v2112, %v2267
      %v2270 = vmul.f32 %v2117, %v2267
      %v2271 = vmul.f32 %v2122, %v2267
      %v2272 = vmul.f32 %v2127, %v2267
      %v2273 = vmul.f32 %v2132, %v2267
      %v2274 = vmul.f32 %v2137, %v2267
      %v2275 = vmul.f32 %v2142, %v2267
      %v2276 = vmul.f32 %v2147, %v2267
      %v2277 = vmul.f32 %v2152, %v2267
      %v2278 = vmul.f32 %v2157, %v2267
      %v2279 = vmul.f32 %v2162, %v2267
      %v2280 = vmul.f32 %v2167, %v2267
      %v2281 = vmul.f32 %v2172, %v2267
      %v2282 = vmul.f32 %v2177, %v2267
      %v2283 = vmul.f32 %v2182, %v2267
      %v2284 = vmul.f32 %v2187, %v2267
      %v2285 = vmul.f32 %v2192, %v2267
      %v2286 = vmul.f32 %v2197, %v2267
      %v2287 = vmul.f32 %v2202, %v2267
      %v2288 = vmul.f32 %v2207, %v2267
      %v2289 = vmul.f32 %v2212, %v2267
      %v2290 = vmul.f32 %v2217, %v2267
      %v2291 = vmul.f32 %v2222, %v2267
      %v2292 = vmul.f32 %v2227, %v2267
      %v2293 = vmul.f32 %v2232, %v2267
      %v2294 = vmul.f32 %v2237, %v2267
      %v2295 = vmul.f32 %v2242, %v2267
      %v2296 = vmul.f32 %v2247, %v2267
      %v2297 = vmul.f32 %v2252, %v2267
      %v2298 = vmul.f32 %v2257, %v2267
      %v2299 = vmul.f32 %v2262, %v2267
      %v2300 = vadd.f32 %v2039, %v2268
      %v2301 = vadd.f32 %v2040, %v2269
      %v2302 = vadd.f32 %v2041, %v2270
      %v2303 = vadd.f32 %v2042, %v2271
      %v2304 = vadd.f32 %v2043, %v2272
      %v2305 = vadd.f32 %v2044, %v2273
      %v2306 = vadd.f32 %v2045, %v2274
      %v2307 = vadd.f32 %v2046, %v2275
      %v2308 = vadd.f32 %v2047, %v2276
      %v2309 = vadd.f32 %v2048, %v2277
      %v2310 = vadd.f32 %v2049, %v2278
      %v2311 = vadd.f32 %v2050, %v2279
      %v2312 = vadd.f32 %v2051, %v2280
      %v2313 = vadd.f32 %v2052, %v2281
      %v2314 = vadd.f32 %v2053, %v2282
      %v2315 = vadd.f32 %v2054, %v2283
      %v2316 = vadd.f32 %v2055, %v2284
      %v2317 = vadd.f32 %v2056, %v2285
      %v2318 = vadd.f32 %v2057, %v2286
      %v2319 = vadd.f32 %v2058, %v2287
      %v2320 = vadd.f32 %v2059, %v2288
      %v2321 = vadd.f32 %v2060, %v2289
      %v2322 = vadd.f32 %v2061, %v2290
      %v2323 = vadd.f32 %v2062, %v2291
      %v2324 = vadd.f32 %v2063, %v2292
      %v2325 = vadd.f32 %v2064, %v2293
      %v2326 = vadd.f32 %v2065, %v2294
      %v2327 = vadd.f32 %v2066, %v2295
      %v2328 = vadd.f32 %v2067, %v2296
      %v2329 = vadd.f32 %v2068, %v2297
      %v2330 = vadd.f32 %v2069, %v2298
      %v2331 = vadd.f32 %v2070, %v2299
      %v2332 = vld [vmem:[%s1809 + $0x2] sm:$0xff]
      %v2333 = vld [vmem:[%s1809 + $0xa] sm:$0xff]
      %v2334 = vld [vmem:[%s1809 + $0x1a] sm:$0xff]
      %v2335 = vld [vmem:[%s1809 + $0x22] sm:$0xff]
      %v2336 = vld [vmem:[%s1809 + $0x32] sm:$0xff]
      %v2337 = vld [vmem:[%s1809 + $0x3a] sm:$0xff]
      %v2338 = vld [vmem:[%s1809 + $0x4a] sm:$0xff]
      %v2339 = vld [vmem:[%s1809 + $0x52] sm:$0xff]
      %v2340 = vld [vmem:[%s1809 + $0x62] sm:$0xff]
      %v2341 = vld [vmem:[%s1809 + $0x6a] sm:$0xff]
      %v2342 = vld [vmem:[%s1809 + $0x7a] sm:$0xff]
      %v2343 = vld [vmem:[%s1809 + $0x82] sm:$0xff]
      %v2344 = vld [vmem:[%s1809 + $0x92] sm:$0xff]
      %v2345 = vld [vmem:[%s1809 + $0x9a] sm:$0xff]
      %v2346 = vld [vmem:[%s1809 + $0xaa] sm:$0xff]
      %v2347 = vld [vmem:[%s1809 + $0xb2] sm:$0xff]
      %v2348 = vld [vmem:[%s1809 + $0xc2] sm:$0xff]
      %v2349 = vld [vmem:[%s1809 + $0xca] sm:$0xff]
      %v2350 = vld [vmem:[%s1809 + $0xda] sm:$0xff]
      %v2351 = vld [vmem:[%s1809 + $0xe2] sm:$0xff]
      %v2352 = vld [vmem:[%s1809 + $0xf2] sm:$0xff]
      %v2353 = vld [vmem:[%s1809 + $0xfa] sm:$0xff]
      %v2354 = vld [vmem:[%s1809 + $0x10a] sm:$0xff]
      %v2355 = vld [vmem:[%s1809 + $0x112] sm:$0xff]
      %v2356 = vld [vmem:[%s1809 + $0x122] sm:$0xff]
      %v2357 = vld [vmem:[%s1809 + $0x12a] sm:$0xff]
      %v2358 = vld [vmem:[%s1809 + $0x13a] sm:$0xff]
      %v2359 = vld [vmem:[%s1809 + $0x142] sm:$0xff]
      %v2360 = vld [vmem:[%s1809 + $0x152] sm:$0xff]
      %v2361 = vld [vmem:[%s1809 + $0x15a] sm:$0xff]
      %v2362 = vld [vmem:[%s1809 + $0x16a] sm:$0xff]
      %v2363 = vld [vmem:[%s1809 + $0x172] sm:$0xff]
      %v2364 = vld [vmem:[%s1 + $0x8] sm:$0x1]
      %2366 = vset.pattern.permute.xlu0 0
      %2367 = vperm.xlu0 %2366, %v2332
      %v2368 = vpop.permute.xlu0 %2367
      %2371 = vset.pattern.permute.xlu0 0
      %2372 = vperm.xlu0 %2371, %v2333
      %v2373 = vpop.permute.xlu0 %2372
      %2376 = vset.pattern.permute.xlu0 0
      %2377 = vperm.xlu0 %2376, %v2334
      %v2378 = vpop.permute.xlu0 %2377
      %2381 = vset.pattern.permute.xlu0 0
      %2382 = vperm.xlu0 %2381, %v2335
      %v2383 = vpop.permute.xlu0 %2382
      %2386 = vset.pattern.permute.xlu0 0
      %2387 = vperm.xlu0 %2386, %v2336
      %v2388 = vpop.permute.xlu0 %2387
      %2391 = vset.pattern.permute.xlu0 0
      %2392 = vperm.xlu0 %2391, %v2337
      %v2393 = vpop.permute.xlu0 %2392
      %2396 = vset.pattern.permute.xlu0 0
      %2397 = vperm.xlu0 %2396, %v2338
      %v2398 = vpop.permute.xlu0 %2397
      %2401 = vset.pattern.permute.xlu0 0
      %2402 = vperm.xlu0 %2401, %v2339
      %v2403 = vpop.permute.xlu0 %2402
      %2406 = vset.pattern.permute.xlu0 0
      %2407 = vperm.xlu0 %2406, %v2340
      %v2408 = vpop.permute.xlu0 %2407
      %2411 = vset.pattern.permute.xlu0 0
      %2412 = vperm.xlu0 %2411, %v2341
      %v2413 = vpop.permute.xlu0 %2412
      %2416 = vset.pattern.permute.xlu0 0
      %2417 = vperm.xlu0 %2416, %v2342
      %v2418 = vpop.permute.xlu0 %2417
      %2421 = vset.pattern.permute.xlu0 0
      %2422 = vperm.xlu0 %2421, %v2343
      %v2423 = vpop.permute.xlu0 %2422
      %2426 = vset.pattern.permute.xlu0 0
      %2427 = vperm.xlu0 %2426, %v2344
      %v2428 = vpop.permute.xlu0 %2427
      %2431 = vset.pattern.permute.xlu0 0
      %2432 = vperm.xlu0 %2431, %v2345
      %v2433 = vpop.permute.xlu0 %2432
      %2436 = vset.pattern.permute.xlu0 0
      %2437 = vperm.xlu0 %2436, %v2346
      %v2438 = vpop.permute.xlu0 %2437
      %2441 = vset.pattern.permute.xlu0 0
      %2442 = vperm.xlu0 %2441, %v2347
      %v2443 = vpop.permute.xlu0 %2442
      %2446 = vset.pattern.permute.xlu0 0
      %2447 = vperm.xlu0 %2446, %v2348
      %v2448 = vpop.permute.xlu0 %2447
      %2451 = vset.pattern.permute.xlu0 0
      %2452 = vperm.xlu0 %2451, %v2349
      %v2453 = vpop.permute.xlu0 %2452
      %2456 = vset.pattern.permute.xlu0 0
      %2457 = vperm.xlu0 %2456, %v2350
      %v2458 = vpop.permute.xlu0 %2457
      %2461 = vset.pattern.permute.xlu0 0
      %2462 = vperm.xlu0 %2461, %v2351
      %v2463 = vpop.permute.xlu0 %2462
      %2466 = vset.pattern.permute.xlu0 0
      %2467 = vperm.xlu0 %2466, %v2352
      %v2468 = vpop.permute.xlu0 %2467
      %2471 = vset.pattern.permute.xlu0 0
      %2472 = vperm.xlu0 %2471, %v2353
      %v2473 = vpop.permute.xlu0 %2472
      %2476 = vset.pattern.permute.xlu0 0
      %2477 = vperm.xlu0 %2476, %v2354
      %v2478 = vpop.permute.xlu0 %2477
      %2481 = vset.pattern.permute.xlu0 0
      %2482 = vperm.xlu0 %2481, %v2355
      %v2483 = vpop.permute.xlu0 %2482
      %2486 = vset.pattern.permute.xlu0 0
      %2487 = vperm.xlu0 %2486, %v2356
      %v2488 = vpop.permute.xlu0 %2487
      %2491 = vset.pattern.permute.xlu0 0
      %2492 = vperm.xlu0 %2491, %v2357
      %v2493 = vpop.permute.xlu0 %2492
      %2496 = vset.pattern.permute.xlu0 0
      %2497 = vperm.xlu0 %2496, %v2358
      %v2498 = vpop.permute.xlu0 %2497
      %2501 = vset.pattern.permute.xlu0 0
      %2502 = vperm.xlu0 %2501, %v2359
      %v2503 = vpop.permute.xlu0 %2502
      %2506 = vset.pattern.permute.xlu0 0
      %2507 = vperm.xlu0 %2506, %v2360
      %v2508 = vpop.permute.xlu0 %2507
      %2511 = vset.pattern.permute.xlu0 0
      %2512 = vperm.xlu0 %2511, %v2361
      %v2513 = vpop.permute.xlu0 %2512
      %2516 = vset.pattern.permute.xlu0 0
      %2517 = vperm.xlu0 %2516, %v2362
      %v2518 = vpop.permute.xlu0 %2517
      %2521 = vset.pattern.permute.xlu0 0
      %2522 = vperm.xlu0 %2521, %v2363
      %v2523 = vpop.permute.xlu0 %2522
      %v2525 = vlaneseq
      %v2526 = vshrl.u32 %v2525, 7
      %v2527 = vsub.s32 0, %v2526
      %v2528 = vrot.slane %v2364, %v2527
      %v2529 = vmul.f32 %v2368, %v2528
      %v2530 = vmul.f32 %v2373, %v2528
      %v2531 = vmul.f32 %v2378, %v2528
      %v2532 = vmul.f32 %v2383, %v2528
      %v2533 = vmul.f32 %v2388, %v2528
      %v2534 = vmul.f32 %v2393, %v2528
      %v2535 = vmul.f32 %v2398, %v2528
      %v2536 = vmul.f32 %v2403, %v2528
      %v2537 = vmul.f32 %v2408, %v2528
      %v2538 = vmul.f32 %v2413, %v2528
      %v2539 = vmul.f32 %v2418, %v2528
      %v2540 = vmul.f32 %v2423, %v2528
      %v2541 = vmul.f32 %v2428, %v2528
      %v2542 = vmul.f32 %v2433, %v2528
      %v2543 = vmul.f32 %v2438, %v2528
      %v2544 = vmul.f32 %v2443, %v2528
      %v2545 = vmul.f32 %v2448, %v2528
      %v2546 = vmul.f32 %v2453, %v2528
      %v2547 = vmul.f32 %v2458, %v2528
      %v2548 = vmul.f32 %v2463, %v2528
      %v2549 = vmul.f32 %v2468, %v2528
      %v2550 = vmul.f32 %v2473, %v2528
      %v2551 = vmul.f32 %v2478, %v2528
      %v2552 = vmul.f32 %v2483, %v2528
      %v2553 = vmul.f32 %v2488, %v2528
      %v2554 = vmul.f32 %v2493, %v2528
      %v2555 = vmul.f32 %v2498, %v2528
      %v2556 = vmul.f32 %v2503, %v2528
      %v2557 = vmul.f32 %v2508, %v2528
      %v2558 = vmul.f32 %v2513, %v2528
      %v2559 = vmul.f32 %v2518, %v2528
      %v2560 = vmul.f32 %v2523, %v2528
      %v2561 = vadd.f32 %v2300, %v2529
      %v2562 = vadd.f32 %v2301, %v2530
      %v2563 = vadd.f32 %v2302, %v2531
      %v2564 = vadd.f32 %v2303, %v2532
      %v2565 = vadd.f32 %v2304, %v2533
      %v2566 = vadd.f32 %v2305, %v2534
      %v2567 = vadd.f32 %v2306, %v2535
      %v2568 = vadd.f32 %v2307, %v2536
      %v2569 = vadd.f32 %v2308, %v2537
      %v2570 = vadd.f32 %v2309, %v2538
      %v2571 = vadd.f32 %v2310, %v2539
      %v2572 = vadd.f32 %v2311, %v2540
      %v2573 = vadd.f32 %v2312, %v2541
      %v2574 = vadd.f32 %v2313, %v2542
      %v2575 = vadd.f32 %v2314, %v2543
      %v2576 = vadd.f32 %v2315, %v2544
      %v2577 = vadd.f32 %v2316, %v2545
      %v2578 = vadd.f32 %v2317, %v2546
      %v2579 = vadd.f32 %v2318, %v2547
      %v2580 = vadd.f32 %v2319, %v2548
      %v2581 = vadd.f32 %v2320, %v2549
      %v2582 = vadd.f32 %v2321, %v2550
      %v2583 = vadd.f32 %v2322, %v2551
      %v2584 = vadd.f32 %v2323, %v2552
      %v2585 = vadd.f32 %v2324, %v2553
      %v2586 = vadd.f32 %v2325, %v2554
      %v2587 = vadd.f32 %v2326, %v2555
      %v2588 = vadd.f32 %v2327, %v2556
      %v2589 = vadd.f32 %v2328, %v2557
      %v2590 = vadd.f32 %v2329, %v2558
      %v2591 = vadd.f32 %v2330, %v2559
      %v2592 = vadd.f32 %v2331, %v2560
      %v2593 = vld [vmem:[%s2] sm:$0x1]
      %v2595 = vlaneseq
      %v2596 = vshrl.u32 %v2595, 7
      %v2597 = vsub.s32 0, %v2596
      %v2598 = vrot.slane %v2593, %v2597
      %v2600 = vadd.f32 %v2561, %v2598
      %v2601 = vadd.f32 %v2562, %v2598
      %v2602 = vadd.f32 %v2563, %v2598
      %v2603 = vadd.f32 %v2564, %v2598
      %v2604 = vadd.f32 %v2565, %v2598
      %v2605 = vadd.f32 %v2566, %v2598
      %v2606 = vadd.f32 %v2567, %v2598
      %v2607 = vadd.f32 %v2568, %v2598
      %v2608 = vadd.f32 %v2569, %v2598
      %v2609 = vadd.f32 %v2570, %v2598
      %v2610 = vadd.f32 %v2571, %v2598
      %v2611 = vadd.f32 %v2572, %v2598
      %v2612 = vadd.f32 %v2573, %v2598
      %v2613 = vadd.f32 %v2574, %v2598
      %v2614 = vadd.f32 %v2575, %v2598
      %v2615 = vadd.f32 %v2576, %v2598
      %v2616 = vadd.f32 %v2577, %v2598
      %v2617 = vadd.f32 %v2578, %v2598
      %v2618 = vadd.f32 %v2579, %v2598
      %v2619 = vadd.f32 %v2580, %v2598
      %v2620 = vadd.f32 %v2581, %v2598
      %v2621 = vadd.f32 %v2582, %v2598
      %v2622 = vadd.f32 %v2583, %v2598
      %v2623 = vadd.f32 %v2584, %v2598
      %v2624 = vadd.f32 %v2585, %v2598
      %v2625 = vadd.f32 %v2586, %v2598
      %v2626 = vadd.f32 %v2587, %v2598
      %v2627 = vadd.f32 %v2588, %v2598
      %v2628 = vadd.f32 %v2589, %v2598
      %v2629 = vadd.f32 %v2590, %v2598
      %v2630 = vadd.f32 %v2591, %v2598
      %v2631 = vadd.f32 %v2592, %v2598
      %v2632 = vtanh.pop %v2600
      %v2633 = vtanh.pop %v2601
      %v2634 = vtanh.pop %v2602
      %v2635 = vtanh.pop %v2603
      %v2636 = vtanh.pop %v2604
      %v2637 = vtanh.pop %v2605
      %v2638 = vtanh.pop %v2606
      %v2639 = vtanh.pop %v2607
      %v2640 = vtanh.pop %v2608
      %v2641 = vtanh.pop %v2609
      %v2642 = vtanh.pop %v2610
      %v2643 = vtanh.pop %v2611
      %v2644 = vtanh.pop %v2612
      %v2645 = vtanh.pop %v2613
      %v2646 = vtanh.pop %v2614
      %v2647 = vtanh.pop %v2615
      %v2648 = vtanh.pop %v2616
      %v2649 = vtanh.pop %v2617
      %v2650 = vtanh.pop %v2618
      %v2651 = vtanh.pop %v2619
      %v2652 = vtanh.pop %v2620
      %v2653 = vtanh.pop %v2621
      %v2654 = vtanh.pop %v2622
      %v2655 = vtanh.pop %v2623
      %v2656 = vtanh.pop %v2624
      %v2657 = vtanh.pop %v2625
      %v2658 = vtanh.pop %v2626
      %v2659 = vtanh.pop %v2627
      %v2660 = vtanh.pop %v2628
      %v2661 = vtanh.pop %v2629
      %v2662 = vtanh.pop %v2630
      %v2663 = vtanh.pop %v2631
      %vm2664 = vcmask 261120
      %2665 = vst.msk [vmem:[%s235] sm:$0xff] %vm2664, %v2632
      %2666 = vst.msk [vmem:[%s235 + $0x8] sm:$0xff] %vm2664, %v2633
      %2667 = vst.msk [vmem:[%s235 + $0x10] sm:$0xff] %vm2664, %v2634
      %2668 = vst.msk [vmem:[%s235 + $0x18] sm:$0xff] %vm2664, %v2635
      %2669 = vst.msk [vmem:[%s235 + $0x20] sm:$0xff] %vm2664, %v2636
      %2670 = vst.msk [vmem:[%s235 + $0x28] sm:$0xff] %vm2664, %v2637
      %2671 = vst.msk [vmem:[%s235 + $0x30] sm:$0xff] %vm2664, %v2638
      %2672 = vst.msk [vmem:[%s235 + $0x38] sm:$0xff] %vm2664, %v2639
      %2673 = vst.msk [vmem:[%s235 + $0x40] sm:$0xff] %vm2664, %v2640
      %2674 = vst.msk [vmem:[%s235 + $0x48] sm:$0xff] %vm2664, %v2641
      %2675 = vst.msk [vmem:[%s235 + $0x50] sm:$0xff] %vm2664, %v2642
      %2676 = vst.msk [vmem:[%s235 + $0x58] sm:$0xff] %vm2664, %v2643
      %2677 = vst.msk [vmem:[%s235 + $0x60] sm:$0xff] %vm2664, %v2644
      %2678 = vst.msk [vmem:[%s235 + $0x68] sm:$0xff] %vm2664, %v2645
      %2679 = vst.msk [vmem:[%s235 + $0x70] sm:$0xff] %vm2664, %v2646
      %2680 = vst.msk [vmem:[%s235 + $0x78] sm:$0xff] %vm2664, %v2647
      %2681 = vst.msk [vmem:[%s235 + $0x80] sm:$0xff] %vm2664, %v2648
      %2682 = vst.msk [vmem:[%s235 + $0x88] sm:$0xff] %vm2664, %v2649
      %2683 = vst.msk [vmem:[%s235 + $0x90] sm:$0xff] %vm2664, %v2650
      %2684 = vst.msk [vmem:[%s235 + $0x98] sm:$0xff] %vm2664, %v2651
      %2685 = vst.msk [vmem:[%s235 + $0xa0] sm:$0xff] %vm2664, %v2652
      %2686 = vst.msk [vmem:[%s235 + $0xa8] sm:$0xff] %vm2664, %v2653
      %2687 = vst.msk [vmem:[%s235 + $0xb0] sm:$0xff] %vm2664, %v2654
      %2688 = vst.msk [vmem:[%s235 + $0xb8] sm:$0xff] %vm2664, %v2655
      %2689 = vst.msk [vmem:[%s235 + $0xc0] sm:$0xff] %vm2664, %v2656
      %2690 = vst.msk [vmem:[%s235 + $0xc8] sm:$0xff] %vm2664, %v2657
      %2691 = vst.msk [vmem:[%s235 + $0xd0] sm:$0xff] %vm2664, %v2658
      %2692 = vst.msk [vmem:[%s235 + $0xd8] sm:$0xff] %vm2664, %v2659
      %2693 = vst.msk [vmem:[%s235 + $0xe0] sm:$0xff] %vm2664, %v2660
      %2694 = vst.msk [vmem:[%s235 + $0xe8] sm:$0xff] %vm2664, %v2661
      %2695 = vst.msk [vmem:[%s235 + $0xf0] sm:$0xff] %vm2664, %v2662
      %2696 = vst.msk [vmem:[%s235 + $0xf8] sm:$0xff] %vm2664, %v2663
      %v2697 = vsel %vm2664, %v2632, 0.0
      %v2698 = vsel %vm2664, %v2633, 0.0
      %v2699 = vadd.f32 %v2697, %v2698
      %v2700 = vsel %vm2664, %v2634, 0.0
      %v2701 = vadd.f32 %v2699, %v2700
      %v2702 = vsel %vm2664, %v2635, 0.0
      %v2703 = vadd.f32 %v2701, %v2702
      %v2704 = vsel %vm2664, %v2636, 0.0
      %v2705 = vadd.f32 %v2703, %v2704
      %v2706 = vsel %vm2664, %v2637, 0.0
      %v2707 = vadd.f32 %v2705, %v2706
      %v2708 = vsel %vm2664, %v2638, 0.0
      %v2709 = vadd.f32 %v2707, %v2708
      %v2710 = vsel %vm2664, %v2639, 0.0
      %v2711 = vadd.f32 %v2709, %v2710
      %v2712 = vsel %vm2664, %v2640, 0.0
      %v2713 = vadd.f32 %v2711, %v2712
      %v2714 = vsel %vm2664, %v2641, 0.0
      %v2715 = vadd.f32 %v2713, %v2714
      %v2716 = vsel %vm2664, %v2642, 0.0
      %v2717 = vadd.f32 %v2715, %v2716
      %v2718 = vsel %vm2664, %v2643, 0.0
      %v2719 = vadd.f32 %v2717, %v2718
      %v2720 = vsel %vm2664, %v2644, 0.0
      %v2721 = vadd.f32 %v2719, %v2720
      %v2722 = vsel %vm2664, %v2645, 0.0
      %v2723 = vadd.f32 %v2721, %v2722
      %v2724 = vsel %vm2664, %v2646, 0.0
      %v2725 = vadd.f32 %v2723, %v2724
      %v2726 = vsel %vm2664, %v2647, 0.0
      %v2727 = vadd.f32 %v2725, %v2726
      %v2728 = vsel %vm2664, %v2648, 0.0
      %v2729 = vadd.f32 %v2727, %v2728
      %v2730 = vsel %vm2664, %v2649, 0.0
      %v2731 = vadd.f32 %v2729, %v2730
      %v2732 = vsel %vm2664, %v2650, 0.0
      %v2733 = vadd.f32 %v2731, %v2732
      %v2734 = vsel %vm2664, %v2651, 0.0
      %v2735 = vadd.f32 %v2733, %v2734
      %v2736 = vsel %vm2664, %v2652, 0.0
      %v2737 = vadd.f32 %v2735, %v2736
      %v2738 = vsel %vm2664, %v2653, 0.0
      %v2739 = vadd.f32 %v2737, %v2738
      %v2740 = vsel %vm2664, %v2654, 0.0
      %v2741 = vadd.f32 %v2739, %v2740
      %v2742 = vsel %vm2664, %v2655, 0.0
      %v2743 = vadd.f32 %v2741, %v2742
      %v2744 = vsel %vm2664, %v2656, 0.0
      %v2745 = vadd.f32 %v2743, %v2744
      %v2746 = vsel %vm2664, %v2657, 0.0
      %v2747 = vadd.f32 %v2745, %v2746
      %v2748 = vsel %vm2664, %v2658, 0.0
      %v2749 = vadd.f32 %v2747, %v2748
      %v2750 = vsel %vm2664, %v2659, 0.0
      %v2751 = vadd.f32 %v2749, %v2750
      %v2752 = vsel %vm2664, %v2660, 0.0
      %v2753 = vadd.f32 %v2751, %v2752
      %v2754 = vsel %vm2664, %v2661, 0.0
      %v2755 = vadd.f32 %v2753, %v2754
      %v2756 = vsel %vm2664, %v2662, 0.0
      %v2757 = vadd.f32 %v2755, %v2756
      %v2758 = vsel %vm2664, %v2663, 0.0
      %v2759 = vadd.f32 %v2757, %v2758
      %v2760 = vrot.slane %v2759, 4
      %v2761 = vadd.f32 %v2759, %v2760
      %v2762 = vrot.slane %v2761, 2
      %v2763 = vadd.f32 %v2761, %v2762
      %v2764 = vrot.slane %v2763, 1
      %v2765 = vadd.f32 %v2763, %v2764
      %vm2766 = vcmask 253952
      %2767 = vst.msk [vmem:[%s238] sm:$0x1] %vm2766, %v2765
      %v2768 = vmul.f32 %v2632, %v2632
      %v2769 = vmul.f32 %v2633, %v2633
      %v2770 = vmul.f32 %v2634, %v2634
      %v2771 = vmul.f32 %v2635, %v2635
      %v2772 = vmul.f32 %v2636, %v2636
      %v2773 = vmul.f32 %v2637, %v2637
      %v2774 = vmul.f32 %v2638, %v2638
      %v2775 = vmul.f32 %v2639, %v2639
      %v2776 = vmul.f32 %v2640, %v2640
      %v2777 = vmul.f32 %v2641, %v2641
      %v2778 = vmul.f32 %v2642, %v2642
      %v2779 = vmul.f32 %v2643, %v2643
      %v2780 = vmul.f32 %v2644, %v2644
      %v2781 = vmul.f32 %v2645, %v2645
      %v2782 = vmul.f32 %v2646, %v2646
      %v2783 = vmul.f32 %v2647, %v2647
      %v2784 = vmul.f32 %v2648, %v2648
      %v2785 = vmul.f32 %v2649, %v2649
      %v2786 = vmul.f32 %v2650, %v2650
      %v2787 = vmul.f32 %v2651, %v2651
      %v2788 = vmul.f32 %v2652, %v2652
      %v2789 = vmul.f32 %v2653, %v2653
      %v2790 = vmul.f32 %v2654, %v2654
      %v2791 = vmul.f32 %v2655, %v2655
      %v2792 = vmul.f32 %v2656, %v2656
      %v2793 = vmul.f32 %v2657, %v2657
      %v2794 = vmul.f32 %v2658, %v2658
      %v2795 = vmul.f32 %v2659, %v2659
      %v2796 = vmul.f32 %v2660, %v2660
      %v2797 = vmul.f32 %v2661, %v2661
      %v2798 = vmul.f32 %v2662, %v2662
      %v2799 = vmul.f32 %v2663, %v2663
      %v2800 = vsel %vm2664, %v2768, 0.0
      %v2801 = vsel %vm2664, %v2769, 0.0
      %v2802 = vadd.f32 %v2800, %v2801
      %v2803 = vsel %vm2664, %v2770, 0.0
      %v2804 = vadd.f32 %v2802, %v2803
      %v2805 = vsel %vm2664, %v2771, 0.0
      %v2806 = vadd.f32 %v2804, %v2805
      %v2807 = vsel %vm2664, %v2772, 0.0
      %v2808 = vadd.f32 %v2806, %v2807
      %v2809 = vsel %vm2664, %v2773, 0.0
      %v2810 = vadd.f32 %v2808, %v2809
      %v2811 = vsel %vm2664, %v2774, 0.0
      %v2812 = vadd.f32 %v2810, %v2811
      %v2813 = vsel %vm2664, %v2775, 0.0
      %v2814 = vadd.f32 %v2812, %v2813
      %v2815 = vsel %vm2664, %v2776, 0.0
      %v2816 = vadd.f32 %v2814, %v2815
      %v2817 = vsel %vm2664, %v2777, 0.0
      %v2818 = vadd.f32 %v2816, %v2817
      %v2819 = vsel %vm2664, %v2778, 0.0
      %v2820 = vadd.f32 %v2818, %v2819
      %v2821 = vsel %vm2664, %v2779, 0.0
      %v2822 = vadd.f32 %v2820, %v2821
      %v2823 = vsel %vm2664, %v2780, 0.0
      %v2824 = vadd.f32 %v2822, %v2823
      %v2825 = vsel %vm2664, %v2781, 0.0
      %v2826 = vadd.f32 %v2824, %v2825
      %v2827 = vsel %vm2664, %v2782, 0.0
      %v2828 = vadd.f32 %v2826, %v2827
      %v2829 = vsel %vm2664, %v2783, 0.0
      %v2830 = vadd.f32 %v2828, %v2829
      %v2831 = vsel %vm2664, %v2784, 0.0
      %v2832 = vadd.f32 %v2830, %v2831
      %v2833 = vsel %vm2664, %v2785, 0.0
      %v2834 = vadd.f32 %v2832, %v2833
      %v2835 = vsel %vm2664, %v2786, 0.0
      %v2836 = vadd.f32 %v2834, %v2835
      %v2837 = vsel %vm2664, %v2787, 0.0
      %v2838 = vadd.f32 %v2836, %v2837
      %v2839 = vsel %vm2664, %v2788, 0.0
      %v2840 = vadd.f32 %v2838, %v2839
      %v2841 = vsel %vm2664, %v2789, 0.0
      %v2842 = vadd.f32 %v2840, %v2841
      %v2843 = vsel %vm2664, %v2790, 0.0
      %v2844 = vadd.f32 %v2842, %v2843
      %v2845 = vsel %vm2664, %v2791, 0.0
      %v2846 = vadd.f32 %v2844, %v2845
      %v2847 = vsel %vm2664, %v2792, 0.0
      %v2848 = vadd.f32 %v2846, %v2847
      %v2849 = vsel %vm2664, %v2793, 0.0
      %v2850 = vadd.f32 %v2848, %v2849
      %v2851 = vsel %vm2664, %v2794, 0.0
      %v2852 = vadd.f32 %v2850, %v2851
      %v2853 = vsel %vm2664, %v2795, 0.0
      %v2854 = vadd.f32 %v2852, %v2853
      %v2855 = vsel %vm2664, %v2796, 0.0
      %v2856 = vadd.f32 %v2854, %v2855
      %v2857 = vsel %vm2664, %v2797, 0.0
      %v2858 = vadd.f32 %v2856, %v2857
      %v2859 = vsel %vm2664, %v2798, 0.0
      %v2860 = vadd.f32 %v2858, %v2859
      %v2861 = vsel %vm2664, %v2799, 0.0
      %v2862 = vadd.f32 %v2860, %v2861
      %v2863 = vrot.slane %v2862, 4
      %v2864 = vadd.f32 %v2862, %v2863
      %v2865 = vrot.slane %v2864, 2
      %v2866 = vadd.f32 %v2864, %v2865
      %v2867 = vrot.slane %v2866, 1
      %v2868 = vadd.f32 %v2866, %v2867
      %2869 = vst.msk [vmem:[%s241] sm:$0x1] %vm2766, %v2868
      %p2870 = scmp.lt.s32.totalorder %s17, 1
      %s2871 = scalar_select %p2870, %s17, 1
      %s2872 = smul.addr %s2871, 32
      %s2873 = smul.addr %s2872, 8
      %s2874 = scalar_lea.vmem %s3, %s2873
      %p2875 = scmp.lt.s32.totalorder %s17, 1
      %s2876 = scalar_select %p2875, %s17, 1
      %s2877 = scalar_lea.vmem %s4, %s2876
      %p2878 = scmp.lt.s32.totalorder %s17, 1
      %s2879 = scalar_select %p2878, %s17, 1
      %s2880 = scalar_lea.vmem %s5, %s2879
      // Predicated region
      $region33: #{cnn_encoder_forward.6} parent=31 // pred_check
        %p2881 = pneg %p103
      $region34: #{cnn_encoder_forward.6} parent=31 // pred_check_branch
        %2883 = sbr.rel (%p2881) target = $region36
      $region35: #{cnn_encoder_forward.6} parent=31 // pred_region
        _
      $region36: #{cnn_encoder_forward.6} parent=31 // pred_fallthru
        _
      // Predicated region
      $region37: #{cnn_encoder_forward.6} parent=31 // pred_check
        %p2884 = pneg %p129
      $region38: #{cnn_encoder_forward.6} parent=31 // pred_check_branch
        %2886 = sbr.rel (%p2884) target = $region40
      $region39: #{cnn_encoder_forward.6} parent=31 // pred_region
        _
      $region40: #{cnn_encoder_forward.6} parent=31 // pred_fallthru
        _
      // Predicated region
      $region41: #{cnn_encoder_forward.6} parent=31 // pred_check
        %p2887 = pneg %p155
      $region42: #{cnn_encoder_forward.6} parent=31 // pred_check_branch
        %2889 = sbr.rel (%p2887) target = $region44
      $region43: #{cnn_encoder_forward.6} parent=31 // pred_region
        _
      $region44: #{cnn_encoder_forward.6} parent=31 // pred_fallthru
        _
    $region32: #{cnn_encoder_forward.6} parent=5 // pred_fallthru
      _
    %p2890 = scmp.le.s32.totalorder 2, %s12
    // Predicated region
    $region45: #{cnn_encoder_forward.6} parent=5 // pred_check
      %p2891 = pneg %p2890
    $region46: #{cnn_encoder_forward.6} parent=5 // pred_check_branch
      %2893 = sbr.rel (%p2891) target = $region48
    $region47: #{cnn_encoder_forward.6} parent=5 // pred_region
      %s2894 = ssub.s32 %s12, 2
      // Predicated region
      $region49: #{cnn_encoder_forward.6} parent=47 // pred_check
        %p2895 = pneg %p109
      $region50: #{cnn_encoder_forward.6} parent=47 // pred_check_branch
        %2897 = sbr.rel (%p2895) target = $region52
      $region51: #{cnn_encoder_forward.6} parent=47 // pred_region
        %p2898 = scmp.lt.s32.totalorder %s18, 1
        %s2899 = scalar_select %p2898, %s18, 1
        %s2900 = smul.addr %s2899, 32
        %s2901 = smul.addr %s2900, 8
        %s2902 = scalar_lea.vmem %s3, %s2901
      $region52: #{cnn_encoder_forward.6} parent=47 // pred_fallthru
        _
      // Predicated region
      $region53: #{cnn_encoder_forward.6} parent=47 // pred_check
        %p2903 = pneg %p135
      $region54: #{cnn_encoder_forward.6} parent=47 // pred_check_branch
        %2905 = sbr.rel (%p2903) target = $region56
      $region55: #{cnn_encoder_forward.6} parent=47 // pred_region
        %p2906 = scmp.lt.s32.totalorder %s18, 1
        %s2907 = scalar_select %p2906, %s18, 1
        %s2908 = scalar_lea.vmem %s4, %s2907
      $region56: #{cnn_encoder_forward.6} parent=47 // pred_fallthru
        _
      // Predicated region
      $region57: #{cnn_encoder_forward.6} parent=47 // pred_check
        %p2909 = pneg %p161
      $region58: #{cnn_encoder_forward.6} parent=47 // pred_check_branch
        %2911 = sbr.rel (%p2909) target = $region60
      $region59: #{cnn_encoder_forward.6} parent=47 // pred_region
        %p2912 = scmp.lt.s32.totalorder %s18, 1
        %s2913 = scalar_select %p2912, %s18, 1
        %s2914 = scalar_lea.vmem %s5, %s2913
      $region60: #{cnn_encoder_forward.6} parent=47 // pred_fallthru
        _
    $region48: #{cnn_encoder_forward.6} parent=5 // pred_fallthru
      _
  $region6: #{cnn_encoder_forward.6} parent=0 // loop_footer
    %s16 = sadd.s32 1, %s12
  $region7: #{cnn_encoder_forward.6} parent=0 // loop_footer_branch
    %11 = sbr.rel target = $region3
  $region8: #{cnn_encoder_forward.6} parent=0 // loop_exit
    _

// kernel: cnn_encoder_forward.9
$region0: #{cnn_encoder_forward.9}
  #allocation0 [shape = 'u32[]', space=smem, size = 0x4, offset = 0x4, fixed_abs, tag = 'smem constant byte address 0x4 - core index']
  #allocation1 [shape = 'u32[144,128]{1,0:T(1,128)}', space=vmem, size = 0x12000, scoped, tag = 'internal scratch']
  %s0 = inlined_call_operand.vmem [shape: f32[16,512], index: 0, kind: input, shape index: {}]
  %s1 = inlined_call_operand.vmem [shape: f32[1,512], index: 1, kind: input, shape index: {}]
  %s2 = inlined_call_operand.vmem [shape: f32[1,512], index: 2, kind: input, shape index: {}]
  %s3 = inlined_call_operand.vmem [shape: f32[16,512], index: 3, kind: output, shape index: {}]
  %s4 = sld [smem:[#allocation0]]
  $region22: #{cnn_encoder_forward.9} parent=0
    _
  %s6 = ssub.s32 1, %s4
  %s7 = scalar_select 0, %s6, %s4
  // Predicated region
  $region2: #{cnn_encoder_forward.9} parent=0 // pred_check
    _
  $region3: #{cnn_encoder_forward.9} parent=0 // pred_check_branch
    %9 = sbr.rel (0) target = $region5
  $region4: #{cnn_encoder_forward.9} parent=0 // pred_region
    _
  $region5: #{cnn_encoder_forward.9} parent=0 // pred_fallthru
    _
  // Predicated region
  $region6: #{cnn_encoder_forward.9} parent=0 // pred_check
    _
  $region7: #{cnn_encoder_forward.9} parent=0 // pred_check_branch
    %11 = sbr.rel (0) target = $region9
  $region8: #{cnn_encoder_forward.9} parent=0 // pred_region
    _
  $region9: #{cnn_encoder_forward.9} parent=0 // pred_fallthru
    _
  // Predicated region
  $region10: #{cnn_encoder_forward.9} parent=0 // pred_check
    _
  $region11: #{cnn_encoder_forward.9} parent=0 // pred_check_branch
    %13 = sbr.rel (0) target = $region13
  $region12: #{cnn_encoder_forward.9} parent=0 // pred_region
    _
  $region13: #{cnn_encoder_forward.9} parent=0 // pred_fallthru
    _
  %v14 = vld [vmem:[%s0] sm:$0xff]
  %v15 = vld [vmem:[%s0 + $0x8] sm:$0xff]
  %v16 = vld [vmem:[%s0 + $0x10] sm:$0xff]
  %v17 = vld [vmem:[%s0 + $0x18] sm:$0xff]
  %v18 = vld [vmem:[%s0 + $0x20] sm:$0xff]
  %v19 = vld [vmem:[%s0 + $0x28] sm:$0xff]
  %v20 = vld [vmem:[%s0 + $0x30] sm:$0xff]
  %v21 = vld [vmem:[%s0 + $0x38] sm:$0xff]
  %v22 = vld [vmem:[%s1] sm:$0xf]
  %v24 = vlaneseq
  %v25 = vshrl.u32 %v24, 7
  %v26 = vsub.s32 0, %v25
  %v27 = vrot.slane %v22, %v26
  %v28 = vlaneseq
  %v29 = vshrl.u32 %v28, 7
  %v30 = vsub.s32 1, %v29
  %v31 = vrot.slane %v22, %v30
  %v32 = vlaneseq
  %v33 = vshrl.u32 %v32, 7
  %v34 = vsub.s32 2, %v33
  %v35 = vrot.slane %v22, %v34
  %v36 = vlaneseq
  %v37 = vshrl.u32 %v36, 7
  %v38 = vsub.s32 3, %v37
  %v39 = vrot.slane %v22, %v38
  %v44 = vmul.f32 %v14, %v27
  %v45 = vmul.f32 %v15, %v31
  %v46 = vmul.f32 %v16, %v35
  %v47 = vmul.f32 %v17, %v39
  %v48 = vmul.f32 %v18, %v27
  %v49 = vmul.f32 %v19, %v31
  %v50 = vmul.f32 %v20, %v35
  %v51 = vmul.f32 %v21, %v39
  %v52 = vld [vmem:[%s2] sm:$0xf]
  %v54 = vlaneseq
  %v55 = vshrl.u32 %v54, 7
  %v56 = vsub.s32 0, %v55
  %v57 = vrot.slane %v52, %v56
  %v58 = vlaneseq
  %v59 = vshrl.u32 %v58, 7
  %v60 = vsub.s32 1, %v59
  %v61 = vrot.slane %v52, %v60
  %v62 = vlaneseq
  %v63 = vshrl.u32 %v62, 7
  %v64 = vsub.s32 2, %v63
  %v65 = vrot.slane %v52, %v64
  %v66 = vlaneseq
  %v67 = vshrl.u32 %v66, 7
  %v68 = vsub.s32 3, %v67
  %v69 = vrot.slane %v52, %v68
  %v74 = vadd.f32 %v44, %v57
  %v75 = vadd.f32 %v45, %v61
  %v76 = vadd.f32 %v46, %v65
  %v77 = vadd.f32 %v47, %v69
  %v78 = vadd.f32 %v48, %v57
  %v79 = vadd.f32 %v49, %v61
  %v80 = vadd.f32 %v50, %v65
  %v81 = vadd.f32 %v51, %v69
  %82 = vst [vmem:[%s3] sm:$0xff] %v74
  %83 = vst [vmem:[%s3 + $0x8] sm:$0xff] %v75
  %84 = vst [vmem:[%s3 + $0x10] sm:$0xff] %v76
  %85 = vst [vmem:[%s3 + $0x18] sm:$0xff] %v77
  %86 = vst [vmem:[%s3 + $0x20] sm:$0xff] %v78
  %87 = vst [vmem:[%s3 + $0x28] sm:$0xff] %v79
  %88 = vst [vmem:[%s3 + $0x30] sm:$0xff] %v80
  %89 = vst [vmem:[%s3 + $0x38] sm:$0xff] %v81
  // Predicated region
  $region14: #{cnn_encoder_forward.9} parent=0 // pred_check
    _
  $region15: #{cnn_encoder_forward.9} parent=0 // pred_check_branch
    %91 = sbr.rel (0) target = $region17
  $region16: #{cnn_encoder_forward.9} parent=0 // pred_region
    _
  $region17: #{cnn_encoder_forward.9} parent=0 // pred_fallthru
    _
  // Predicated region
  $region18: #{cnn_encoder_forward.9} parent=0 // pred_check
    _
  $region19: #{cnn_encoder_forward.9} parent=0 // pred_check_branch
    %93 = sbr.rel (0) target = $region21
  $region20: #{cnn_encoder_forward.9} parent=0 // pred_region
    _
  $region21: #{cnn_encoder_forward.9} parent=0 // pred_fallthru
    _

// kernel: cnn_encoder_forward.8
$region0: #{cnn_encoder_forward.8}
  #allocation0 [shape = 'u32[]', space=smem, size = 0x4, offset = 0x4, fixed_abs, tag = 'smem constant byte address 0x4 - core index']
  #allocation1 [shape = 'u32[144,128]{1,0:T(1,128)}', space=vmem, size = 0x12000, scoped, tag = 'internal scratch']
  %s0 = inlined_call_operand.vmem [shape: f32[2,4,9,9,32], index: 0, kind: input, shape index: {}]
  %s1 = inlined_call_operand.vmem [shape: bf16[288,64], index: 1, kind: input, shape index: {}]
  %s2 = inlined_call_operand.vmem [shape: f32[1,64], index: 2, kind: input, shape index: {}]
  %s3 = inlined_call_operand.vmem [shape: f32[2,64,64], index: 3, kind: output, shape index: {0}]
  %s4 = inlined_call_operand.vmem [shape: f32[2,1,64], index: 4, kind: output, shape index: {1}]
  %s5 = inlined_call_operand.vmem [shape: f32[2,1,64], index: 5, kind: output, shape index: {2}]
  %6 = xla_tuple %s3, %s4, %s5
  %s7 = sld [smem:[#allocation0]]
  $region61: #{cnn_encoder_forward.8} parent=0
    _
  %s9 = ssub.s32 1, %s7
  %s10 = scalar_select 0, %s9, %s7
  loop: start=0, step=1, limit=4
  $region2: #{cnn_encoder_forward.8} parent=0 // loop_pre_header
    _
  $region3: #{cnn_encoder_forward.8} parent=0 // loop_header
    %s12 = sphi 0, %s16
    %p13 = scmp.ge.s32.totalorder %s12, 4
    %s22 = sphi 0, %s24
    %s25 = sphi 0, %s22
    %s26 = sphi 0, %s25
    %s42 = sphi 0, %s26
    %s46 = sphi 0, %s46
    %s48 = sphi 0, %s46
    %s49 = sphi 0, %s48
    %s63 = sphi 0, %s49
    %s67 = sphi 0, %s67
    %s69 = sphi 0, %s67
    %s70 = sphi 0, %s69
    %s84 = sphi 0, %s70
    %s90 = sphi 0, %s92
    %s93 = sphi 0, %s90
    %s94 = sphi 0, %s93
    %s110 = sphi 0, %s94
    %s116 = sphi 0, %s118
    %s119 = sphi 0, %s116
    %s120 = sphi 0, %s119
    %s136 = sphi 0, %s120
    %s142 = sphi 0, %s144
    %s145 = sphi 0, %s142
    %s146 = sphi 0, %s145
    %s162 = sphi 0, %s146
  $region4: #{cnn_encoder_forward.8} parent=0 // loop_header_branch
    %15 = sbr.rel (%p13) target = $region8
  $region5: #{cnn_encoder_forward.8} parent=0 // loop_body
    %s17 = ssub.s32 %s12, 1
    %s18 = ssub.s32 %s12, 2
    %s19 = sadd.s32 %s12, 1
    %s20 = ssub.s32 %s12, %s19
    %p21 = scmp.eq.s32.totalorder %s20, 0
    %s23 = sadd.s32 %s22, 1
    %s24 = scalar_select %p21, %s22, %s23
    %p27 = pneg %p21
    %p28 = scmp.eq.s32.totalorder %s12, 1
    %p29 = por %p27, %p28
    %p30 = scmp.ne.s32.totalorder %s22, %s25
    %p31 = scmp.eq.s32.totalorder %s12, 0
    %p32 = por %p30, %p31
    %p33 = scmp.ne.s32.totalorder %s22, %s25
    %p34 = scmp.eq.s32.totalorder %s17, 1
    %p35 = por %p33, %p34
    %p36 = scmp.ne.s32.totalorder %s25, %s26
    %p37 = scmp.eq.s32.totalorder %s17, 0
    %p38 = por %p36, %p37
    %p39 = scmp.ne.s32.totalorder %s25, %s26
    %p40 = scmp.eq.s32.totalorder %s18, 1
    %p41 = por %p39, %p40
    %p43 = scmp.ne.s32.totalorder %s26, %s42
    %p44 = scmp.eq.s32.totalorder %s18, 0
    %p45 = por %p43, %p44
    %s47 = sadd.s32 %s46, 1
    %p50 = scmp.eq.s32.totalorder %s12, 1
    %p51 = scmp.ne.s32.totalorder %s46, %s48
    %p52 = scmp.eq.s32.totalorder %s12, 0
    %p53 = por %p51, %p52
    %p54 = scmp.ne.s32.totalorder %s46, %s48
    %p55 = scmp.eq.s32.totalorder %s17, 1
    %p56 = por %p54, %p55
    %p57 = scmp.ne.s32.totalorder %s48, %s49
    %p58 = scmp.eq.s32.totalorder %s17, 0
    %p59 = por %p57, %p58
    %p60 = scmp.ne.s32.totalorder %s48, %s49
    %p61 = scmp.eq.s32.totalorder %s18, 1
    %p62 = por %p60, %p61
    %p64 = scmp.ne.s32.totalorder %s49, %s63
    %p65 = scmp.eq.s32.totalorder %s18, 0
    %p66 = por %p64, %p65
    %s68 = sadd.s32 %s67, 1
    %p71 = scmp.eq.s32.totalorder %s12, 1
    %p72 = scmp.ne.s32.totalorder %s67, %s69
    %p73 = scmp.eq.s32.totalorder %s12, 0
    %p74 = por %p72, %p73
    %p75 = scmp.ne.s32.totalorder %s67, %s69
    %p76 = scmp.eq.s32.totalorder %s17, 1
    %p77 = por %p75, %p76
    %p78 = scmp.ne.s32.totalorder %s69, %s70
    %p79 = scmp.eq.s32.totalorder %s17, 0
    %p80 = por %p78, %p79
    %p81 = scmp.ne.s32.totalorder %s69, %s70
    %p82 = scmp.eq.s32.totalorder %s18, 1
    %p83 = por %p81, %p82
    %p85 = scmp.ne.s32.totalorder %s70, %s84
    %p86 = scmp.eq.s32.totalorder %s18, 0
    %p87 = por %p85, %p86
    %s88 = ssub.s32 %s12, %s19
    %p89 = scmp.eq.s32.totalorder %s88, 0
    %s91 = sadd.s32 %s90, 1
    %s92 = scalar_select %p89, %s90, %s91
    %p95 = pneg %p89
    %p96 = scmp.eq.s32.totalorder %s12, 1
    %p97 = por %p95, %p96
    %p98 = scmp.ne.s32.totalorder %s90, %s93
    %p99 = scmp.eq.s32.totalorder %s12, 0
    %p100 = por %p98, %p99
    %p101 = scmp.ne.s32.totalorder %s90, %s93
    %p102 = scmp.eq.s32.totalorder %s17, 1
    %p103 = por %p101, %p102
    %p104 = scmp.ne.s32.totalorder %s93, %s94
    %p105 = scmp.eq.s32.totalorder %s17, 0
    %p106 = por %p104, %p105
    %p107 = scmp.ne.s32.totalorder %s93, %s94
    %p108 = scmp.eq.s32.totalorder %s18, 1
    %p109 = por %p107, %p108
    %p111 = scmp.ne.s32.totalorder %s94, %s110
    %p112 = scmp.eq.s32.totalorder %s18, 0
    %p113 = por %p111, %p112
    %s114 = ssub.s32 %s12, %s19
    %p115 = scmp.eq.s32.totalorder %s114, 0
    %s117 = sadd.s32 %s116, 1
    %s118 = scalar_select %p115, %s116, %s117
    %p121 = pneg %p115
    %p122 = scmp.eq.s32.totalorder %s12, 1
    %p123 = por %p121, %p122
    %p124 = scmp.ne.s32.totalorder %s116, %s119
    %p125 = scmp.eq.s32.totalorder %s12, 0
    %p126 = por %p124, %p125
    %p127 = scmp.ne.s32.totalorder %s116, %s119
    %p128 = scmp.eq.s32.totalorder %s17, 1
    %p129 = por %p127, %p128
    %p130 = scmp.ne.s32.totalorder %s119, %s120
    %p131 = scmp.eq.s32.totalorder %s17, 0
    %p132 = por %p130, %p131
    %p133 = scmp.ne.s32.totalorder %s119, %s120
    %p134 = scmp.eq.s32.totalorder %s18, 1
    %p135 = por %p133, %p134
    %p137 = scmp.ne.s32.totalorder %s120, %s136
    %p138 = scmp.eq.s32.totalorder %s18, 0
    %p139 = por %p137, %p138
    %s140 = ssub.s32 %s12, %s19
    %p141 = scmp.eq.s32.totalorder %s140, 0
    %s143 = sadd.s32 %s142, 1
    %s144 = scalar_select %p141, %s142, %s143
    %p147 = pneg %p141
    %p148 = scmp.eq.s32.totalorder %s12, 1
    %p149 = por %p147, %p148
    %p150 = scmp.ne.s32.totalorder %s142, %s145
    %p151 = scmp.eq.s32.totalorder %s12, 0
    %p152 = por %p150, %p151
    %p153 = scmp.ne.s32.totalorder %s142, %s145
    %p154 = scmp.eq.s32.totalorder %s17, 1
    %p155 = por %p153, %p154
    %p156 = scmp.ne.s32.totalorder %s145, %s146
    %p157 = scmp.eq.s32.totalorder %s17, 0
    %p158 = por %p156, %p157
    %p159 = scmp.ne.s32.totalorder %s145, %s146
    %p160 = scmp.eq.s32.totalorder %s18, 1
    %p161 = por %p159, %p160
    %p163 = scmp.ne.s32.totalorder %s146, %s162
    %p164 = scmp.eq.s32.totalorder %s18, 0
    %p165 = por %p163, %p164
    %p166 = scmp.le.s32.totalorder 1, %s12
    %p167 = scmp.lt.s32.totalorder %s12, 3
    %p168 = pnand %p166, %p167
    %p169 = pneg %p168
    // Predicated region
    $region9: #{cnn_encoder_forward.8} parent=5 // pred_check
      _
    $region10: #{cnn_encoder_forward.8} parent=5 // pred_check_branch
      %171 = sbr.rel (%p168) target = $region12
    $region11: #{cnn_encoder_forward.8} parent=5 // pred_region
      %s172 = ssub.s32 %s12, 1
      // Predicated region
      $region13: #{cnn_encoder_forward.8} parent=11 // pred_check
        %p173 = pneg %p59
      $region14: #{cnn_encoder_forward.8} parent=11 // pred_check_branch
        %175 = sbr.rel (%p173) target = $region16
      $region15: #{cnn_encoder_forward.8} parent=11 // pred_region
        _
      $region16: #{cnn_encoder_forward.8} parent=11 // pred_fallthru
        _
      // Predicated region
      $region17: #{cnn_encoder_forward.8} parent=11 // pred_check
        %p176 = pneg %p80
      $region18: #{cnn_encoder_forward.8} parent=11 // pred_check_branch
        %178 = sbr.rel (%p176) target = $region20
      $region19: #{cnn_encoder_forward.8} parent=11 // pred_region
        _
      $region20: #{cnn_encoder_forward.8} parent=11 // pred_fallthru
        _
    $region12: #{cnn_encoder_forward.8} parent=5 // pred_fallthru
      _
    %p179 = scmp.lt.s32.totalorder %s12, 2
    // Predicated region
    $region21: #{cnn_encoder_forward.8} parent=5 // pred_check
      %p180 = pneg %p179
    $region22: #{cnn_encoder_forward.8} parent=5 // pred_check_branch
      %182 = sbr.rel (%p180) target = $region24
    $region23: #{cnn_encoder_forward.8} parent=5 // pred_region
      // Predicated region
      $region25: #{cnn_encoder_forward.8} parent=23 // pred_check
        %p183 = pneg %p32
      $region26: #{cnn_encoder_forward.8} parent=23 // pred_check_branch
        %185 = sbr.rel (%p183) target = $region28
      $region27: #{cnn_encoder_forward.8} parent=23 // pred_region
        %p186 = scmp.lt.s32.totalorder %s12, 1
        %s187 = scalar_select %p186, %s12, 1
        %s188 = smul.addr %s187, 72
        %s189 = smul.addr %s188, 8
        %s190 = scalar_lea.vmem %s0, %s189
      $region28: #{cnn_encoder_forward.8} parent=23 // pred_fallthru
        _
    $region24: #{cnn_encoder_forward.8} parent=5 // pred_fallthru
      _
    %p191 = scmp.le.s32.totalorder 1, %s12
    %p192 = scmp.lt.s32.totalorder %s12, 3
    %p193 = pnand %p191, %p192
    %p194 = pneg %p193
    // Predicated region
    $region29: #{cnn_encoder_forward.8} parent=5 // pred_check
      _
    $region30: #{cnn_encoder_forward.8} parent=5 // pred_check_branch
      %196 = sbr.rel (%p193) target = $region32
    $region31: #{cnn_encoder_forward.8} parent=5 // pred_region
      %s197 = ssub.s32 %s12, 1
      %p198 = scmp.lt.s32.totalorder %s17, 1
      %s199 = scalar_select %p198, %s17, 1
      %s200 = smul.addr %s199, 72
      %s201 = smul.addr %s200, 8
      %s202 = scalar_lea.vmem %s0, %s201
      %p203 = pneg %p38
      %p204 = pneg %p35
      %p205 = pneg %p59
      %p206 = pneg %p56
      %p207 = pneg %p80
      %p208 = pneg %p77
      %p209 = pneg %p106
      %p210 = pneg %p103
      %p211 = scmp.lt.s32.totalorder %s17, 1
      %s212 = scalar_select %p211, %s17, 1
      %s213 = smul.addr %s212, 8
      %s214 = smul.addr %s213, 8
      %s215 = scalar_lea.vmem %s3, %s214
      %p216 = pneg %p132
      %p217 = pneg %p129
      %p218 = scmp.lt.s32.totalorder %s17, 1
      %s219 = scalar_select %p218, %s17, 1
      %s220 = scalar_lea.vmem %s4, %s219
      %p221 = pneg %p158
      %p222 = pneg %p155
      %p223 = scmp.lt.s32.totalorder %s17, 1
      %s224 = scalar_select %p223, %s17, 1
      %s225 = scalar_lea.vmem %s5, %s224
      %p226 = scmp.lt.s32.totalorder %s17, 1
      %s227 = scalar_select %p226, %s17, 1
      %s228 = smul.addr %s227, 72
      %s229 = smul.addr %s228, 8
      %s230 = scalar_lea.vmem %s0, %s229
      %p231 = scmp.lt.s32.totalorder %s17, 1
      %s232 = scalar_select %p231, %s17, 1
      %s233 = smul.addr %s232, 8
      %s234 = smul.addr %s233, 8
      %s235 = scalar_lea.vmem %s3, %s234
      %p236 = scmp.lt.s32.totalorder %s17, 1
      %s237 = scalar_select %p236, %s17, 1
      %s238 = scalar_lea.vmem %s4, %s237
      %p239 = scmp.lt.s32.totalorder %s17, 1
      %s240 = scalar_select %p239, %s17, 1
      %s241 = scalar_lea.vmem %s5, %s240
      %v243 = vld [vmem:[%s230] sm:$0xff]
      %v244 = vld [vmem:[%s230 + $0x10] sm:$0xff]
      %v245 = vld [vmem:[%s230 + $0x20] sm:$0xff]
      %v246 = vld [vmem:[%s230 + $0x30] sm:$0xff]
      %v247 = vld [vmem:[%s230 + $0x40] sm:$0xff]
      %v248 = vld [vmem:[%s230 + $0x50] sm:$0xff]
      %v249 = vld [vmem:[%s230 + $0x60] sm:$0xff]
      %v250 = vld [vmem:[%s230 + $0x70] sm:$0xff]
      %s251 = scalar_lea.vmem %s230, 144
      %v252 = vld [vmem:[%s251] sm:$0xff]
      %v253 = vld [vmem:[%s251 + $0x10] sm:$0xff]
      %v254 = vld [vmem:[%s251 + $0x20] sm:$0xff]
      %v255 = vld [vmem:[%s251 + $0x30] sm:$0xff]
      %v256 = vld [vmem:[%s251 + $0x40] sm:$0xff]
      %v257 = vld [vmem:[%s251 + $0x50] sm:$0xff]
      %v258 = vld [vmem:[%s251 + $0x60] sm:$0xff]
      %v259 = vld [vmem:[%s251 + $0x70] sm:$0xff]
      %v260 = vld [vmem:[%s230 + $0x1] sm:$0xff]
      %v261 = vld [vmem:[%s230 + $0x11] sm:$0xff]
      %v262 = vld [vmem:[%s230 + $0x21] sm:$0xff]
      %v263 = vld [vmem:[%s230 + $0x31] sm:$0xff]
      %v264 = vld [vmem:[%s230 + $0x41] sm:$0xff]
      %v265 = vld [vmem:[%s230 + $0x51] sm:$0xff]
      %v266 = vld [vmem:[%s230 + $0x61] sm:$0xff]
      %v267 = vld [vmem:[%s230 + $0x71] sm:$0xff]
      %s268 = scalar_lea.vmem %s230, 288
      %v269 = vld [vmem:[%s268] sm:$0xff]
      %v270 = vld [vmem:[%s268 + $0x10] sm:$0xff]
      %v271 = vld [vmem:[%s268 + $0x20] sm:$0xff]
      %v272 = vld [vmem:[%s268 + $0x30] sm:$0xff]
      %v273 = vld [vmem:[%s268 + $0x40] sm:$0xff]
      %v274 = vld [vmem:[%s268 + $0x50] sm:$0xff]
      %v275 = vld [vmem:[%s268 + $0x60] sm:$0xff]
      %v276 = vld [vmem:[%s268 + $0x70] sm:$0xff]
      %s277 = scalar_lea.vmem %s230, 432
      %v278 = vld [vmem:[%s277] sm:$0xff]
      %v279 = vld [vmem:[%s277 + $0x10] sm:$0xff]
      %v280 = vld [vmem:[%s277 + $0x20] sm:$0xff]
      %v281 = vld [vmem:[%s277 + $0x30] sm:$0xff]
      %v282 = vld [vmem:[%s277 + $0x40] sm:$0xff]
      %v283 = vld [vmem:[%s277 + $0x50] sm:$0xff]
      %v284 = vld [vmem:[%s277 + $0x60] sm:$0xff]
      %v285 = vld [vmem:[%s277 + $0x70] sm:$0xff]
      %v286 = vld [vmem:[%s268 + $0x1] sm:$0xff]
      %v287 = vld [vmem:[%s268 + $0x11] sm:$0xff]
      %v288 = vld [vmem:[%s268 + $0x21] sm:$0xff]
      %v289 = vld [vmem:[%s268 + $0x31] sm:$0xff]
      %v290 = vld [vmem:[%s268 + $0x41] sm:$0xff]
      %v291 = vld [vmem:[%s268 + $0x51] sm:$0xff]
      %v292 = vld [vmem:[%s268 + $0x61] sm:$0xff]
      %v293 = vld [vmem:[%s268 + $0x71] sm:$0xff]
      %s294 = scalar_lea.vmem %s230, 16
      %v295 = vld [vmem:[%s294] sm:$0xff]
      %v296 = vld [vmem:[%s294 + $0x10] sm:$0xff]
      %v297 = vld [vmem:[%s294 + $0x20] sm:$0xff]
      %v298 = vld [vmem:[%s294 + $0x30] sm:$0xff]
      %v299 = vld [vmem:[%s294 + $0x40] sm:$0xff]
      %v300 = vld [vmem:[%s294 + $0x50] sm:$0xff]
      %v301 = vld [vmem:[%s294 + $0x60] sm:$0xff]
      %v302 = vld [vmem:[%s294 + $0x70] sm:$0xff]
      %s303 = scalar_lea.vmem %s230, 160
      %v304 = vld [vmem:[%s303] sm:$0xff]
      %v305 = vld [vmem:[%s303 + $0x10] sm:$0xff]
      %v306 = vld [vmem:[%s303 + $0x20] sm:$0xff]
      %v307 = vld [vmem:[%s303 + $0x30] sm:$0xff]
      %v308 = vld [vmem:[%s303 + $0x40] sm:$0xff]
      %v309 = vld [vmem:[%s303 + $0x50] sm:$0xff]
      %v310 = vld [vmem:[%s303 + $0x60] sm:$0xff]
      %v311 = vld [vmem:[%s303 + $0x70] sm:$0xff]
      %v312 = vld [vmem:[%s294 + $0x1] sm:$0xff]
      %v313 = vld [vmem:[%s294 + $0x11] sm:$0xff]
      %v314 = vld [vmem:[%s294 + $0x21] sm:$0xff]
      %v315 = vld [vmem:[%s294 + $0x31] sm:$0xff]
      %v316 = vld [vmem:[%s294 + $0x41] sm:$0xff]
      %v317 = vld [vmem:[%s294 + $0x51] sm:$0xff]
      %v318 = vld [vmem:[%s294 + $0x61] sm:$0xff]
      %v319 = vld [vmem:[%s294 + $0x71] sm:$0xff]
      %328 = vrot.lane.b32.xlu0 %v252, 32
      %v329 = vpop.permute.xlu0 %328
      %330 = vrot.lane.b32.xlu0 %v253, 32
      %v331 = vpop.permute.xlu0 %330
      %332 = vrot.lane.b32.xlu0 %v254, 32
      %v333 = vpop.permute.xlu0 %332
      %334 = vrot.lane.b32.xlu0 %v255, 32
      %v335 = vpop.permute.xlu0 %334
      %336 = vrot.lane.b32.xlu0 %v256, 32
      %v337 = vpop.permute.xlu0 %336
      %338 = vrot.lane.b32.xlu0 %v257, 32
      %v339 = vpop.permute.xlu0 %338
      %340 = vrot.lane.b32.xlu0 %v258, 32
      %v341 = vpop.permute.xlu0 %340
      %342 = vrot.lane.b32.xlu0 %v259, 32
      %v343 = vpop.permute.xlu0 %342
      %360 = vrot.lane.b32.xlu0 %v260, 64
      %v361 = vpop.permute.xlu0 %360
      %362 = vrot.lane.b32.xlu0 %v261, 64
      %v363 = vpop.permute.xlu0 %362
      %364 = vrot.lane.b32.xlu0 %v262, 64
      %v365 = vpop.permute.xlu0 %364
      %366 = vrot.lane.b32.xlu0 %v263, 64
      %v367 = vpop.permute.xlu0 %366
      %368 = vrot.lane.b32.xlu0 %v264, 64
      %v369 = vpop.permute.xlu0 %368
      %370 = vrot.lane.b32.xlu0 %v265, 64
      %v371 = vpop.permute.xlu0 %370
      %372 = vrot.lane.b32.xlu0 %v266, 64
      %v373 = vpop.permute.xlu0 %372
      %374 = vrot.lane.b32.xlu0 %v267, 64
      %v375 = vpop.permute.xlu0 %374
      %392 = vrot.lane.b32.xlu0 %v269, 96
      %v393 = vpop.permute.xlu0 %392
      %394 = vrot.lane.b32.xlu0 %v270, 96
      %v395 = vpop.permute.xlu0 %394
      %396 = vrot.lane.b32.xlu0 %v271, 96
      %v397 = vpop.permute.xlu0 %396
      %398 = vrot.lane.b32.xlu0 %v272, 96
      %v399 = vpop.permute.xlu0 %398
      %400 = vrot.lane.b32.xlu0 %v273, 96
      %v401 = vpop.permute.xlu0 %400
      %402 = vrot.lane.b32.xlu0 %v274, 96
      %v403 = vpop.permute.xlu0 %402
      %404 = vrot.lane.b32.xlu0 %v275, 96
      %v405 = vpop.permute.xlu0 %404
      %406 = vrot.lane.b32.xlu0 %v276, 96
      %v407 = vpop.permute.xlu0 %406
      %424 = vrot.lane.b32.xlu0 %v286, 32
      %v425 = vpop.permute.xlu0 %424
      %426 = vrot.lane.b32.xlu0 %v287, 32
      %v427 = vpop.permute.xlu0 %426
      %428 = vrot.lane.b32.xlu0 %v288, 32
      %v429 = vpop.permute.xlu0 %428
      %430 = vrot.lane.b32.xlu0 %v289, 32
      %v431 = vpop.permute.xlu0 %430
      %432 = vrot.lane.b32.xlu0 %v290, 32
      %v433 = vpop.permute.xlu0 %432
      %434 = vrot.lane.b32.xlu0 %v291, 32
      %v435 = vpop.permute.xlu0 %434
      %436 = vrot.lane.b32.xlu0 %v292, 32
      %v437 = vpop.permute.xlu0 %436
      %438 = vrot.lane.b32.xlu0 %v293, 32
      %v439 = vpop.permute.xlu0 %438
      %456 = vrot.lane.b32.xlu0 %v295, 64
      %v457 = vpop.permute.xlu0 %456
      %458 = vrot.lane.b32.xlu0 %v296, 64
      %v459 = vpop.permute.xlu0 %458
      %460 = vrot.lane.b32.xlu0 %v297, 64
      %v461 = vpop.permute.xlu0 %460
      %462 = vrot.lane.b32.xlu0 %v298, 64
      %v463 = vpop.permute.xlu0 %462
      %464 = vrot.lane.b32.xlu0 %v299, 64
      %v465 = vpop.permute.xlu0 %464
      %466 = vrot.lane.b32.xlu0 %v300, 64
      %v467 = vpop.permute.xlu0 %466
      %468 = vrot.lane.b32.xlu0 %v301, 64
      %v469 = vpop.permute.xlu0 %468
      %470 = vrot.lane.b32.xlu0 %v302, 64
      %v471 = vpop.permute.xlu0 %470
      %488 = vrot.lane.b32.xlu0 %v304, 96
      %v489 = vpop.permute.xlu0 %488
      %490 = vrot.lane.b32.xlu0 %v305, 96
      %v491 = vpop.permute.xlu0 %490
      %492 = vrot.lane.b32.xlu0 %v306, 96
      %v493 = vpop.permute.xlu0 %492
      %494 = vrot.lane.b32.xlu0 %v307, 96
      %v495 = vpop.permute.xlu0 %494
      %496 = vrot.lane.b32.xlu0 %v308, 96
      %v497 = vpop.permute.xlu0 %496
      %498 = vrot.lane.b32.xlu0 %v309, 96
      %v499 = vpop.permute.xlu0 %498
      %500 = vrot.lane.b32.xlu0 %v310, 96
      %v501 = vpop.permute.xlu0 %500
      %502 = vrot.lane.b32.xlu0 %v311, 96
      %v503 = vpop.permute.xlu0 %502
      %vm512 = vcmask 261120
      %v513 = vsel %vm512, %v243, %v329
      %v514 = vsel %vm512, %v244, %v331
      %v515 = vsel %vm512, %v245, %v333
      %v516 = vsel %vm512, %v246, %v335
      %v517 = vsel %vm512, %v247, %v337
      %v518 = vsel %vm512, %v248, %v339
      %v519 = vsel %vm512, %v249, %v341
      %v520 = vsel %vm512, %v250, %v343
      %vm521 = vcmask 523264
      %v522 = vsel %vm521, %v513, %v361
      %v523 = vsel %vm521, %v514, %v363
      %v524 = vsel %vm521, %v515, %v365
      %v525 = vsel %vm521, %v516, %v367
      %v526 = vsel %vm521, %v517, %v369
      %v527 = vsel %vm521, %v518, %v371
      %v528 = vsel %vm521, %v519, %v373
      %v529 = vsel %vm521, %v520, %v375
      %vm530 = vcmask 785408
      %v531 = vsel %vm530, %v522, %v393
      %v532 = vsel %vm530, %v523, %v395
      %v533 = vsel %vm530, %v524, %v397
      %v534 = vsel %vm530, %v525, %v399
      %v535 = vsel %vm530, %v526, %v401
      %v536 = vsel %vm530, %v527, %v403
      %v537 = vsel %vm530, %v528, %v405
      %v538 = vsel %vm530, %v529, %v407
      %v539 = vsel %vm512, %v278, %v425
      %v540 = vsel %vm512, %v279, %v427
      %v541 = vsel %vm512, %v280, %v429
      %v542 = vsel %vm512, %v281, %v431
      %v543 = vsel %vm512, %v282, %v433
      %v544 = vsel %vm512, %v283, %v435
      %v545 = vsel %vm512, %v284, %v437
      %v546 = vsel %vm512, %v285, %v439
      %v547 = vsel %vm521, %v539, %v457
      %v548 = vsel %vm521, %v540, %v459
      %v549 = vsel %vm521, %v541, %v461
      %v550 = vsel %vm521, %v542, %v463
      %v551 = vsel %vm521, %v543, %v465
      %v552 = vsel %vm521, %v544, %v467
      %v553 = vsel %vm521, %v545, %v469
      %v554 = vsel %vm521, %v546, %v471
      %v555 = vsel %vm530, %v547, %v489
      %v556 = vsel %vm530, %v548, %v491
      %v557 = vsel %vm530, %v549, %v493
      %v558 = vsel %vm530, %v550, %v495
      %v559 = vsel %vm530, %v551, %v497
      %v560 = vsel %vm530, %v552, %v499
      %v561 = vsel %vm530, %v553, %v501
      %v562 = vsel %vm530, %v554, %v503
      %v563 = vpack.c.bf16 %v532, %v531
      %v564 = vpack.c.bf16 %v556, %v555
      %v565 = vpack.c.bf16 %v313, %v312
      %v566 = vpack.c.bf16 %v534, %v533
      %v567 = vpack.c.bf16 %v558, %v557
      %v568 = vpack.c.bf16 %v315, %v314
      %v569 = vpack.c.bf16 %v536, %v535
      %v570 = vpack.c.bf16 %v560, %v559
      %v571 = vpack.c.bf16 %v317, %v316
      %v572 = vpack.c.bf16 %v538, %v537
      %v573 = vpack.c.bf16 %v562, %v561
      %v574 = vpack.c.bf16 %v319, %v318
      %v575 = vld [vmem:[%s1] sm:$0xf]
      %v576 = vld [vmem:[%s1 + $0x4] sm:$0xf]
      %v577 = vld [vmem:[%s1 + $0x8] sm:$0xf]
      %v578 = vld [vmem:[%s1 + $0xc] sm:$0xf]
      %v579 = vld [vmem:[%s1 + $0x10] sm:$0xf]
      %v580 = vld [vmem:[%s1 + $0x14] sm:$0xf]
      %v581 = vld [vmem:[%s1 + $0x18] sm:$0xf]
      %v582 = vld [vmem:[%s1 + $0x1c] sm:$0xf]
      %v583 = vld [vmem:[%s1 + $0x20] sm:$0xf]
      %v584 = vld [vmem:[%s1 + $0x24] sm:$0xf]
      %v585 = vld [vmem:[%s1 + $0x28] sm:$0xf]
      %v586 = vld [vmem:[%s1 + $0x2c] sm:$0xf]
      %v587 = vld [vmem:[%s1 + $0x30] sm:$0xf]
      %v588 = vld [vmem:[%s1 + $0x34] sm:$0xf]
      %v589 = vld [vmem:[%s1 + $0x38] sm:$0xf]
      %v590 = vld [vmem:[%s1 + $0x3c] sm:$0xf]
      %v591 = vld [vmem:[%s1 + $0x40] sm:$0xf]
      %v592 = vld [vmem:[%s1 + $0x44] sm:$0xf]
      %v593 = vld [vmem:[%s1 + $0x48] sm:$0xf]
      %v594 = vld [vmem:[%s1 + $0x4c] sm:$0xf]
      %v595 = vld [vmem:[%s1 + $0x50] sm:$0xf]
      %v596 = vld [vmem:[%s1 + $0x54] sm:$0xf]
      %v597 = vld [vmem:[%s1 + $0x58] sm:$0xf]
      %v598 = vld [vmem:[%s1 + $0x5c] sm:$0xf]
      %v599 = vld [vmem:[%s1 + $0x60] sm:$0xf]
      %v600 = vld [vmem:[%s1 + $0x64] sm:$0xf]
      %v601 = vld [vmem:[%s1 + $0x68] sm:$0xf]
      %v602 = vld [vmem:[%s1 + $0x6c] sm:$0xf]
      %v603 = vld [vmem:[%s1 + $0x70] sm:$0xf]
      %v604 = vld [vmem:[%s1 + $0x74] sm:$0xf]
      %v605 = vld [vmem:[%s1 + $0x78] sm:$0xf]
      %v606 = vld [vmem:[%s1 + $0x7c] sm:$0xf]
      %v607 = vld [vmem:[%s1 + $0x80] sm:$0xf]
      %v608 = vld [vmem:[%s1 + $0x84] sm:$0xf]
      %v609 = vld [vmem:[%s1 + $0x88] sm:$0xf]
      %v610 = vld [vmem:[%s1 + $0x8c] sm:$0xf]
      %v611 = vld [vmem:[%s2] sm:$0x1]
      %v613 = vlaneseq
      %v614 = vshrl.u32 %v613, 7
      %v615 = vsub.s32 0, %v614
      %v616 = vrot.slane %v611, %v615
      %v654 = vunpack.c.l.b16 %v575
      %v655 = vunpack.c.l.b16 %v576
      %v656 = vunpack.c.l.b16 %v577
      %v657 = vunpack.c.l.b16 %v578
      %v658 = vunpack.c.l.b16 %v579
      %v659 = vunpack.c.l.b16 %v580
      %v660 = vunpack.c.l.b16 %v581
      %v661 = vunpack.c.l.b16 %v582
      %v662 = vunpack.c.l.b16 %v583
      %v663 = vunpack.c.l.b16 %v584
      %v664 = vunpack.c.l.b16 %v585
      %v665 = vunpack.c.l.b16 %v586
      %v666 = vunpack.c.l.b16 %v587
      %v667 = vunpack.c.l.b16 %v588
      %v668 = vunpack.c.l.b16 %v589
      %v669 = vunpack.c.l.b16 %v590
      %v670 = vunpack.c.l.b16 %v591
      %v671 = vunpack.c.l.b16 %v592
      %v672 = vunpack.c.l.b16 %v593
      %v673 = vunpack.c.l.b16 %v594
      %v674 = vunpack.c.l.b16 %v595
      %v675 = vunpack.c.l.b16 %v596
      %v676 = vunpack.c.l.b16 %v597
      %v677 = vunpack.c.l.b16 %v598
      %v678 = vunpack.c.l.b16 %v599
      %v679 = vunpack.c.l.b16 %v600
      %v680 = vunpack.c.l.b16 %v601
      %v681 = vunpack.c.l.b16 %v602
      %v682 = vunpack.c.l.b16 %v603
      %v683 = vunpack.c.l.b16 %v604
      %v684 = vunpack.c.l.b16 %v605
      %v685 = vunpack.c.l.b16 %v606
      %v686 = vunpack.c.l.b16 %v607
      %v687 = vunpack.c.l.b16 %v608
      %v688 = vunpack.c.l.b16 %v609
      %v689 = vunpack.c.l.b16 %v610
      %v690 = vpack.c.b16 %v655, %v654
      %v691 = vpack.c.b16 %v657, %v656
      %v692 = vpack.c.b16 %v659, %v658
      %v693 = vpack.c.b16 %v661, %v660
      %v694 = vpack.c.b16 %v663, %v662
      %v695 = vpack.c.b16 %v665, %v664
      %v696 = vpack.c.b16 %v667, %v666
      %v697 = vpack.c.b16 %v669, %v668
      %v698 = vpack.c.b16 %v671, %v670
      %v699 = vpack.c.b16 %v673, %v672
      %v700 = vpack.c.b16 %v675, %v674
      %v701 = vpack.c.b16 %v677, %v676
      %v702 = vpack.c.b16 %v679, %v678
      %v703 = vpack.c.b16 %v681, %v680
      %v704 = vpack.c.b16 %v683, %v682
      %v705 = vpack.c.b16 %v685, %v684
      %v706 = vpack.c.b16 %v687, %v686
      %v707 = vpack.c.b16 %v689, %v688
      %v727 = vsel %vm512, %v565, 0
      %v730 = vsel %vm512, %v568, 0
      %v733 = vsel %vm512, %v571, 0
      %v736 = vsel %vm512, %v574, 0
      %738 = vmatprep.subr.bf16.mxu0 0
      %739 = vmatpush1.bf16.msra.mxu0 %v690
      %740 = vmatprep.subr.bf16.mxu0 0
      %741 = vmatpush1.bf16.msra.mxu0 %v691
      %742 = vmatprep.subr.bf16.mxu0 0
      %743 = vmatpush1.bf16.msra.mxu0 %v692
      %744 = vmatprep.subr.bf16.mxu0 0
      %745 = vmatpush1.bf16.msra.mxu0 %v693
      %746 = vmatprep.subr.bf16.mxu0 0
      %747 = vmatpush1.bf16.msra.mxu0 %v694
      %748 = vmatprep.subr.bf16.mxu0 0
      %749 = vmatpush1.bf16.msra.mxu0 %v695
      %750 = vmatprep.subr.bf16.mxu0 0
      %751 = vmatpush1.bf16.msra.mxu0 %v696
      %752 = vmatprep.subr.bf16.mxu0 0
      %753 = vmatpush1.bf16.msra.mxu0 %v697
      %754 = vmatprep.subr.bf16.mxu0 0
      %755 = vmatpush1.bf16.msra.mxu0 %v698
      %756 = vmatprep.subr.bf16.mxu0 0
      %757 = vmatpush1.bf16.msra.mxu0 %v699
      %758 = vmatprep.subr.bf16.mxu0 0
      %759 = vmatpush1.bf16.msra.mxu0 %v700
      %760 = vmatprep.subr.bf16.mxu0 0
      %761 = vmatpush1.bf16.msra.mxu0 %v701
      %762 = vmatprep.subr.bf16.mxu0 0
      %763 = vmatpush1.bf16.msra.mxu0 %v702
      %764 = vmatprep.subr.bf16.mxu0 0
      %765 = vmatpush1.bf16.msra.mxu0 %v703
      %766 = vmatprep.subr.bf16.mxu0 0
      %767 = vmatpush1.bf16.msra.mxu0 %v704
      %768 = vmatprep.subr.bf16.mxu0 0
      %769 = vmatpush1.bf16.msra.mxu0 %v705
      %770 = vmatprep.mubr.bf16.mxu0 %v564
      %771 = vmatmul.mubr.bf16.gmra.mrb[0].mxu0 %v563
      %v772 = vpop.f32.mrb[0].mxu0
      %v773 = vadd.f32 %v616, %v772
      %v774 = vpop.f32.mrb[0].mxu0
      %v775 = vpop.f32.mrb[0].mxu0
      %v776 = vadd.f32 %v616, %v775
      %v777 = vpop.f32.mrb[0].mxu0
      %778 = vmatprep.mubr.bf16.mxu0 %v567
      %779 = vmatmul.mubr.bf16.gmra.mrb[0].mxu0 %v566
      %v780 = vpop.f32.mrb[0].mxu0
      %v781 = vadd.f32 %v616, %v780
      %v782 = vpop.f32.mrb[0].mxu0
      %v783 = vpop.f32.mrb[0].mxu0
      %v784 = vadd.f32 %v616, %v783
      %v785 = vpop.f32.mrb[0].mxu0
      %786 = vmatprep.mubr.bf16.mxu0 %v570
      %787 = vmatmul.mubr.bf16.gmra.mrb[0].mxu0 %v569
      %v788 = vpop.f32.mrb[0].mxu0
      %v789 = vadd.f32 %v616, %v788
      %v790 = vpop.f32.mrb[0].mxu0
      %v791 = vpop.f32.mrb[0].mxu0
      %v792 = vadd.f32 %v616, %v791
      %v793 = vpop.f32.mrb[0].mxu0
      %794 = vmatprep.mubr.bf16.mxu0 %v573
      %795 = vmatmul.mubr.bf16.gmra.mrb[0].mxu0 %v572
      %v796 = vpop.f32.mrb[0].mxu0
      %v797 = vadd.f32 %v616, %v796
      %v798 = vpop.f32.mrb[0].mxu0
      %v799 = vpop.f32.mrb[0].mxu0
      %v800 = vadd.f32 %v616, %v799
      %v801 = vpop.f32.mrb[0].mxu0
      %802 = vdwg.mxu0
      %803 = vmatprep.subr.bf16.mxu0 0
      %804 = vmatpush1.bf16.msra.mxu0 %v706
      %805 = vmatprep.subr.bf16.mxu0 0
      %806 = vmatpush1.bf16.msra.mxu0 %v707
      %807 = vmatprep.subr.bf16.mxu0 0
      %808 = vmatpush1.bf16.msra.mxu0 0
      %809 = vmatprep.subr.bf16.mxu0 0
      %810 = vmatpush1.bf16.msra.mxu0 0
      %811 = vmatprep.subr.bf16.mxu0 0
      %812 = vmatpush1.bf16.msra.mxu0 0
      %813 = vmatprep.subr.bf16.mxu0 0
      %814 = vmatpush1.bf16.msra.mxu0 0
      %815 = vmatprep.subr.bf16.mxu0 0
      %816 = vmatpush1.bf16.msra.mxu0 0
      %817 = vmatprep.subr.bf16.mxu0 0
      %818 = vmatpush1.bf16.msra.mxu0 0
      %819 = vmatprep.subr.bf16.mxu0 0
      %820 = vmatpush1.bf16.msra.mxu0 0
      %821 = vmatprep.subr.bf16.mxu0 0
      %822 = vmatpush1.bf16.msra.mxu0 0
      %823 = vmatprep.subr.bf16.mxu0 0
      %824 = vmatpush1.bf16.msra.mxu0 0
      %825 = vmatprep.subr.bf16.mxu0 0
      %826 = vmatpush1.bf16.msra.mxu0 0
      %827 = vmatprep.subr.bf16.mxu0 0
      %828 = vmatpush1.bf16.msra.mxu0 0
      %829 = vmatprep.subr.bf16.mxu0 0
      %830 = vmatpush1.bf16.msra.mxu0 0
      %831 = vmatprep.subr.bf16.mxu0 0
      %832 = vmatpush1.bf16.msra.mxu0 0
      %833 = vmatprep.subr.bf16.mxu0 0
      %834 = vmatpush1.bf16.msra.mxu0 0
      %835 = vmatprep.mubr.bf16.mxu0 0
      %836 = vmatmul.mubr.bf16.gmra.mrb[0].mxu0 %v727
      %v837 = vpop.f32.mrb[0].mxu0
      %v838 = vadd.f32 %v773, %v837
      %v839 = vpop.f32.mrb[0].mxu0
      %v840 = vpop.f32.mrb[0].mxu0
      %v841 = vadd.f32 %v776, %v840
      %v842 = vpop.f32.mrb[0].mxu0
      %843 = vmatprep.mubr.bf16.mxu0 0
      %844 = vmatmul.mubr.bf16.gmra.mrb[0].mxu0 %v730
      %v845 = vpop.f32.mrb[0].mxu0
      %v846 = vadd.f32 %v781, %v845
      %v847 = vpop.f32.mrb[0].mxu0
      %v848 = vpop.f32.mrb[0].mxu0
      %v849 = vadd.f32 %v784, %v848
      %v850 = vpop.f32.mrb[0].mxu0
      %851 = vmatprep.mubr.bf16.mxu0 0
      %852 = vmatmul.mubr.bf16.gmra.mrb[0].mxu0 %v733
      %v853 = vpop.f32.mrb[0].mxu0
      %v854 = vadd.f32 %v789, %v853
      %v855 = vpop.f32.mrb[0].mxu0
      %v856 = vpop.f32.mrb[0].mxu0
      %v857 = vadd.f32 %v792, %v856
      %v858 = vpop.f32.mrb[0].mxu0
      %859 = vmatprep.mubr.bf16.mxu0 0
      %860 = vmatmul.mubr.bf16.gmra.mrb[0].mxu0 %v736
      %v861 = vpop.f32.mrb[0].mxu0
      %v862 = vadd.f32 %v797, %v861
      %v863 = vpop.f32.mrb[0].mxu0
      %v864 = vpop.f32.mrb[0].mxu0
      %v865 = vadd.f32 %v800, %v864
      %v866 = vpop.f32.mrb[0].mxu0
      %867 = vdwg.mxu0
      %v868 = vtanh.pop %v838
      %v869 = vtanh.pop %v841
      %v870 = vtanh.pop %v846
      %v871 = vtanh.pop %v849
      %v872 = vtanh.pop %v854
      %v873 = vtanh.pop %v857
      %v874 = vtanh.pop %v862
      %v875 = vtanh.pop %v865
      %876 = vst.msk [vmem:[%s235] sm:$0xff] %vm521, %v868
      %877 = vst.msk [vmem:[%s235 + $0x8] sm:$0xff] %vm521, %v869
      %878 = vst.msk [vmem:[%s235 + $0x10] sm:$0xff] %vm521, %v870
      %879 = vst.msk [vmem:[%s235 + $0x18] sm:$0xff] %vm521, %v871
      %880 = vst.msk [vmem:[%s235 + $0x20] sm:$0xff] %vm521, %v872
      %881 = vst.msk [vmem:[%s235 + $0x28] sm:$0xff] %vm521, %v873
      %882 = vst.msk [vmem:[%s235 + $0x30] sm:$0xff] %vm521, %v874
      %883 = vst.msk [vmem:[%s235 + $0x38] sm:$0xff] %vm521, %v875
      %v884 = vsel %vm521, %v868, 0.0
      %v885 = vsel %vm521, %v869, 0.0
      %v886 = vadd.f32 %v884, %v885
      %v887 = vsel %vm521, %v870, 0.0
      %v888 = vadd.f32 %v886, %v887
      %v889 = vsel %vm521, %v871, 0.0
      %v890 = vadd.f32 %v888, %v889
      %v891 = vsel %vm521, %v872, 0.0
      %v892 = vadd.f32 %v890, %v891
      %v893 = vsel %vm521, %v873, 0.0
      %v894 = vadd.f32 %v892, %v893
      %v895 = vsel %vm521, %v874, 0.0
      %v896 = vadd.f32 %v894, %v895
      %v897 = vsel %vm521, %v875, 0.0
      %v898 = vadd.f32 %v896, %v897
      %v899 = vrot.slane %v898, 4
      %v900 = vadd.f32 %v898, %v899
      %v901 = vrot.slane %v900, 2
      %v902 = vadd.f32 %v900, %v901
      %v903 = vrot.slane %v902, 1
      %v904 = vadd.f32 %v902, %v903
      %vm905 = vcmask 516096
      %906 = vst.msk [vmem:[%s238] sm:$0x1] %vm905, %v904
      %v907 = vmul.f32 %v868, %v868
      %v908 = vmul.f32 %v869, %v869
      %v909 = vmul.f32 %v870, %v870
      %v910 = vmul.f32 %v871, %v871
      %v911 = vmul.f32 %v872, %v872
      %v912 = vmul.f32 %v873, %v873
      %v913 = vmul.f32 %v874, %v874
      %v914 = vmul.f32 %v875, %v875
      %v915 = vsel %vm521, %v907, 0.0
      %v916 = vsel %vm521, %v908, 0.0
      %v917 = vadd.f32 %v915, %v916
      %v918 = vsel %vm521, %v909, 0.0
      %v919 = vadd.f32 %v917, %v918
      %v920 = vsel %vm521, %v910, 0.0
      %v921 = vadd.f32 %v919, %v920
      %v922 = vsel %vm521, %v911, 0.0
      %v923 = vadd.f32 %v921, %v922
      %v924 = vsel %vm521, %v912, 0.0
      %v925 = vadd.f32 %v923, %v924
      %v926 = vsel %vm521, %v913, 0.0
      %v927 = vadd.f32 %v925, %v926
      %v928 = vsel %vm521, %v914, 0.0
      %v929 = vadd.f32 %v927, %v928
      %v930 = vrot.slane %v929, 4
      %v931 = vadd.f32 %v929, %v930
      %v932 = vrot.slane %v931, 2
      %v933 = vadd.f32 %v931, %v932
      %v934 = vrot.slane %v933, 1
      %v935 = vadd.f32 %v933, %v934
      %936 = vst.msk [vmem:[%s241] sm:$0x1] %vm905, %v935
      %p937 = scmp.lt.s32.totalorder %s17, 1
      %s938 = scalar_select %p937, %s17, 1
      %s939 = smul.addr %s938, 8
      %s940 = smul.addr %s939, 8
      %s941 = scalar_lea.vmem %s3, %s940
      %p942 = scmp.lt.s32.totalorder %s17, 1
      %s943 = scalar_select %p942, %s17, 1
      %s944 = scalar_lea.vmem %s4, %s943
      %p945 = scmp.lt.s32.totalorder %s17, 1
      %s946 = scalar_select %p945, %s17, 1
      %s947 = scalar_lea.vmem %s5, %s946
      // Predicated region
      $region33: #{cnn_encoder_forward.8} parent=31 // pred_check
        %p948 = pneg %p103
      $region34: #{cnn_encoder_forward.8} parent=31 // pred_check_branch
        %950 = sbr.rel (%p948) target = $region36
      $region35: #{cnn_encoder_forward.8} parent=31 // pred_region
        _
      $region36: #{cnn_encoder_forward.8} parent=31 // pred_fallthru
        _
      // Predicated region
      $region37: #{cnn_encoder_forward.8} parent=31 // pred_check
        %p951 = pneg %p129
      $region38: #{cnn_encoder_forward.8} parent=31 // pred_check_branch
        %953 = sbr.rel (%p951) target = $region40
      $region39: #{cnn_encoder_forward.8} parent=31 // pred_region
        _
      $region40: #{cnn_encoder_forward.8} parent=31 // pred_fallthru
        _
      // Predicated region
      $region41: #{cnn_encoder_forward.8} parent=31 // pred_check
        %p954 = pneg %p155
      $region42: #{cnn_encoder_forward.8} parent=31 // pred_check_branch
        %956 = sbr.rel (%p954) target = $region44
      $region43: #{cnn_encoder_forward.8} parent=31 // pred_region
        _
      $region44: #{cnn_encoder_forward.8} parent=31 // pred_fallthru
        _
    $region32: #{cnn_encoder_forward.8} parent=5 // pred_fallthru
      _
    %p957 = scmp.le.s32.totalorder 2, %s12
    // Predicated region
    $region45: #{cnn_encoder_forward.8} parent=5 // pred_check
      %p958 = pneg %p957
    $region46: #{cnn_encoder_forward.8} parent=5 // pred_check_branch
      %960 = sbr.rel (%p958) target = $region48
    $region47: #{cnn_encoder_forward.8} parent=5 // pred_region
      %s961 = ssub.s32 %s12, 2
      // Predicated region
      $region49: #{cnn_encoder_forward.8} parent=47 // pred_check
        %p962 = pneg %p109
      $region50: #{cnn_encoder_forward.8} parent=47 // pred_check_branch
        %964 = sbr.rel (%p962) target = $region52
      $region51: #{cnn_encoder_forward.8} parent=47 // pred_region
        %p965 = scmp.lt.s32.totalorder %s18, 1
        %s966 = scalar_select %p965, %s18, 1
        %s967 = smul.addr %s966, 8
        %s968 = smul.addr %s967, 8
        %s969 = scalar_lea.vmem %s3, %s968
      $region52: #{cnn_encoder_forward.8} parent=47 // pred_fallthru
        _
      // Predicated region
      $region53: #{cnn_encoder_forward.8} parent=47 // pred_check
        %p970 = pneg %p135
      $region54: #{cnn_encoder_forward.8} parent=47 // pred_check_branch
        %972 = sbr.rel (%p970) target = $region56
      $region55: #{cnn_encoder_forward.8} parent=47 // pred_region
        %p973 = scmp.lt.s32.totalorder %s18, 1
        %s974 = scalar_select %p973, %s18, 1
        %s975 = scalar_lea.vmem %s4, %s974
      $region56: #{cnn_encoder_forward.8} parent=47 // pred_fallthru
        _
      // Predicated region
      $region57: #{cnn_encoder_forward.8} parent=47 // pred_check
        %p976 = pneg %p161
      $region58: #{cnn_encoder_forward.8} parent=47 // pred_check_branch
        %978 = sbr.rel (%p976) target = $region60
      $region59: #{cnn_encoder_forward.8} parent=47 // pred_region
        %p979 = scmp.lt.s32.totalorder %s18, 1
        %s980 = scalar_select %p979, %s18, 1
        %s981 = scalar_lea.vmem %s5, %s980
      $region60: #{cnn_encoder_forward.8} parent=47 // pred_fallthru
        _
    $region48: #{cnn_encoder_forward.8} parent=5 // pred_fallthru
      _
  $region6: #{cnn_encoder_forward.8} parent=0 // loop_footer
    %s16 = sadd.s32 1, %s12
  $region7: #{cnn_encoder_forward.8} parent=0 // loop_footer_branch
    %11 = sbr.rel target = $region3
  $region8: #{cnn_encoder_forward.8} parent=0 // loop_exit
    _

// kernel: tile.53
$region0: #{tile.53}
  #allocation0 [shape = 's32[1]{0}', space=sflag, size = 0x4, scoped, tag = 'scoped memory for tile.53']
  %s0 = inlined_call_operand.vmem [shape: f32[64], index: 0, kind: input, shape index: {}]
  %s1 = inlined_call_operand.vmem [shape: f32[4,64], index: 1, kind: output, shape index: {}]
  // Predicated region
  $region2: #{tile.53} parent=0 // pred_check
    _
  $region3: #{tile.53} parent=0 // pred_check_branch
    %3 = sbr.rel (0) target = $region5
  $region4: #{tile.53} parent=0 // pred_region
    _
  $region5: #{tile.53} parent=0 // pred_fallthru
    _
  %v4 = vld [vmem:[%s0] ss:$0 sm:$0xff]
  %5 = vst [vmem:[%s1] sm:$0xf] %v4

// kernel: tile.54
$region0: #{tile.54}
  %s0 = inlined_call_operand.vmem [shape: f32[4,64], index: 0, kind: input, shape index: {}]
  %s1 = inlined_call_operand.vmem [shape: f32[1,256], index: 1, kind: output, shape index: {}]
  $region1: #{tile.54} parent=0
    #allocation0 [shape = 'u8[8192]{0}', space=vmem, size = 0x2000, scoped, tag = 'scoped mem for output reshape']
    #allocation1 [shape = 'u8[4096]{0}', space=vmem, size = 0x1000, scoped, tag = 'scoped mem for input reshape']
    %s3 = sshllo.u32 0, 4
    %v4 = vld [vmem:[%s0] sm:%s3]
    %5 = vst [vmem:[#allocation1] sm:%s3] %v4
    %s6 = smov 3
    %v7 = vld [vmem:[#allocation1] ss:$2 sm:%s6]
    %vm8 = vcmask 523264
    %9 = vst.msk [vmem:[#allocation0] ss:$8 sm:$0x3] %vm8, %v7
    %s10 = scalar_lea.vmem [#allocation1], 1
    %s11 = smov 3
    %v12 = vld [vmem:[%s10] ss:$2 sm:%s11]
    %13 = vrot.lane.b32.xlu0 %v12, 64
    %v14 = vpop.permute.xlu0 %13
    %vm15 = vcmask 1048064
    %16 = vst.msk [vmem:[#allocation0] ss:$8 sm:$0x3] %vm15, %v14
    %s18 = sshllo.u32 0, 1
    %v20 = vld [vmem:[#allocation0] sm:%s18]
    %s21 = sshllo.u32 0, 1
    %22 = vst [vmem:[%s1] sm:%s21] %v20
    %s23 = scalar_lea.vmem [#allocation0], 8
    %v24 = vld [vmem:[%s23] sm:%s18]
    %s25 = sshllo.u32 0, 1
    %s26 = scalar_lea.vmem %s1, 1
    %27 = vst [vmem:[%s26] sm:%s25] %v24

// kernel: cnn_encoder_forward.10
$region0: #{cnn_encoder_forward.10}
  #allocation0 [shape = 'u32[]', space=smem, size = 0x4, offset = 0x4, fixed_abs, tag = 'smem constant byte address 0x4 - core index']
  #allocation1 [shape = 'u32[144,128]{1,0:T(1,128)}', space=vmem, size = 0x12000, scoped, tag = 'internal scratch']
  %s0 = inlined_call_operand.vmem [shape: f32[2,4,5,5,64], index: 0, kind: input, shape index: {}]
  %s1 = inlined_call_operand.vmem [shape: bf16[576,64], index: 1, kind: input, shape index: {}]
  %s2 = inlined_call_operand.vmem [shape: f32[1,64], index: 2, kind: input, shape index: {}]
  %s3 = inlined_call_operand.vmem [shape: f32[2,16,64], index: 3, kind: output, shape index: {0}]
  %s4 = inlined_call_operand.vmem [shape: f32[2,1,64], index: 4, kind: output, shape index: {1}]
  %s5 = inlined_call_operand.vmem [shape: f32[2,1,64], index: 5, kind: output, shape index: {2}]
  %6 = xla_tuple %s3, %s4, %s5
  %s7 = sld [smem:[#allocation0]]
  $region61: #{cnn_encoder_forward.10} parent=0
    _
  %s9 = ssub.s32 1, %s7
  %s10 = scalar_select 0, %s9, %s7
  loop: start=0, step=1, limit=4
  $region2: #{cnn_encoder_forward.10} parent=0 // loop_pre_header
    _
  $region3: #{cnn_encoder_forward.10} parent=0 // loop_header
    %s12 = sphi 0, %s16
    %p13 = scmp.ge.s32.totalorder %s12, 4
    %s22 = sphi 0, %s24
    %s25 = sphi 0, %s22
    %s26 = sphi 0, %s25
    %s42 = sphi 0, %s26
    %s46 = sphi 0, %s46
    %s48 = sphi 0, %s46
    %s49 = sphi 0, %s48
    %s63 = sphi 0, %s49
    %s67 = sphi 0, %s67
    %s69 = sphi 0, %s67
    %s70 = sphi 0, %s69
    %s84 = sphi 0, %s70
    %s90 = sphi 0, %s92
    %s93 = sphi 0, %s90
    %s94 = sphi 0, %s93
    %s110 = sphi 0, %s94
    %s116 = sphi 0, %s118
    %s119 = sphi 0, %s116
    %s120 = sphi 0, %s119
    %s136 = sphi 0, %s120
    %s142 = sphi 0, %s144
    %s145 = sphi 0, %s142
    %s146 = sphi 0, %s145
    %s162 = sphi 0, %s146
  $region4: #{cnn_encoder_forward.10} parent=0 // loop_header_branch
    %15 = sbr.rel (%p13) target = $region8
  $region5: #{cnn_encoder_forward.10} parent=0 // loop_body
    %s17 = ssub.s32 %s12, 1
    %s18 = ssub.s32 %s12, 2
    %s19 = sadd.s32 %s12, 1
    %s20 = ssub.s32 %s12, %s19
    %p21 = scmp.eq.s32.totalorder %s20, 0
    %s23 = sadd.s32 %s22, 1
    %s24 = scalar_select %p21, %s22, %s23
    %p27 = pneg %p21
    %p28 = scmp.eq.s32.totalorder %s12, 1
    %p29 = por %p27, %p28
    %p30 = scmp.ne.s32.totalorder %s22, %s25
    %p31 = scmp.eq.s32.totalorder %s12, 0
    %p32 = por %p30, %p31
    %p33 = scmp.ne.s32.totalorder %s22, %s25
    %p34 = scmp.eq.s32.totalorder %s17, 1
    %p35 = por %p33, %p34
    %p36 = scmp.ne.s32.totalorder %s25, %s26
    %p37 = scmp.eq.s32.totalorder %s17, 0
    %p38 = por %p36, %p37
    %p39 = scmp.ne.s32.totalorder %s25, %s26
    %p40 = scmp.eq.s32.totalorder %s18, 1
    %p41 = por %p39, %p40
    %p43 = scmp.ne.s32.totalorder %s26, %s42
    %p44 = scmp.eq.s32.totalorder %s18, 0
    %p45 = por %p43, %p44
    %s47 = sadd.s32 %s46, 1
    %p50 = scmp.eq.s32.totalorder %s12, 1
    %p51 = scmp.ne.s32.totalorder %s46, %s48
    %p52 = scmp.eq.s32.totalorder %s12, 0
    %p53 = por %p51, %p52
    %p54 = scmp.ne.s32.totalorder %s46, %s48
    %p55 = scmp.eq.s32.totalorder %s17, 1
    %p56 = por %p54, %p55
    %p57 = scmp.ne.s32.totalorder %s48, %s49
    %p58 = scmp.eq.s32.totalorder %s17, 0
    %p59 = por %p57, %p58
    %p60 = scmp.ne.s32.totalorder %s48, %s49
    %p61 = scmp.eq.s32.totalorder %s18, 1
    %p62 = por %p60, %p61
    %p64 = scmp.ne.s32.totalorder %s49, %s63
    %p65 = scmp.eq.s32.totalorder %s18, 0
    %p66 = por %p64, %p65
    %s68 = sadd.s32 %s67, 1
    %p71 = scmp.eq.s32.totalorder %s12, 1
    %p72 = scmp.ne.s32.totalorder %s67, %s69
    %p73 = scmp.eq.s32.totalorder %s12, 0
    %p74 = por %p72, %p73
    %p75 = scmp.ne.s32.totalorder %s67, %s69
    %p76 = scmp.eq.s32.totalorder %s17, 1
    %p77 = por %p75, %p76
    %p78 = scmp.ne.s32.totalorder %s69, %s70
    %p79 = scmp.eq.s32.totalorder %s17, 0
    %p80 = por %p78, %p79
    %p81 = scmp.ne.s32.totalorder %s69, %s70
    %p82 = scmp.eq.s32.totalorder %s18, 1
    %p83 = por %p81, %p82
    %p85 = scmp.ne.s32.totalorder %s70, %s84
    %p86 = scmp.eq.s32.totalorder %s18, 0
    %p87 = por %p85, %p86
    %s88 = ssub.s32 %s12, %s19
    %p89 = scmp.eq.s32.totalorder %s88, 0
    %s91 = sadd.s32 %s90, 1
    %s92 = scalar_select %p89, %s90, %s91
    %p95 = pneg %p89
    %p96 = scmp.eq.s32.totalorder %s12, 1
    %p97 = por %p95, %p96
    %p98 = scmp.ne.s32.totalorder %s90, %s93
    %p99 = scmp.eq.s32.totalorder %s12, 0
    %p100 = por %p98, %p99
    %p101 = scmp.ne.s32.totalorder %s90, %s93
    %p102 = scmp.eq.s32.totalorder %s17, 1
    %p103 = por %p101, %p102
    %p104 = scmp.ne.s32.totalorder %s93, %s94
    %p105 = scmp.eq.s32.totalorder %s17, 0
    %p106 = por %p104, %p105
    %p107 = scmp.ne.s32.totalorder %s93, %s94
    %p108 = scmp.eq.s32.totalorder %s18, 1
    %p109 = por %p107, %p108
    %p111 = scmp.ne.s32.totalorder %s94, %s110
    %p112 = scmp.eq.s32.totalorder %s18, 0
    %p113 = por %p111, %p112
    %s114 = ssub.s32 %s12, %s19
    %p115 = scmp.eq.s32.totalorder %s114, 0
    %s117 = sadd.s32 %s116, 1
    %s118 = scalar_select %p115, %s116, %s117
    %p121 = pneg %p115
    %p122 = scmp.eq.s32.totalorder %s12, 1
    %p123 = por %p121, %p122
    %p124 = scmp.ne.s32.totalorder %s116, %s119
    %p125 = scmp.eq.s32.totalorder %s12, 0
    %p126 = por %p124, %p125
    %p127 = scmp.ne.s32.totalorder %s116, %s119
    %p128 = scmp.eq.s32.totalorder %s17, 1
    %p129 = por %p127, %p128
    %p130 = scmp.ne.s32.totalorder %s119, %s120
    %p131 = scmp.eq.s32.totalorder %s17, 0
    %p132 = por %p130, %p131
    %p133 = scmp.ne.s32.totalorder %s119, %s120
    %p134 = scmp.eq.s32.totalorder %s18, 1
    %p135 = por %p133, %p134
    %p137 = scmp.ne.s32.totalorder %s120, %s136
    %p138 = scmp.eq.s32.totalorder %s18, 0
    %p139 = por %p137, %p138
    %s140 = ssub.s32 %s12, %s19
    %p141 = scmp.eq.s32.totalorder %s140, 0
    %s143 = sadd.s32 %s142, 1
    %s144 = scalar_select %p141, %s142, %s143
    %p147 = pneg %p141
    %p148 = scmp.eq.s32.totalorder %s12, 1
    %p149 = por %p147, %p148
    %p150 = scmp.ne.s32.totalorder %s142, %s145
    %p151 = scmp.eq.s32.totalorder %s12, 0
    %p152 = por %p150, %p151
    %p153 = scmp.ne.s32.totalorder %s142, %s145
    %p154 = scmp.eq.s32.totalorder %s17, 1
    %p155 = por %p153, %p154
    %p156 = scmp.ne.s32.totalorder %s145, %s146
    %p157 = scmp.eq.s32.totalorder %s17, 0
    %p158 = por %p156, %p157
    %p159 = scmp.ne.s32.totalorder %s145, %s146
    %p160 = scmp.eq.s32.totalorder %s18, 1
    %p161 = por %p159, %p160
    %p163 = scmp.ne.s32.totalorder %s146, %s162
    %p164 = scmp.eq.s32.totalorder %s18, 0
    %p165 = por %p163, %p164
    %p166 = scmp.le.s32.totalorder 1, %s12
    %p167 = scmp.lt.s32.totalorder %s12, 3
    %p168 = pnand %p166, %p167
    %p169 = pneg %p168
    // Predicated region
    $region9: #{cnn_encoder_forward.10} parent=5 // pred_check
      _
    $region10: #{cnn_encoder_forward.10} parent=5 // pred_check_branch
      %171 = sbr.rel (%p168) target = $region12
    $region11: #{cnn_encoder_forward.10} parent=5 // pred_region
      %s172 = ssub.s32 %s12, 1
      // Predicated region
      $region13: #{cnn_encoder_forward.10} parent=11 // pred_check
        %p173 = pneg %p59
      $region14: #{cnn_encoder_forward.10} parent=11 // pred_check_branch
        %175 = sbr.rel (%p173) target = $region16
      $region15: #{cnn_encoder_forward.10} parent=11 // pred_region
        _
      $region16: #{cnn_encoder_forward.10} parent=11 // pred_fallthru
        _
      // Predicated region
      $region17: #{cnn_encoder_forward.10} parent=11 // pred_check
        %p176 = pneg %p80
      $region18: #{cnn_encoder_forward.10} parent=11 // pred_check_branch
        %178 = sbr.rel (%p176) target = $region20
      $region19: #{cnn_encoder_forward.10} parent=11 // pred_region
        _
      $region20: #{cnn_encoder_forward.10} parent=11 // pred_fallthru
        _
    $region12: #{cnn_encoder_forward.10} parent=5 // pred_fallthru
      _
    %p179 = scmp.lt.s32.totalorder %s12, 2
    // Predicated region
    $region21: #{cnn_encoder_forward.10} parent=5 // pred_check
      %p180 = pneg %p179
    $region22: #{cnn_encoder_forward.10} parent=5 // pred_check_branch
      %182 = sbr.rel (%p180) target = $region24
    $region23: #{cnn_encoder_forward.10} parent=5 // pred_region
      // Predicated region
      $region25: #{cnn_encoder_forward.10} parent=23 // pred_check
        %p183 = pneg %p32
      $region26: #{cnn_encoder_forward.10} parent=23 // pred_check_branch
        %185 = sbr.rel (%p183) target = $region28
      $region27: #{cnn_encoder_forward.10} parent=23 // pred_region
        %p186 = scmp.lt.s32.totalorder %s12, 1
        %s187 = scalar_select %p186, %s12, 1
        %s188 = smul.addr %s187, 20
        %s189 = smul.addr %s188, 8
        %s190 = scalar_lea.vmem %s0, %s189
      $region28: #{cnn_encoder_forward.10} parent=23 // pred_fallthru
        _
    $region24: #{cnn_encoder_forward.10} parent=5 // pred_fallthru
      _
    %p191 = scmp.le.s32.totalorder 1, %s12
    %p192 = scmp.lt.s32.totalorder %s12, 3
    %p193 = pnand %p191, %p192
    %p194 = pneg %p193
    // Predicated region
    $region29: #{cnn_encoder_forward.10} parent=5 // pred_check
      _
    $region30: #{cnn_encoder_forward.10} parent=5 // pred_check_branch
      %196 = sbr.rel (%p193) target = $region32
    $region31: #{cnn_encoder_forward.10} parent=5 // pred_region
      %s197 = ssub.s32 %s12, 1
      %p198 = scmp.lt.s32.totalorder %s17, 1
      %s199 = scalar_select %p198, %s17, 1
      %s200 = smul.addr %s199, 20
      %s201 = smul.addr %s200, 8
      %s202 = scalar_lea.vmem %s0, %s201
      %p203 = pneg %p38
      %p204 = pneg %p35
      %p205 = pneg %p59
      %p206 = pneg %p56
      %p207 = pneg %p80
      %p208 = pneg %p77
      %p209 = pneg %p106
      %p210 = pneg %p103
      %p211 = scmp.lt.s32.totalorder %s17, 1
      %s212 = scalar_select %p211, %s17, 1
      %s213 = smul.addr %s212, 2
      %s214 = smul.addr %s213, 8
      %s215 = scalar_lea.vmem %s3, %s214
      %p216 = pneg %p132
      %p217 = pneg %p129
      %p218 = scmp.lt.s32.totalorder %s17, 1
      %s219 = scalar_select %p218, %s17, 1
      %s220 = scalar_lea.vmem %s4, %s219
      %p221 = pneg %p158
      %p222 = pneg %p155
      %p223 = scmp.lt.s32.totalorder %s17, 1
      %s224 = scalar_select %p223, %s17, 1
      %s225 = scalar_lea.vmem %s5, %s224
      %p226 = scmp.lt.s32.totalorder %s17, 1
      %s227 = scalar_select %p226, %s17, 1
      %s228 = smul.addr %s227, 20
      %s229 = smul.addr %s228, 8
      %s230 = scalar_lea.vmem %s0, %s229
      %p231 = scmp.lt.s32.totalorder %s17, 1
      %s232 = scalar_select %p231, %s17, 1
      %s233 = smul.addr %s232, 2
      %s234 = smul.addr %s233, 8
      %s235 = scalar_lea.vmem %s3, %s234
      %p236 = scmp.lt.s32.totalorder %s17, 1
      %s237 = scalar_select %p236, %s17, 1
      %s238 = scalar_lea.vmem %s4, %s237
      %p239 = scmp.lt.s32.totalorder %s17, 1
      %s240 = scalar_select %p239, %s17, 1
      %s241 = scalar_lea.vmem %s5, %s240
      %v243 = vld [vmem:[%s230] sm:$0xf]
      %v244 = vld [vmem:[%s230 + $0x8] sm:$0xf]
      %v245 = vld [vmem:[%s230 + $0x10] sm:$0xf]
      %v246 = vld [vmem:[%s230 + $0x18] sm:$0xf]
      %s247 = scalar_lea.vmem %s230, 40
      %v248 = vld [vmem:[%s247] sm:$0xf]
      %v249 = vld [vmem:[%s247 + $0x8] sm:$0xf]
      %v250 = vld [vmem:[%s247 + $0x10] sm:$0xf]
      %v251 = vld [vmem:[%s247 + $0x18] sm:$0xf]
      %v252 = vld [vmem:[%s230 + $0x1] sm:$0xf]
      %v253 = vld [vmem:[%s230 + $0x9] sm:$0xf]
      %v254 = vld [vmem:[%s230 + $0x11] sm:$0xf]
      %v255 = vld [vmem:[%s230 + $0x19] sm:$0xf]
      %s256 = scalar_lea.vmem %s230, 80
      %v257 = vld [vmem:[%s256] sm:$0xf]
      %v258 = vld [vmem:[%s256 + $0x8] sm:$0xf]
      %v259 = vld [vmem:[%s256 + $0x10] sm:$0xf]
      %v260 = vld [vmem:[%s256 + $0x18] sm:$0xf]
      %s261 = scalar_lea.vmem %s230, 120
      %v262 = vld [vmem:[%s261] sm:$0xf]
      %v263 = vld [vmem:[%s261 + $0x8] sm:$0xf]
      %v264 = vld [vmem:[%s261 + $0x10] sm:$0xf]
      %v265 = vld [vmem:[%s261 + $0x18] sm:$0xf]
      %v266 = vld [vmem:[%s256 + $0x1] sm:$0xf]
      %v267 = vld [vmem:[%s256 + $0x9] sm:$0xf]
      %v268 = vld [vmem:[%s256 + $0x11] sm:$0xf]
      %v269 = vld [vmem:[%s256 + $0x19] sm:$0xf]
      %s270 = scalar_lea.vmem %s230, 8
      %v271 = vld [vmem:[%s270] sm:$0xf]
      %v272 = vld [vmem:[%s270 + $0x8] sm:$0xf]
      %v273 = vld [vmem:[%s270 + $0x10] sm:$0xf]
      %v274 = vld [vmem:[%s270 + $0x18] sm:$0xf]
      %s275 = scalar_lea.vmem %s230, 48
      %v276 = vld [vmem:[%s275] sm:$0xf]
      %v277 = vld [vmem:[%s275 + $0x8] sm:$0xf]
      %v278 = vld [vmem:[%s275 + $0x10] sm:$0xf]
      %v279 = vld [vmem:[%s275 + $0x18] sm:$0xf]
      %v280 = vld [vmem:[%s270 + $0x1] sm:$0xf]
      %v281 = vld [vmem:[%s270 + $0x9] sm:$0xf]
      %v282 = vld [vmem:[%s270 + $0x11] sm:$0xf]
      %v283 = vld [vmem:[%s270 + $0x19] sm:$0xf]
      %v288 = vcombine.low %v243, %v244
      %v289 = vcombine.low %v245, %v246
      %v296 = vcombine.low %v248, %v249
      %v297 = vcombine.low %v250, %v251
      %298 = vrot.lane.b32.xlu0 %v296, 64
      %v299 = vpop.permute.xlu0 %298
      %300 = vrot.lane.b32.xlu0 %v297, 64
      %v301 = vpop.permute.xlu0 %300
      %v308 = vcombine.low %v252, %v253
      %v309 = vcombine.low %v254, %v255
      %v316 = vcombine.low %v257, %v258
      %v317 = vcombine.low %v259, %v260
      %318 = vrot.lane.b32.xlu0 %v316, 64
      %v319 = vpop.permute.xlu0 %318
      %320 = vrot.lane.b32.xlu0 %v317, 64
      %v321 = vpop.permute.xlu0 %320
      %v328 = vcombine.low %v262, %v263
      %v329 = vcombine.low %v264, %v265
      %v336 = vcombine.low %v266, %v267
      %v337 = vcombine.low %v268, %v269
      %338 = vrot.lane.b32.xlu0 %v336, 64
      %v339 = vpop.permute.xlu0 %338
      %340 = vrot.lane.b32.xlu0 %v337, 64
      %v341 = vpop.permute.xlu0 %340
      %v348 = vcombine.low %v271, %v272
      %v349 = vcombine.low %v273, %v274
      %v356 = vcombine.low %v276, %v277
      %v357 = vcombine.low %v278, %v279
      %358 = vrot.lane.b32.xlu0 %v356, 64
      %v359 = vpop.permute.xlu0 %358
      %360 = vrot.lane.b32.xlu0 %v357, 64
      %v361 = vpop.permute.xlu0 %360
      %v368 = vcombine.low %v280, %v281
      %v369 = vcombine.low %v282, %v283
      %vm372 = vcmask 523264
      %v373 = vsel %vm372, %v288, %v299
      %v374 = vsel %vm372, %v289, %v301
      %v375 = vsel %vm372, %v308, %v319
      %v376 = vsel %vm372, %v309, %v321
      %v377 = vsel %vm372, %v328, %v339
      %v378 = vsel %vm372, %v329, %v341
      %v379 = vsel %vm372, %v348, %v359
      %v380 = vsel %vm372, %v349, %v361
      %v381 = vpack.c.bf16 %v374, %v373
      %v382 = vpack.c.bf16 %v376, %v375
      %v383 = vpack.c.bf16 %v378, %v377
      %v384 = vpack.c.bf16 %v380, %v379
      %v385 = vpack.c.bf16 %v369, %v368
      %v386 = vld [vmem:[%s1] sm:$0xf]
      %v387 = vld [vmem:[%s1 + $0x4] sm:$0xf]
      %v388 = vld [vmem:[%s1 + $0x8] sm:$0xf]
      %v389 = vld [vmem:[%s1 + $0xc] sm:$0xf]
      %v390 = vld [vmem:[%s1 + $0x10] sm:$0xf]
      %v391 = vld [vmem:[%s1 + $0x14] sm:$0xf]
      %v392 = vld [vmem:[%s1 + $0x18] sm:$0xf]
      %v393 = vld [vmem:[%s1 + $0x1c] sm:$0xf]
      %v394 = vld [vmem:[%s1 + $0x20] sm:$0xf]
      %v395 = vld [vmem:[%s1 + $0x24] sm:$0xf]
      %v396 = vld [vmem:[%s1 + $0x28] sm:$0xf]
      %v397 = vld [vmem:[%s1 + $0x2c] sm:$0xf]
      %v398 = vld [vmem:[%s1 + $0x30] sm:$0xf]
      %v399 = vld [vmem:[%s1 + $0x34] sm:$0xf]
      %v400 = vld [vmem:[%s1 + $0x38] sm:$0xf]
      %v401 = vld [vmem:[%s1 + $0x3c] sm:$0xf]
      %v402 = vld [vmem:[%s1 + $0x40] sm:$0xf]
      %v403 = vld [vmem:[%s1 + $0x44] sm:$0xf]
      %v404 = vld [vmem:[%s1 + $0x48] sm:$0xf]
      %v405 = vld [vmem:[%s1 + $0x4c] sm:$0xf]
      %v406 = vld [vmem:[%s1 + $0x50] sm:$0xf]
      %v407 = vld [vmem:[%s1 + $0x54] sm:$0xf]
      %v408 = vld [vmem:[%s1 + $0x58] sm:$0xf]
      %v409 = vld [vmem:[%s1 + $0x5c] sm:$0xf]
      %v410 = vld [vmem:[%s1 + $0x60] sm:$0xf]
      %v411 = vld [vmem:[%s1 + $0x64] sm:$0xf]
      %v412 = vld [vmem:[%s1 + $0x68] sm:$0xf]
      %v413 = vld [vmem:[%s1 + $0x6c] sm:$0xf]
      %v414 = vld [vmem:[%s1 + $0x70] sm:$0xf]
      %v415 = vld [vmem:[%s1 + $0x74] sm:$0xf]
      %v416 = vld [vmem:[%s1 + $0x78] sm:$0xf]
      %v417 = vld [vmem:[%s1 + $0x7c] sm:$0xf]
      %v418 = vld [vmem:[%s1 + $0x80] sm:$0xf]
      %v419 = vld [vmem:[%s1 + $0x84] sm:$0xf]
      %v420 = vld [vmem:[%s1 + $0x88] sm:$0xf]
      %v421 = vld [vmem:[%s1 + $0x8c] sm:$0xf]
      %v422 = vld [vmem:[%s1 + $0x90] sm:$0xf]
      %v423 = vld [vmem:[%s1 + $0x94] sm:$0xf]
      %v424 = vld [vmem:[%s1 + $0x98] sm:$0xf]
      %v425 = vld [vmem:[%s1 + $0x9c] sm:$0xf]
      %v426 = vld [vmem:[%s1 + $0xa0] sm:$0xf]
      %v427 = vld [vmem:[%s1 + $0xa4] sm:$0xf]
      %v428 = vld [vmem:[%s1 + $0xa8] sm:$0xf]
      %v429 = vld [vmem:[%s1 + $0xac] sm:$0xf]
      %v430 = vld [vmem:[%s1 + $0xb0] sm:$0xf]
      %v431 = vld [vmem:[%s1 + $0xb4] sm:$0xf]
      %v432 = vld [vmem:[%s1 + $0xb8] sm:$0xf]
      %v433 = vld [vmem:[%s1 + $0xbc] sm:$0xf]
      %v434 = vld [vmem:[%s1 + $0xc0] sm:$0xf]
      %v435 = vld [vmem:[%s1 + $0xc4] sm:$0xf]
      %v436 = vld [vmem:[%s1 + $0xc8] sm:$0xf]
      %v437 = vld [vmem:[%s1 + $0xcc] sm:$0xf]
      %v438 = vld [vmem:[%s1 + $0xd0] sm:$0xf]
      %v439 = vld [vmem:[%s1 + $0xd4] sm:$0xf]
      %v440 = vld [vmem:[%s1 + $0xd8] sm:$0xf]
      %v441 = vld [vmem:[%s1 + $0xdc] sm:$0xf]
      %v442 = vld [vmem:[%s1 + $0xe0] sm:$0xf]
      %v443 = vld [vmem:[%s1 + $0xe4] sm:$0xf]
      %v444 = vld [vmem:[%s1 + $0xe8] sm:$0xf]
      %v445 = vld [vmem:[%s1 + $0xec] sm:$0xf]
      %v446 = vld [vmem:[%s1 + $0xf0] sm:$0xf]
      %v447 = vld [vmem:[%s1 + $0xf4] sm:$0xf]
      %v448 = vld [vmem:[%s1 + $0xf8] sm:$0xf]
      %v449 = vld [vmem:[%s1 + $0xfc] sm:$0xf]
      %v450 = vld [vmem:[%s1 + $0x100] sm:$0xf]
      %v451 = vld [vmem:[%s1 + $0x104] sm:$0xf]
      %v452 = vld [vmem:[%s1 + $0x108] sm:$0xf]
      %v453 = vld [vmem:[%s1 + $0x10c] sm:$0xf]
      %v454 = vld [vmem:[%s1 + $0x110] sm:$0xf]
      %v455 = vld [vmem:[%s1 + $0x114] sm:$0xf]
      %v456 = vld [vmem:[%s1 + $0x118] sm:$0xf]
      %v457 = vld [vmem:[%s1 + $0x11c] sm:$0xf]
      %v458 = vld [vmem:[%s2] sm:$0x1]
      %v460 = vlaneseq
      %v461 = vshrl.u32 %v460, 7
      %v462 = vsub.s32 0, %v461
      %v463 = vrot.slane %v458, %v462
      %v537 = vunpack.c.l.b16 %v386
      %v538 = vunpack.c.l.b16 %v387
      %v539 = vunpack.c.l.b16 %v388
      %v540 = vunpack.c.l.b16 %v389
      %v541 = vunpack.c.l.b16 %v390
      %v542 = vunpack.c.l.b16 %v391
      %v543 = vunpack.c.l.b16 %v392
      %v544 = vunpack.c.l.b16 %v393
      %v545 = vunpack.c.l.b16 %v394
      %v546 = vunpack.c.l.b16 %v395
      %v547 = vunpack.c.l.b16 %v396
      %v548 = vunpack.c.l.b16 %v397
      %v549 = vunpack.c.l.b16 %v398
      %v550 = vunpack.c.l.b16 %v399
      %v551 = vunpack.c.l.b16 %v400
      %v552 = vunpack.c.l.b16 %v401
      %v553 = vunpack.c.l.b16 %v402
      %v554 = vunpack.c.l.b16 %v403
      %v555 = vunpack.c.l.b16 %v404
      %v556 = vunpack.c.l.b16 %v405
      %v557 = vunpack.c.l.b16 %v406
      %v558 = vunpack.c.l.b16 %v407
      %v559 = vunpack.c.l.b16 %v408
      %v560 = vunpack.c.l.b16 %v409
      %v561 = vunpack.c.l.b16 %v410
      %v562 = vunpack.c.l.b16 %v411
      %v563 = vunpack.c.l.b16 %v412
      %v564 = vunpack.c.l.b16 %v413
      %v565 = vunpack.c.l.b16 %v414
      %v566 = vunpack.c.l.b16 %v415
      %v567 = vunpack.c.l.b16 %v416
      %v568 = vunpack.c.l.b16 %v417
      %v569 = vunpack.c.l.b16 %v418
      %v570 = vunpack.c.l.b16 %v419
      %v571 = vunpack.c.l.b16 %v420
      %v572 = vunpack.c.l.b16 %v421
      %v573 = vunpack.c.l.b16 %v422
      %v574 = vunpack.c.l.b16 %v423
      %v575 = vunpack.c.l.b16 %v424
      %v576 = vunpack.c.l.b16 %v425
      %v577 = vunpack.c.l.b16 %v426
      %v578 = vunpack.c.l.b16 %v427
      %v579 = vunpack.c.l.b16 %v428
      %v580 = vunpack.c.l.b16 %v429
      %v581 = vunpack.c.l.b16 %v430
      %v582 = vunpack.c.l.b16 %v431
      %v583 = vunpack.c.l.b16 %v432
      %v584 = vunpack.c.l.b16 %v433
      %v585 = vunpack.c.l.b16 %v434
      %v586 = vunpack.c.l.b16 %v435
      %v587 = vunpack.c.l.b16 %v436
      %v588 = vunpack.c.l.b16 %v437
      %v589 = vunpack.c.l.b16 %v438
      %v590 = vunpack.c.l.b16 %v439
      %v591 = vunpack.c.l.b16 %v440
      %v592 = vunpack.c.l.b16 %v441
      %v593 = vunpack.c.l.b16 %v442
      %v594 = vunpack.c.l.b16 %v443
      %v595 = vunpack.c.l.b16 %v444
      %v596 = vunpack.c.l.b16 %v445
      %v597 = vunpack.c.l.b16 %v446
      %v598 = vunpack.c.l.b16 %v447
      %v599 = vunpack.c.l.b16 %v448
      %v600 = vunpack.c.l.b16 %v449
      %v601 = vunpack.c.l.b16 %v450
      %v602 = vunpack.c.l.b16 %v451
      %v603 = vunpack.c.l.b16 %v452
      %v604 = vunpack.c.l.b16 %v453
      %v605 = vunpack.c.l.b16 %v454
      %v606 = vunpack.c.l.b16 %v455
      %v607 = vunpack.c.l.b16 %v456
      %v608 = vunpack.c.l.b16 %v457
      %v609 = vpack.c.b16 %v538, %v537
      %v610 = vpack.c.b16 %v540, %v539
      %v611 = vpack.c.b16 %v542, %v541
      %v612 = vpack.c.b16 %v544, %v543
      %v613 = vpack.c.b16 %v546, %v545
      %v614 = vpack.c.b16 %v548, %v547
      %v615 = vpack.c.b16 %v550, %v549
      %v616 = vpack.c.b16 %v552, %v551
      %v617 = vpack.c.b16 %v554, %v553
      %v618 = vpack.c.b16 %v556, %v555
      %v619 = vpack.c.b16 %v558, %v557
      %v620 = vpack.c.b16 %v560, %v559
      %v621 = vpack.c.b16 %v562, %v561
      %v622 = vpack.c.b16 %v564, %v563
      %v623 = vpack.c.b16 %v566, %v565
      %v624 = vpack.c.b16 %v568, %v567
      %v625 = vpack.c.b16 %v570, %v569
      %v626 = vpack.c.b16 %v572, %v571
      %v627 = vpack.c.b16 %v574, %v573
      %v628 = vpack.c.b16 %v576, %v575
      %v629 = vpack.c.b16 %v578, %v577
      %v630 = vpack.c.b16 %v580, %v579
      %v631 = vpack.c.b16 %v582, %v581
      %v632 = vpack.c.b16 %v584, %v583
      %v633 = vpack.c.b16 %v586, %v585
      %v634 = vpack.c.b16 %v588, %v587
      %v635 = vpack.c.b16 %v590, %v589
      %v636 = vpack.c.b16 %v592, %v591
      %v637 = vpack.c.b16 %v594, %v593
      %v638 = vpack.c.b16 %v596, %v595
      %v639 = vpack.c.b16 %v598, %v597
      %v640 = vpack.c.b16 %v600, %v599
      %v641 = vpack.c.b16 %v602, %v601
      %v642 = vpack.c.b16 %v604, %v603
      %v643 = vpack.c.b16 %v606, %v605
      %v644 = vpack.c.b16 %v608, %v607
      %v682 = vsel %vm372, %v385, 0
      %684 = vmatprep.subr.bf16.mxu0 0
      %685 = vmatpush1.bf16.msra.mxu0 %v609
      %686 = vmatprep.subr.bf16.mxu0 0
      %687 = vmatpush1.bf16.msra.mxu0 %v610
      %688 = vmatprep.subr.bf16.mxu0 0
      %689 = vmatpush1.bf16.msra.mxu0 %v611
      %690 = vmatprep.subr.bf16.mxu0 0
      %691 = vmatpush1.bf16.msra.mxu0 %v612
      %692 = vmatprep.subr.bf16.mxu0 0
      %693 = vmatpush1.bf16.msra.mxu0 %v613
      %694 = vmatprep.subr.bf16.mxu0 0
      %695 = vmatpush1.bf16.msra.mxu0 %v614
      %696 = vmatprep.subr.bf16.mxu0 0
      %697 = vmatpush1.bf16.msra.mxu0 %v615
      %698 = vmatprep.subr.bf16.mxu0 0
      %699 = vmatpush1.bf16.msra.mxu0 %v616
      %700 = vmatprep.subr.bf16.mxu0 0
      %701 = vmatpush1.bf16.msra.mxu0 %v617
      %702 = vmatprep.subr.bf16.mxu0 0
      %703 = vmatpush1.bf16.msra.mxu0 %v618
      %704 = vmatprep.subr.bf16.mxu0 0
      %705 = vmatpush1.bf16.msra.mxu0 %v619
      %706 = vmatprep.subr.bf16.mxu0 0
      %707 = vmatpush1.bf16.msra.mxu0 %v620
      %708 = vmatprep.subr.bf16.mxu0 0
      %709 = vmatpush1.bf16.msra.mxu0 %v621
      %710 = vmatprep.subr.bf16.mxu0 0
      %711 = vmatpush1.bf16.msra.mxu0 %v622
      %712 = vmatprep.subr.bf16.mxu0 0
      %713 = vmatpush1.bf16.msra.mxu0 %v623
      %714 = vmatprep.subr.bf16.mxu0 0
      %715 = vmatpush1.bf16.msra.mxu0 %v624
      %716 = vmatprep.mubr.bf16.mxu0 %v382
      %717 = vmatmul.mubr.bf16.gmra.mrb[0].mxu0 %v381
      %v718 = vpop.f32.mrb[0].mxu0
      %v719 = vadd.f32 %v463, %v718
      %v720 = vpop.f32.mrb[0].mxu0
      %v721 = vpop.f32.mrb[0].mxu0
      %v722 = vadd.f32 %v463, %v721
      %v723 = vpop.f32.mrb[0].mxu0
      %724 = vdwg.mxu0
      %725 = vmatprep.subr.bf16.mxu0 0
      %726 = vmatpush1.bf16.msra.mxu0 %v625
      %727 = vmatprep.subr.bf16.mxu0 0
      %728 = vmatpush1.bf16.msra.mxu0 %v626
      %729 = vmatprep.subr.bf16.mxu0 0
      %730 = vmatpush1.bf16.msra.mxu0 %v627
      %731 = vmatprep.subr.bf16.mxu0 0
      %732 = vmatpush1.bf16.msra.mxu0 %v628
      %733 = vmatprep.subr.bf16.mxu0 0
      %734 = vmatpush1.bf16.msra.mxu0 %v629
      %735 = vmatprep.subr.bf16.mxu0 0
      %736 = vmatpush1.bf16.msra.mxu0 %v630
      %737 = vmatprep.subr.bf16.mxu0 0
      %738 = vmatpush1.bf16.msra.mxu0 %v631
      %739 = vmatprep.subr.bf16.mxu0 0
      %740 = vmatpush1.bf16.msra.mxu0 %v632
      %741 = vmatprep.subr.bf16.mxu0 0
      %742 = vmatpush1.bf16.msra.mxu0 %v633
      %743 = vmatprep.subr.bf16.mxu0 0
      %744 = vmatpush1.bf16.msra.mxu0 %v634
      %745 = vmatprep.subr.bf16.mxu0 0
      %746 = vmatpush1.bf16.msra.mxu0 %v635
      %747 = vmatprep.subr.bf16.mxu0 0
      %748 = vmatpush1.bf16.msra.mxu0 %v636
      %749 = vmatprep.subr.bf16.mxu0 0
      %750 = vmatpush1.bf16.msra.mxu0 %v637
      %751 = vmatprep.subr.bf16.mxu0 0
      %752 = vmatpush1.bf16.msra.mxu0 %v638
      %753 = vmatprep.subr.bf16.mxu0 0
      %754 = vmatpush1.bf16.msra.mxu0 %v639
      %755 = vmatprep.subr.bf16.mxu0 0
      %756 = vmatpush1.bf16.msra.mxu0 %v640
      %757 = vmatprep.mubr.bf16.mxu0 %v384
      %758 = vmatmul.mubr.bf16.gmra.mrb[0].mxu0 %v383
      %v759 = vpop.f32.mrb[0].mxu0
      %v760 = vadd.f32 %v719, %v759
      %v761 = vpop.f32.mrb[0].mxu0
      %v762 = vpop.f32.mrb[0].mxu0
      %v763 = vadd.f32 %v722, %v762
      %v764 = vpop.f32.mrb[0].mxu0
      %765 = vdwg.mxu0
      %766 = vmatprep.subr.bf16.mxu0 0
      %767 = vmatpush1.bf16.msra.mxu0 %v641
      %768 = vmatprep.subr.bf16.mxu0 0
      %769 = vmatpush1.bf16.msra.mxu0 %v642
      %770 = vmatprep.subr.bf16.mxu0 0
      %771 = vmatpush1.bf16.msra.mxu0 %v643
      %772 = vmatprep.subr.bf16.mxu0 0
      %773 = vmatpush1.bf16.msra.mxu0 %v644
      %774 = vmatprep.subr.bf16.mxu0 0
      %775 = vmatpush1.bf16.msra.mxu0 0
      %776 = vmatprep.subr.bf16.mxu0 0
      %777 = vmatpush1.bf16.msra.mxu0 0
      %778 = vmatprep.subr.bf16.mxu0 0
      %779 = vmatpush1.bf16.msra.mxu0 0
      %780 = vmatprep.subr.bf16.mxu0 0
      %781 = vmatpush1.bf16.msra.mxu0 0
      %782 = vmatprep.subr.bf16.mxu0 0
      %783 = vmatpush1.bf16.msra.mxu0 0
      %784 = vmatprep.subr.bf16.mxu0 0
      %785 = vmatpush1.bf16.msra.mxu0 0
      %786 = vmatprep.subr.bf16.mxu0 0
      %787 = vmatpush1.bf16.msra.mxu0 0
      %788 = vmatprep.subr.bf16.mxu0 0
      %789 = vmatpush1.bf16.msra.mxu0 0
      %790 = vmatprep.subr.bf16.mxu0 0
      %791 = vmatpush1.bf16.msra.mxu0 0
      %792 = vmatprep.subr.bf16.mxu0 0
      %793 = vmatpush1.bf16.msra.mxu0 0
      %794 = vmatprep.subr.bf16.mxu0 0
      %795 = vmatpush1.bf16.msra.mxu0 0
      %796 = vmatprep.subr.bf16.mxu0 0
      %797 = vmatpush1.bf16.msra.mxu0 0
      %798 = vmatprep.mubr.bf16.mxu0 0
      %799 = vmatmul.mubr.bf16.gmra.mrb[0].mxu0 %v682
      %v800 = vpop.f32.mrb[0].mxu0
      %v801 = vadd.f32 %v760, %v800
      %v802 = vpop.f32.mrb[0].mxu0
      %v803 = vpop.f32.mrb[0].mxu0
      %v804 = vadd.f32 %v763, %v803
      %v805 = vpop.f32.mrb[0].mxu0
      %806 = vdwg.mxu0
      %v807 = vtanh.pop %v801
      %v808 = vtanh.pop %v804
      %809 = vst.msk [vmem:[%s235] sm:$0xff] %vm372, %v807
      %810 = vst.msk [vmem:[%s235 + $0x8] sm:$0xff] %vm372, %v808
      %v811 = vsel %vm372, %v807, 0.0
      %v812 = vsel %vm372, %v808, 0.0
      %v813 = vadd.f32 %v811, %v812
      %v814 = vrot.slane %v813, 4
      %v815 = vadd.f32 %v813, %v814
      %v816 = vrot.slane %v815, 2
      %v817 = vadd.f32 %v815, %v816
      %v818 = vrot.slane %v817, 1
      %v819 = vadd.f32 %v817, %v818
      %vm820 = vcmask 516096
      %821 = vst.msk [vmem:[%s238] sm:$0x1] %vm820, %v819
      %v822 = vmul.f32 %v807, %v807
      %v823 = vmul.f32 %v808, %v808
      %v824 = vsel %vm372, %v822, 0.0
      %v825 = vsel %vm372, %v823, 0.0
      %v826 = vadd.f32 %v824, %v825
      %v827 = vrot.slane %v826, 4
      %v828 = vadd.f32 %v826, %v827
      %v829 = vrot.slane %v828, 2
      %v830 = vadd.f32 %v828, %v829
      %v831 = vrot.slane %v830, 1
      %v832 = vadd.f32 %v830, %v831
      %833 = vst.msk [vmem:[%s241] sm:$0x1] %vm820, %v832
      %p834 = scmp.lt.s32.totalorder %s17, 1
      %s835 = scalar_select %p834, %s17, 1
      %s836 = smul.addr %s835, 2
      %s837 = smul.addr %s836, 8
      %s838 = scalar_lea.vmem %s3, %s837
      %p839 = scmp.lt.s32.totalorder %s17, 1
      %s840 = scalar_select %p839, %s17, 1
      %s841 = scalar_lea.vmem %s4, %s840
      %p842 = scmp.lt.s32.totalorder %s17, 1
      %s843 = scalar_select %p842, %s17, 1
      %s844 = scalar_lea.vmem %s5, %s843
      // Predicated region
      $region33: #{cnn_encoder_forward.10} parent=31 // pred_check
        %p845 = pneg %p103
      $region34: #{cnn_encoder_forward.10} parent=31 // pred_check_branch
        %847 = sbr.rel (%p845) target = $region36
      $region35: #{cnn_encoder_forward.10} parent=31 // pred_region
        _
      $region36: #{cnn_encoder_forward.10} parent=31 // pred_fallthru
        _
      // Predicated region
      $region37: #{cnn_encoder_forward.10} parent=31 // pred_check
        %p848 = pneg %p129
      $region38: #{cnn_encoder_forward.10} parent=31 // pred_check_branch
        %850 = sbr.rel (%p848) target = $region40
      $region39: #{cnn_encoder_forward.10} parent=31 // pred_region
        _
      $region40: #{cnn_encoder_forward.10} parent=31 // pred_fallthru
        _
      // Predicated region
      $region41: #{cnn_encoder_forward.10} parent=31 // pred_check
        %p851 = pneg %p155
      $region42: #{cnn_encoder_forward.10} parent=31 // pred_check_branch
        %853 = sbr.rel (%p851) target = $region44
      $region43: #{cnn_encoder_forward.10} parent=31 // pred_region
        _
      $region44: #{cnn_encoder_forward.10} parent=31 // pred_fallthru
        _
    $region32: #{cnn_encoder_forward.10} parent=5 // pred_fallthru
      _
    %p854 = scmp.le.s32.totalorder 2, %s12
    // Predicated region
    $region45: #{cnn_encoder_forward.10} parent=5 // pred_check
      %p855 = pneg %p854
    $region46: #{cnn_encoder_forward.10} parent=5 // pred_check_branch
      %857 = sbr.rel (%p855) target = $region48
    $region47: #{cnn_encoder_forward.10} parent=5 // pred_region
      %s858 = ssub.s32 %s12, 2
      // Predicated region
      $region49: #{cnn_encoder_forward.10} parent=47 // pred_check
        %p859 = pneg %p109
      $region50: #{cnn_encoder_forward.10} parent=47 // pred_check_branch
        %861 = sbr.rel (%p859) target = $region52
      $region51: #{cnn_encoder_forward.10} parent=47 // pred_region
        %p862 = scmp.lt.s32.totalorder %s18, 1
        %s863 = scalar_select %p862, %s18, 1
        %s864 = smul.addr %s863, 2
        %s865 = smul.addr %s864, 8
        %s866 = scalar_lea.vmem %s3, %s865
      $region52: #{cnn_encoder_forward.10} parent=47 // pred_fallthru
        _
      // Predicated region
      $region53: #{cnn_encoder_forward.10} parent=47 // pred_check
        %p867 = pneg %p135
      $region54: #{cnn_encoder_forward.10} parent=47 // pred_check_branch
        %869 = sbr.rel (%p867) target = $region56
      $region55: #{cnn_encoder_forward.10} parent=47 // pred_region
        %p870 = scmp.lt.s32.totalorder %s18, 1
        %s871 = scalar_select %p870, %s18, 1
        %s872 = scalar_lea.vmem %s4, %s871
      $region56: #{cnn_encoder_forward.10} parent=47 // pred_fallthru
        _
      // Predicated region
      $region57: #{cnn_encoder_forward.10} parent=47 // pred_check
        %p873 = pneg %p161
      $region58: #{cnn_encoder_forward.10} parent=47 // pred_check_branch
        %875 = sbr.rel (%p873) target = $region60
      $region59: #{cnn_encoder_forward.10} parent=47 // pred_region
        %p876 = scmp.lt.s32.totalorder %s18, 1
        %s877 = scalar_select %p876, %s18, 1
        %s878 = scalar_lea.vmem %s5, %s877
      $region60: #{cnn_encoder_forward.10} parent=47 // pred_fallthru
        _
    $region48: #{cnn_encoder_forward.10} parent=5 // pred_fallthru
      _
  $region6: #{cnn_encoder_forward.10} parent=0 // loop_footer
    %s16 = sadd.s32 1, %s12
  $region7: #{cnn_encoder_forward.10} parent=0 // loop_footer_branch
    %11 = sbr.rel target = $region3
  $region8: #{cnn_encoder_forward.10} parent=0 // loop_exit
    _

// kernel: cnn_encoder_forward.11
$region0: #{cnn_encoder_forward.11}
  #allocation0 [shape = 'u32[]', space=smem, size = 0x4, offset = 0x4, fixed_abs, tag = 'smem constant byte address 0x4 - core index']
  #allocation1 [shape = 'u32[144,128]{1,0:T(1,128)}', space=vmem, size = 0x12000, scoped, tag = 'internal scratch']
  %s0 = inlined_call_operand.vmem [shape: f32[8,256], index: 0, kind: input, shape index: {}]
  %s1 = inlined_call_operand.vmem [shape: f32[1,256], index: 1, kind: input, shape index: {}]
  %s2 = inlined_call_operand.vmem [shape: f32[1,256], index: 2, kind: input, shape index: {}]
  %s3 = inlined_call_operand.vmem [shape: f32[8,256], index: 3, kind: output, shape index: {}]
  %s4 = sld [smem:[#allocation0]]
  $region22: #{cnn_encoder_forward.11} parent=0
    _
  %s6 = ssub.s32 1, %s4
  %s7 = scalar_select 0, %s6, %s4
  // Predicated region
  $region2: #{cnn_encoder_forward.11} parent=0 // pred_check
    _
  $region3: #{cnn_encoder_forward.11} parent=0 // pred_check_branch
    %9 = sbr.rel (0) target = $region5
  $region4: #{cnn_encoder_forward.11} parent=0 // pred_region
    _
  $region5: #{cnn_encoder_forward.11} parent=0 // pred_fallthru
    _
  // Predicated region
  $region6: #{cnn_encoder_forward.11} parent=0 // pred_check
    _
  $region7: #{cnn_encoder_forward.11} parent=0 // pred_check_branch
    %11 = sbr.rel (0) target = $region9
  $region8: #{cnn_encoder_forward.11} parent=0 // pred_region
    _
  $region9: #{cnn_encoder_forward.11} parent=0 // pred_fallthru
    _
  // Predicated region
  $region10: #{cnn_encoder_forward.11} parent=0 // pred_check
    _
  $region11: #{cnn_encoder_forward.11} parent=0 // pred_check_branch
    %13 = sbr.rel (0) target = $region13
  $region12: #{cnn_encoder_forward.11} parent=0 // pred_region
    _
  $region13: #{cnn_encoder_forward.11} parent=0 // pred_fallthru
    _
  %v14 = vld [vmem:[%s0] sm:$0xff]
  %v15 = vld [vmem:[%s0 + $0x8] sm:$0xff]
  %v16 = vld [vmem:[%s1] sm:$0x3]
  %v18 = vlaneseq
  %v19 = vshrl.u32 %v18, 7
  %v20 = vsub.s32 0, %v19
  %v21 = vrot.slane %v16, %v20
  %v22 = vlaneseq
  %v23 = vshrl.u32 %v22, 7
  %v24 = vsub.s32 1, %v23
  %v25 = vrot.slane %v16, %v24
  %v28 = vmul.f32 %v14, %v21
  %v29 = vmul.f32 %v15, %v25
  %v30 = vld [vmem:[%s2] sm:$0x3]
  %v32 = vlaneseq
  %v33 = vshrl.u32 %v32, 7
  %v34 = vsub.s32 0, %v33
  %v35 = vrot.slane %v30, %v34
  %v36 = vlaneseq
  %v37 = vshrl.u32 %v36, 7
  %v38 = vsub.s32 1, %v37
  %v39 = vrot.slane %v30, %v38
  %v42 = vadd.f32 %v28, %v35
  %v43 = vadd.f32 %v29, %v39
  %44 = vst [vmem:[%s3] sm:$0xff] %v42
  %45 = vst [vmem:[%s3 + $0x8] sm:$0xff] %v43
  // Predicated region
  $region14: #{cnn_encoder_forward.11} parent=0 // pred_check
    _
  $region15: #{cnn_encoder_forward.11} parent=0 // pred_check_branch
    %47 = sbr.rel (0) target = $region17
  $region16: #{cnn_encoder_forward.11} parent=0 // pred_region
    _
  $region17: #{cnn_encoder_forward.11} parent=0 // pred_fallthru
    _
  // Predicated region
  $region18: #{cnn_encoder_forward.11} parent=0 // pred_check
    _
  $region19: #{cnn_encoder_forward.11} parent=0 // pred_check_branch
    %49 = sbr.rel (0) target = $region21
  $region20: #{cnn_encoder_forward.11} parent=0 // pred_region
    _
  $region21: #{cnn_encoder_forward.11} parent=0 // pred_fallthru
    _

</llo_original>
